<compile_context>
chip_gen: v6e
topology: v6e:2x2x1
jax: 0.10.0
libtpu: 0.0.40
codegen_flags: <defaults>
</compile_context>

<pallas_src>
import math
import functools

import jax
import jax.numpy as jnp
from jax.experimental import pallas as pl
from jax.experimental.pallas import tpu as pltpu

LN_EPS = 1e-12  # DistilBERT LayerNorm eps


# ------------------------------ fused kernel ---------------------------------

def _encoder_kernel(ids_ref, mask_ref, emb_tab_ref, vec_misc_ref,
                    w_in_ref, o_w_ref, w2_ref, vec_layer_ref, post_w_ref,
                    out_ref, *, num_heads, num_layers, vocab_pad, d_ff):
    # ids:      [B*S, 1] int32
    # mask:     [B, 1, S] f32 (1 = keep, 0 = pad)
    # emb_tab:  [vocab_pad + max_pos, D] f32  (word rows, then position rows)
    # vec_misc: [3, D] f32   rows: emb_ln_gamma, emb_ln_beta, post_bias
    # w_in:     [L, D, 3D + d_ff] bf16  lanes: [Wq|Wk|Wv | W_ffn_in]
    # o_w:      [L, H, hd, D] bf16      per-head attention output projection
    # w2:       [L, d_ff, D] bf16
    # vec_layer:[L, 8, 3D] f32  rows: qkv_b, o_b, sa_ln_g, sa_ln_b, b1, b2,
    #                                 out_ln_g, out_ln_b (lane-padded)
    # post_w:   [D, D] bf16
    B, _, S = mask_ref.shape
    D = emb_tab_ref.shape[1]
    H = num_heads
    hd = D // H
    N = B * S
    V = vocab_pad
    f32, bf16 = jnp.float32, jnp.bfloat16

    def layernorm(x, g, b):
        mu = jnp.mean(x, axis=-1, keepdims=True)
        var = jnp.mean((x - mu) ** 2, axis=-1, keepdims=True)
        return (x - mu) * jax.lax.rsqrt(var + LN_EPS) * g + b

    def mm(a, w):
        # bf16 operands (MXU-native on v5e/v6e/v7x) with f32 accumulation.
        return jnp.dot(a.astype(bf16), w, preferred_element_type=f32)

    # ---- embeddings: exact gather via one-hot @ table (vocab lane-padded) ---
    ids = ids_ref[...]                                          # [N, 1] int32
    iota = jax.lax.broadcasted_iota(jnp.int32, (N, V), 1)
    onehot = (iota == ids).astype(f32)                          # [N, V]
    word = jnp.dot(onehot, emb_tab_ref[0:V, :],
                   preferred_element_type=f32)                  # [N, D] exact
    pos = emb_tab_ref[V:V + S, :]                               # [S, D]
    h = (word.reshape(B, S, D) + pos).reshape(N, D)             # broadcast add
    misc = vec_misc_ref[...]                                    # [3, D]
    h = layernorm(h, misc[0, :], misc[1, :])                    # [N, D] f32

    # ---- hoisted additive attention bias, full batched-head shape -----------
    bias = (mask_ref[...] - 1.0) * 1e9                          # [B, 1, S]
    bias_z = jnp.broadcast_to(bias.reshape(1, B, 1, S),
                              (H, B, S, S)).reshape(H * B, S, S)

    for l in range(num_layers):                                 # unrolled (L=2)
        w_in = w_in_ref[l]                                      # [D, 3D+d_ff]
        vl = vec_layer_ref[l]                                   # [8, 3D] f32
        qkv_w = w_in[:, 0:3 * D]
        w1 = w_in[:, 3 * D:3 * D + d_ff]

        # fused QKV projection: one wide [D, 3D] matmul (scale folded into Wq)
        qkv = mm(h, qkv_w) + vl[0, 0:3 * D]                     # [N, 3D] f32

        # split heads (static lane slices) and stack along a LEADING batch dim
        qs, ks, vs = [], [], []
        for hh in range(H):
            qs.append(qkv[:, hh * hd:(hh + 1) * hd].reshape(B, S, hd))
            ks.append(qkv[:, D + hh * hd:D + (hh + 1) * hd].reshape(B, S, hd))
            vs.append(qkv[:, 2 * D + hh * hd:2 * D + (hh + 1) * hd].reshape(B, S, hd))
        q_z = jnp.concatenate(qs, axis=0).astype(bf16)          # [H*B, S, hd]
        k_z = jnp.concatenate(ks, axis=0).astype(bf16)
        v_z = jnp.concatenate(vs, axis=0).astype(bf16)

        # one batched MXU matmul for ALL heads' scores
        s = jnp.einsum('zqd,zkd->zqk', q_z, k_z,
                       preferred_element_type=f32) + bias_z     # [H*B, S, S]
        s = s - jnp.max(s, axis=-1, keepdims=True)
        e = jnp.exp(s)
        p = e * pl.reciprocal(jnp.sum(e, axis=-1, keepdims=True), approx=True)

        # one batched context matmul for ALL heads
        ctx = jnp.einsum('zqk,zkd->zqd', p.astype(bf16), v_z,
                         preferred_element_type=f32)            # [H*B, S, hd]
        ctx = ctx.reshape(H, N, hd).astype(bf16)                # [H, B*S, hd]

        # batched per-head output projection + sum over heads (no lane concat)
        attn = jnp.einsum('hnd,hde->hne', ctx, o_w_ref[l],
                          preferred_element_type=f32)           # [H, N, D]
        attn = jnp.sum(attn, axis=0) + vl[1, 0:D]               # [N, D]

        # residual + LayerNorm
        h = layernorm(attn + h, vl[2, 0:D], vl[3, 0:D])

        # FFN (GELU, tanh approx) + residual + LayerNorm
        f = mm(h, w1) + vl[4, 0:d_ff]                           # [N, d_ff]
        # TODO(synk): HF DistilBERT GELU is erf-based; tanh approximation here.
        f2 = f * f
        c = math.sqrt(2.0 / math.pi)
        f = 0.5 * f * (1.0 + jnp.tanh(c * (f + 0.044715 * f * f2)))
        h = layernorm(mm(f, w2_ref[l]) + vl[5, 0:D] + h,
                      vl[6, 0:D], vl[7, 0:D])

    # ---- AdaptiveAvgPool1d(1) over the sequence + post Linear + Tanh --------
    pooled = jnp.mean(h.reshape(B, S, D), axis=1)               # [B, D]
    y = mm(pooled, post_w_ref[...]) + misc[2, :]
    out_ref[...] = jnp.tanh(y).astype(out_ref.dtype)


# ------------------------------ model definition -----------------------------

def init_params(key, vocab=100, vocab_pad=128, max_pos=16, d=32, n_heads=4,
                n_layers=2, d_ff=64):
    hd = d // n_heads
    scale = 1.0 / math.sqrt(hd)

    def nrm(k, shape, s=0.02):
        return s * jax.random.normal(k, shape, dtype=jnp.float32)

    keys = jax.random.split(key, 3 + n_layers)

    # embedding table: [vocab_pad word rows (lane-friendly) | max_pos pos rows]
    word = nrm(keys[0], (vocab, d))
    word = jnp.concatenate(
        [word, jnp.zeros((vocab_pad - vocab, d), jnp.float32)], axis=0)
    pos = nrm(keys[1], (max_pos, d))
    emb_tab = jnp.concatenate([word, pos], axis=0)              # f32, exact gather

    w_in, o_w, w2, vec_layer = [], [], [], []
    for i in range(n_layers):
        lk = jax.random.split(keys[3 + i], 6)
        q_w = nrm(lk[0], (d, d)) * scale      # fold 1/sqrt(hd) into Wq
        k_w = nrm(lk[1], (d, d))
        v_w = nrm(lk[2], (d, d))
        qkv_w = jnp.concatenate([q_w, k_w, v_w], axis=1)        # [d, 3d]
        w1_l = nrm(lk[4], (d, d_ff))
        w_in.append(jnp.concatenate([qkv_w, w1_l], axis=1))     # [d, 3d + d_ff]
        o_w.append(nrm(lk[3], (d, d)).reshape(n_heads, hd, d))  # [H, hd, d]
        w2.append(nrm(lk[5], (d_ff, d)))

        def row(v):
            return jnp.pad(v, (0, 3 * d - v.shape[0]))
        vec_layer.append(jnp.stack([
            row(jnp.zeros((3 * d,), jnp.float32)),  # qkv bias (q part scaled too)
            row(jnp.zeros((d,), jnp.float32)),      # attention output bias
            row(jnp.ones((d,), jnp.float32)),       # sa LayerNorm gamma
            row(jnp.zeros((d,), jnp.float32)),      # sa LayerNorm beta
            row(jnp.zeros((d_ff,), jnp.float32)),   # FFN bias 1
            row(jnp.zeros((d,), jnp.float32)),      # FFN bias 2
            row(jnp.ones((d,), jnp.float32)),       # out LayerNorm gamma
            row(jnp.zeros((d,), jnp.float32)),      # out LayerNorm beta
        ]))

    vec_misc = jnp.stack([jnp.ones((d,), jnp.float32),    # emb LayerNorm gamma
                          jnp.zeros((d,), jnp.float32),   # emb LayerNorm beta
                          jnp.zeros((d,), jnp.float32)])  # post Linear bias

    return {
        'num_heads': n_heads, 'num_layers': n_layers,
        'vocab_pad': vocab_pad, 'd_ff': d_ff,
        'emb_tab': emb_tab,                                     # f32
        'vec_misc': vec_misc,                                   # f32
        'w_in': jnp.stack(w_in).astype(jnp.bfloat16),           # [L, D, 3D+d_ff]
        'o_w': jnp.stack(o_w).astype(jnp.bfloat16),             # [L, H, hd, D]
        'w2': jnp.stack(w2).astype(jnp.bfloat16),               # [L, d_ff, D]
        'vec_layer': jnp.stack(vec_layer),                      # [L, 8, 3D] f32
        'post_w': nrm(keys[2], (d, d)).astype(jnp.bfloat16),    # [D, D]
    }


def sentence_encoder_forward(params, input_ids, attention_mask):
    B, S = input_ids.shape
    D = params['emb_tab'].shape[1]

    # Reshape the tiny int/mask inputs on the XLA side so the kernel only does
    # lane-broadcast-friendly ops.
    ids = input_ids.astype(jnp.int32).reshape(B * S, 1)
    mask = attention_mask.astype(jnp.float32).reshape(B, 1, S)

    kernel = functools.partial(_encoder_kernel,
                               num_heads=params['num_heads'],
                               num_layers=params['num_layers'],
                               vocab_pad=params['vocab_pad'],
                               d_ff=params['d_ff'])
    vmem = pl.BlockSpec(memory_space=pltpu.MemorySpace.VMEM)

    return pl.pallas_call(
        kernel,
        out_shape=jax.ShapeDtypeStruct((B, D), jnp.float32),
        in_specs=[vmem] * 9,
        out_specs=vmem,
    )(ids, mask,
      params['emb_tab'], params['vec_misc'],
      params['w_in'], params['o_w'], params['w2'],
      params['vec_layer'], params['post_w'])


# ----------------------------------- main ------------------------------------

if __name__ == "__main__":
    key = jax.random.PRNGKey(0)
    pkey, ikey = jax.random.split(key)

    B, S, D = 2, 8, 32
    params = init_params(pkey, d=D)

    input_ids = jax.random.randint(ikey, (B, S), 0, 100, dtype=jnp.int32)
    attention_mask = jnp.ones((B, S), jnp.int32).at[1, 6:].set(0)  # 2nd seq padded

    fwd = jax.jit(functools.partial(sentence_encoder_forward, params))
    out = jax.block_until_ready(fwd(input_ids, attention_mask))

    assert out.shape == (B, D)
    assert out.dtype == jnp.float32
    assert bool(jnp.all(jnp.isfinite(out)))
    print("KERNEL_OK")
</pallas_src>

<mosaic_0001>
module attributes {stable_mosaic.version = 11 : i64} {
  func.func @_encoder_kernel(%arg0: memref<16x1xi32, #tpu.memory_space<vmem>>, %arg1: memref<2x1x8xf32, #tpu.memory_space<vmem>>, %arg2: memref<144x32xf32, #tpu.memory_space<vmem>>, %arg3: memref<3x32xf32, #tpu.memory_space<vmem>>, %arg4: memref<2x32x160xbf16, #tpu.memory_space<vmem>>, %arg5: memref<2x4x8x32xbf16, #tpu.memory_space<vmem>>, %arg6: memref<2x64x32xbf16, #tpu.memory_space<vmem>>, %arg7: memref<2x8x96xf32, #tpu.memory_space<vmem>>, %arg8: memref<32x32xbf16, #tpu.memory_space<vmem>>, %arg9: memref<2x32xf32, #tpu.memory_space<vmem>>) attributes {dimension_semantics = [], scalar_prefetch = 0 : i64, scratch_operands = 0 : i64, tpu.core_type = #tpu.core_type<tc>} {
    %c0 = arith.constant 0 : index
    %c0_0 = arith.constant 0 : index
    %0 = vector.load %arg0[%c0, %c0_0] : memref<16x1xi32, #tpu.memory_space<vmem>>, vector<16x1xi32>
    %1 = tpu.iota {dimensions = array<i32: 1>} : vector<16x128xi32>
    %2 = vector.broadcast %0 : vector<16x1xi32> to vector<16x128xi32>
    %3 = arith.cmpi eq, %1, %2 : vector<16x128xi32>
    %4 = arith.extui %3 : vector<16x128xi1> to vector<16x128xi32>
    %5 = arith.sitofp %4 : vector<16x128xi32> to vector<16x128xf32>
    %c0_1 = arith.constant 0 : index
    %c0_2 = arith.constant 0 : index
    %6 = vector.load %arg2[%c0_1, %c0_2] : memref<144x32xf32, #tpu.memory_space<vmem>>, vector<128x32xf32>
    %cst = arith.constant dense<0.000000e+00> : vector<16x32xf32>
    %7 = tpu.matmul %5, %6, %cst {dimension_numbers = #tpu.dot_dimension_numbers<[1], [0], [0], [1], [0, 0, 1, 1], [], []>} : vector<16x128xf32>, vector<128x32xf32>, vector<16x32xf32> -> vector<16x32xf32>
    %c128 = arith.constant 128 : index
    %c0_3 = arith.constant 0 : index
    %8 = vector.load %arg2[%c128, %c0_3] : memref<144x32xf32, #tpu.memory_space<vmem>>, vector<8x32xf32>
    %9 = vector.shape_cast %7 : vector<16x32xf32> to vector<2x8x32xf32>
    %10 = vector.shape_cast %8 : vector<8x32xf32> to vector<1x8x32xf32>
    %11 = vector.broadcast %10 : vector<1x8x32xf32> to vector<2x8x32xf32>
    %12 = arith.addf %9, %11 : vector<2x8x32xf32>
    %13 = vector.shape_cast %12 : vector<2x8x32xf32> to vector<16x32xf32>
    %c0_4 = arith.constant 0 : index
    %c0_5 = arith.constant 0 : index
    %14 = vector.load %arg3[%c0_4, %c0_5] : memref<3x32xf32, #tpu.memory_space<vmem>>, vector<3x32xf32>
    %15 = vector.extract_strided_slice %14 {offsets = [0, 0], sizes = [1, 32], strides = [1, 1]} : vector<3x32xf32> to vector<1x32xf32>
    %16 = vector.shape_cast %15 : vector<1x32xf32> to vector<32xf32>
    %17 = vector.extract_strided_slice %14 {offsets = [1, 0], sizes = [1, 32], strides = [1, 1]} : vector<3x32xf32> to vector<1x32xf32>
    %18 = vector.shape_cast %17 : vector<1x32xf32> to vector<32xf32>
    %cst_6 = arith.constant dense<0.000000e+00> : vector<16xf32>
    %19 = vector.multi_reduction <add>, %13, %cst_6 [1] : vector<16x32xf32> to vector<16xf32>
    %20 = vector.shape_cast %19 : vector<16xf32> to vector<16x1xf32>
    %cst_7 = arith.constant 3.200000e+01 : f32
    %21 = vector.broadcast %cst_7 : f32 to vector<16x1xf32>
    %22 = arith.divf %20, %21 : vector<16x1xf32>
    %23 = vector.broadcast %22 : vector<16x1xf32> to vector<16x32xf32>
    %24 = arith.subf %13, %23 : vector<16x32xf32>
    %25 = arith.mulf %24, %24 : vector<16x32xf32>
    %cst_8 = arith.constant dense<0.000000e+00> : vector<16xf32>
    %26 = vector.multi_reduction <add>, %25, %cst_8 [1] : vector<16x32xf32> to vector<16xf32>
    %27 = vector.shape_cast %26 : vector<16xf32> to vector<16x1xf32>
    %cst_9 = arith.constant 3.200000e+01 : f32
    %28 = vector.broadcast %cst_9 : f32 to vector<16x1xf32>
    %29 = arith.divf %27, %28 : vector<16x1xf32>
    %30 = vector.broadcast %22 : vector<16x1xf32> to vector<16x32xf32>
    %31 = arith.subf %13, %30 : vector<16x32xf32>
    %cst_10 = arith.constant 9.99999996E-13 : f32
    %32 = vector.broadcast %cst_10 : f32 to vector<16x1xf32>
    %33 = arith.addf %29, %32 : vector<16x1xf32>
    %34 = math.rsqrt %33 : vector<16x1xf32>
    %35 = vector.broadcast %34 : vector<16x1xf32> to vector<16x32xf32>
    %36 = arith.mulf %31, %35 : vector<16x32xf32>
    %37 = vector.shape_cast %16 : vector<32xf32> to vector<1x32xf32>
    %38 = vector.broadcast %37 : vector<1x32xf32> to vector<16x32xf32>
    %39 = arith.mulf %36, %38 : vector<16x32xf32>
    %40 = vector.shape_cast %18 : vector<32xf32> to vector<1x32xf32>
    %41 = vector.broadcast %40 : vector<1x32xf32> to vector<16x32xf32>
    %42 = arith.addf %39, %41 : vector<16x32xf32>
    %c0_11 = arith.constant 0 : index
    %c0_12 = arith.constant 0 : index
    %c0_13 = arith.constant 0 : index
    %43 = vector.load %arg1[%c0_11, %c0_12, %c0_13] : memref<2x1x8xf32, #tpu.memory_space<vmem>>, vector<2x1x8xf32>
    %cst_14 = arith.constant 1.000000e+00 : f32
    %44 = vector.broadcast %cst_14 : f32 to vector<2x1x8xf32>
    %45 = arith.subf %43, %44 : vector<2x1x8xf32>
    %cst_15 = arith.constant 1.000000e+09 : f32
    %46 = vector.broadcast %cst_15 : f32 to vector<2x1x8xf32>
    %47 = arith.mulf %45, %46 : vector<2x1x8xf32>
    %48 = vector.shape_cast %47 : vector<2x1x8xf32> to vector<1x2x1x8xf32>
    %49 = vector.shape_cast %48 : vector<1x2x1x8xf32> to vector<1x2x1x8xf32>
    %50 = vector.broadcast %49 : vector<1x2x1x8xf32> to vector<4x2x8x8xf32>
    %51 = vector.shape_cast %50 : vector<4x2x8x8xf32> to vector<8x8x8xf32>
    %c0_16 = arith.constant 0 : index
    %c0_17 = arith.constant 0 : index
    %c0_18 = arith.constant 0 : index
    %52 = vector.load %arg4[%c0_16, %c0_17, %c0_18] : memref<2x32x160xbf16, #tpu.memory_space<vmem>>, vector<1x32x160xbf16>
    %53 = vector.shape_cast %52 : vector<1x32x160xbf16> to vector<32x160xbf16>
    %c0_19 = arith.constant 0 : index
    %c0_20 = arith.constant 0 : index
    %c0_21 = arith.constant 0 : index
    %54 = vector.load %arg7[%c0_19, %c0_20, %c0_21] : memref<2x8x96xf32, #tpu.memory_space<vmem>>, vector<1x8x96xf32>
    %55 = vector.shape_cast %54 : vector<1x8x96xf32> to vector<8x96xf32>
    %56 = vector.extract_strided_slice %53 {offsets = [0, 0], sizes = [32, 96], strides = [1, 1]} : vector<32x160xbf16> to vector<32x96xbf16>
    %57 = vector.extract_strided_slice %53 {offsets = [0, 96], sizes = [32, 64], strides = [1, 1]} : vector<32x160xbf16> to vector<32x64xbf16>
    %58 = arith.truncf %42 : vector<16x32xf32> to vector<16x32xbf16>
    %cst_22 = arith.constant dense<0.000000e+00> : vector<16x96xf32>
    %59 = tpu.matmul %58, %56, %cst_22 {dimension_numbers = #tpu.dot_dimension_numbers<[1], [0], [0], [1], [0, 0, 1, 1], [], []>} : vector<16x32xbf16>, vector<32x96xbf16>, vector<16x96xf32> -> vector<16x96xf32>
    %60 = vector.extract_strided_slice %55 {offsets = [0, 0], sizes = [1, 96], strides = [1, 1]} : vector<8x96xf32> to vector<1x96xf32>
    %61 = vector.shape_cast %60 : vector<1x96xf32> to vector<96xf32>
    %62 = vector.shape_cast %61 : vector<96xf32> to vector<1x96xf32>
    %63 = vector.broadcast %62 : vector<1x96xf32> to vector<16x96xf32>
    %64 = arith.addf %59, %63 : vector<16x96xf32>
    %65 = vector.extract_strided_slice %64 {offsets = [0, 0], sizes = [16, 8], strides = [1, 1]} : vector<16x96xf32> to vector<16x8xf32>
    %66 = vector.shape_cast %65 : vector<16x8xf32> to vector<2x8x8xf32>
    %67 = vector.extract_strided_slice %64 {offsets = [0, 32], sizes = [16, 8], strides = [1, 1]} : vector<16x96xf32> to vector<16x8xf32>
    %68 = vector.shape_cast %67 : vector<16x8xf32> to vector<2x8x8xf32>
    %69 = vector.extract_strided_slice %64 {offsets = [0, 64], sizes = [16, 8], strides = [1, 1]} : vector<16x96xf32> to vector<16x8xf32>
    %70 = vector.shape_cast %69 : vector<16x8xf32> to vector<2x8x8xf32>
    %71 = vector.extract_strided_slice %64 {offsets = [0, 8], sizes = [16, 8], strides = [1, 1]} : vector<16x96xf32> to vector<16x8xf32>
    %72 = vector.shape_cast %71 : vector<16x8xf32> to vector<2x8x8xf32>
    %73 = vector.extract_strided_slice %64 {offsets = [0, 40], sizes = [16, 8], strides = [1, 1]} : vector<16x96xf32> to vector<16x8xf32>
    %74 = vector.shape_cast %73 : vector<16x8xf32> to vector<2x8x8xf32>
    %75 = vector.extract_strided_slice %64 {offsets = [0, 72], sizes = [16, 8], strides = [1, 1]} : vector<16x96xf32> to vector<16x8xf32>
    %76 = vector.shape_cast %75 : vector<16x8xf32> to vector<2x8x8xf32>
    %77 = vector.extract_strided_slice %64 {offsets = [0, 16], sizes = [16, 8], strides = [1, 1]} : vector<16x96xf32> to vector<16x8xf32>
    %78 = vector.shape_cast %77 : vector<16x8xf32> to vector<2x8x8xf32>
    %79 = vector.extract_strided_slice %64 {offsets = [0, 48], sizes = [16, 8], strides = [1, 1]} : vector<16x96xf32> to vector<16x8xf32>
    %80 = vector.shape_cast %79 : vector<16x8xf32> to vector<2x8x8xf32>
    %81 = vector.extract_strided_slice %64 {offsets = [0, 80], sizes = [16, 8], strides = [1, 1]} : vector<16x96xf32> to vector<16x8xf32>
    %82 = vector.shape_cast %81 : vector<16x8xf32> to vector<2x8x8xf32>
    %83 = vector.extract_strided_slice %64 {offsets = [0, 24], sizes = [16, 8], strides = [1, 1]} : vector<16x96xf32> to vector<16x8xf32>
    %84 = vector.shape_cast %83 : vector<16x8xf32> to vector<2x8x8xf32>
    %85 = vector.extract_strided_slice %64 {offsets = [0, 56], sizes = [16, 8], strides = [1, 1]} : vector<16x96xf32> to vector<16x8xf32>
    %86 = vector.shape_cast %85 : vector<16x8xf32> to vector<2x8x8xf32>
    %87 = vector.extract_strided_slice %64 {offsets = [0, 88], sizes = [16, 8], strides = [1, 1]} : vector<16x96xf32> to vector<16x8xf32>
    %88 = vector.shape_cast %87 : vector<16x8xf32> to vector<2x8x8xf32>
    %89 = tpu.concatenate %66, %72, %78, %84 in 0 : vector<2x8x8xf32>, vector<2x8x8xf32>, vector<2x8x8xf32>, vector<2x8x8xf32> -> vector<8x8x8xf32>
    %90 = arith.truncf %89 : vector<8x8x8xf32> to vector<8x8x8xbf16>
    %91 = tpu.concatenate %68, %74, %80, %86 in 0 : vector<2x8x8xf32>, vector<2x8x8xf32>, vector<2x8x8xf32>, vector<2x8x8xf32> -> vector<8x8x8xf32>
    %92 = arith.truncf %91 : vector<8x8x8xf32> to vector<8x8x8xbf16>
    %93 = tpu.concatenate %70, %76, %82, %88 in 0 : vector<2x8x8xf32>, vector<2x8x8xf32>, vector<2x8x8xf32>, vector<2x8x8xf32> -> vector<8x8x8xf32>
    %94 = arith.truncf %93 : vector<8x8x8xf32> to vector<8x8x8xbf16>
    "tpu.trace_start"() <{level = 10 : i32, message = "zqd,zkd->zqk"}> : () -> ()
    %cst_23 = arith.constant dense<0.000000e+00> : vector<8x8x8xf32>
    %95 = tpu.matmul %90, %92, %cst_23 {dimension_numbers = #tpu.dot_dimension_numbers<[2], [2], [1], [1], [0, 0, 0, 1, 1, 1], [0], [0]>} : vector<8x8x8xbf16>, vector<8x8x8xbf16>, vector<8x8x8xf32> -> vector<8x8x8xf32>
    "tpu.trace_stop"() : () -> ()
    %96 = arith.addf %95, %51 : vector<8x8x8xf32>
    %cst_24 = arith.constant dense<0xFF800000> : vector<8x8xf32>
    %97 = vector.multi_reduction <maximumf>, %96, %cst_24 [2] : vector<8x8x8xf32> to vector<8x8xf32>
    %98 = vector.shape_cast %97 : vector<8x8xf32> to vector<8x8x1xf32>
    %99 = vector.broadcast %98 : vector<8x8x1xf32> to vector<8x8x8xf32>
    %100 = arith.subf %96, %99 : vector<8x8x8xf32>
    %101 = math.exp %100 : vector<8x8x8xf32>
    %cst_25 = arith.constant dense<0.000000e+00> : vector<8x8xf32>
    %102 = vector.multi_reduction <add>, %101, %cst_25 [2] : vector<8x8x8xf32> to vector<8x8xf32>
    %103 = vector.shape_cast %102 : vector<8x8xf32> to vector<8x8x1xf32>
    %104 = tpu.reciprocal %103 {approx = true} : vector<8x8x1xf32> -> vector<8x8x1xf32>
    %105 = vector.broadcast %104 : vector<8x8x1xf32> to vector<8x8x8xf32>
    %106 = arith.mulf %101, %105 : vector<8x8x8xf32>
    %107 = arith.truncf %106 : vector<8x8x8xf32> to vector<8x8x8xbf16>
    "tpu.trace_start"() <{level = 10 : i32, message = "zqk,zkd->zqd"}> : () -> ()
    %cst_26 = arith.constant dense<0.000000e+00> : vector<8x8x8xf32>
    %108 = tpu.matmul %107, %94, %cst_26 {dimension_numbers = #tpu.dot_dimension_numbers<[2], [1], [1], [2], [0, 0, 0, 1, 1, 2], [0], [0]>} : vector<8x8x8xbf16>, vector<8x8x8xbf16>, vector<8x8x8xf32> -> vector<8x8x8xf32>
    "tpu.trace_stop"() : () -> ()
    %109 = vector.shape_cast %108 : vector<8x8x8xf32> to vector<4x16x8xf32>
    %110 = arith.truncf %109 : vector<4x16x8xf32> to vector<4x16x8xbf16>
    %c0_27 = arith.constant 0 : index
    %c0_28 = arith.constant 0 : index
    %c0_29 = arith.constant 0 : index
    %c0_30 = arith.constant 0 : index
    %111 = vector.load %arg5[%c0_27, %c0_28, %c0_29, %c0_30] : memref<2x4x8x32xbf16, #tpu.memory_space<vmem>>, vector<1x4x8x32xbf16>
    %112 = vector.shape_cast %111 : vector<1x4x8x32xbf16> to vector<4x8x32xbf16>
    "tpu.trace_start"() <{level = 10 : i32, message = "hnd,hde->hne"}> : () -> ()
    %cst_31 = arith.constant dense<0.000000e+00> : vector<4x16x32xf32>
    %113 = tpu.matmul %110, %112, %cst_31 {dimension_numbers = #tpu.dot_dimension_numbers<[2], [1], [1], [2], [0, 0, 0, 1, 1, 2], [0], [0]>} : vector<4x16x8xbf16>, vector<4x8x32xbf16>, vector<4x16x32xf32> -> vector<4x16x32xf32>
    "tpu.trace_stop"() : () -> ()
    %cst_32 = arith.constant dense<0.000000e+00> : vector<16x32xf32>
    %114 = vector.multi_reduction <add>, %113, %cst_32 [0] : vector<4x16x32xf32> to vector<16x32xf32>
    %115 = vector.extract_strided_slice %55 {offsets = [1, 0], sizes = [1, 32], strides = [1, 1]} : vector<8x96xf32> to vector<1x32xf32>
    %116 = vector.shape_cast %115 : vector<1x32xf32> to vector<32xf32>
    %117 = vector.shape_cast %116 : vector<32xf32> to vector<1x32xf32>
    %118 = vector.broadcast %117 : vector<1x32xf32> to vector<16x32xf32>
    %119 = arith.addf %114, %118 : vector<16x32xf32>
    %120 = arith.addf %119, %42 : vector<16x32xf32>
    %121 = vector.extract_strided_slice %55 {offsets = [2, 0], sizes = [1, 32], strides = [1, 1]} : vector<8x96xf32> to vector<1x32xf32>
    %122 = vector.shape_cast %121 : vector<1x32xf32> to vector<32xf32>
    %123 = vector.extract_strided_slice %55 {offsets = [3, 0], sizes = [1, 32], strides = [1, 1]} : vector<8x96xf32> to vector<1x32xf32>
    %124 = vector.shape_cast %123 : vector<1x32xf32> to vector<32xf32>
    %cst_33 = arith.constant dense<0.000000e+00> : vector<16xf32>
    %125 = vector.multi_reduction <add>, %120, %cst_33 [1] : vector<16x32xf32> to vector<16xf32>
    %126 = vector.shape_cast %125 : vector<16xf32> to vector<16x1xf32>
    %cst_34 = arith.constant 3.200000e+01 : f32
    %127 = vector.broadcast %cst_34 : f32 to vector<16x1xf32>
    %128 = arith.divf %126, %127 : vector<16x1xf32>
    %129 = vector.broadcast %128 : vector<16x1xf32> to vector<16x32xf32>
    %130 = arith.subf %120, %129 : vector<16x32xf32>
    %131 = arith.mulf %130, %130 : vector<16x32xf32>
    %cst_35 = arith.constant dense<0.000000e+00> : vector<16xf32>
    %132 = vector.multi_reduction <add>, %131, %cst_35 [1] : vector<16x32xf32> to vector<16xf32>
    %133 = vector.shape_cast %132 : vector<16xf32> to vector<16x1xf32>
    %cst_36 = arith.constant 3.200000e+01 : f32
    %134 = vector.broadcast %cst_36 : f32 to vector<16x1xf32>
    %135 = arith.divf %133, %134 : vector<16x1xf32>
    %136 = vector.broadcast %128 : vector<16x1xf32> to vector<16x32xf32>
    %137 = arith.subf %120, %136 : vector<16x32xf32>
    %cst_37 = arith.constant 9.99999996E-13 : f32
    %138 = vector.broadcast %cst_37 : f32 to vector<16x1xf32>
    %139 = arith.addf %135, %138 : vector<16x1xf32>
    %140 = math.rsqrt %139 : vector<16x1xf32>
    %141 = vector.broadcast %140 : vector<16x1xf32> to vector<16x32xf32>
    %142 = arith.mulf %137, %141 : vector<16x32xf32>
    %143 = vector.shape_cast %122 : vector<32xf32> to vector<1x32xf32>
    %144 = vector.broadcast %143 : vector<1x32xf32> to vector<16x32xf32>
    %145 = arith.mulf %142, %144 : vector<16x32xf32>
    %146 = vector.shape_cast %124 : vector<32xf32> to vector<1x32xf32>
    %147 = vector.broadcast %146 : vector<1x32xf32> to vector<16x32xf32>
    %148 = arith.addf %145, %147 : vector<16x32xf32>
    %149 = arith.truncf %148 : vector<16x32xf32> to vector<16x32xbf16>
    %cst_38 = arith.constant dense<0.000000e+00> : vector<16x64xf32>
    %150 = tpu.matmul %149, %57, %cst_38 {dimension_numbers = #tpu.dot_dimension_numbers<[1], [0], [0], [1], [0, 0, 1, 1], [], []>} : vector<16x32xbf16>, vector<32x64xbf16>, vector<16x64xf32> -> vector<16x64xf32>
    %151 = vector.extract_strided_slice %55 {offsets = [4, 0], sizes = [1, 64], strides = [1, 1]} : vector<8x96xf32> to vector<1x64xf32>
    %152 = vector.shape_cast %151 : vector<1x64xf32> to vector<64xf32>
    %153 = vector.shape_cast %152 : vector<64xf32> to vector<1x64xf32>
    %154 = vector.broadcast %153 : vector<1x64xf32> to vector<16x64xf32>
    %155 = arith.addf %150, %154 : vector<16x64xf32>
    %156 = arith.mulf %155, %155 : vector<16x64xf32>
    %cst_39 = arith.constant 5.000000e-01 : f32
    %157 = vector.broadcast %cst_39 : f32 to vector<16x64xf32>
    %158 = arith.mulf %157, %155 : vector<16x64xf32>
    %cst_40 = arith.constant 4.471500e-02 : f32
    %159 = vector.broadcast %cst_40 : f32 to vector<16x64xf32>
    %160 = arith.mulf %159, %155 : vector<16x64xf32>
    %161 = arith.mulf %160, %156 : vector<16x64xf32>
    %162 = arith.addf %155, %161 : vector<16x64xf32>
    %cst_41 = arith.constant 0.797884583 : f32
    %163 = vector.broadcast %cst_41 : f32 to vector<16x64xf32>
    %164 = arith.mulf %163, %162 : vector<16x64xf32>
    %165 = math.tanh %164 : vector<16x64xf32>
    %cst_42 = arith.constant 1.000000e+00 : f32
    %166 = vector.broadcast %cst_42 : f32 to vector<16x64xf32>
    %167 = arith.addf %166, %165 : vector<16x64xf32>
    %168 = arith.mulf %158, %167 : vector<16x64xf32>
    %c0_43 = arith.constant 0 : index
    %c0_44 = arith.constant 0 : index
    %c0_45 = arith.constant 0 : index
    %169 = vector.load %arg6[%c0_43, %c0_44, %c0_45] : memref<2x64x32xbf16, #tpu.memory_space<vmem>>, vector<1x64x32xbf16>
    %170 = vector.shape_cast %169 : vector<1x64x32xbf16> to vector<64x32xbf16>
    %171 = arith.truncf %168 : vector<16x64xf32> to vector<16x64xbf16>
    %cst_46 = arith.constant dense<0.000000e+00> : vector<16x32xf32>
    %172 = tpu.matmul %171, %170, %cst_46 {dimension_numbers = #tpu.dot_dimension_numbers<[1], [0], [0], [1], [0, 0, 1, 1], [], []>} : vector<16x64xbf16>, vector<64x32xbf16>, vector<16x32xf32> -> vector<16x32xf32>
    %173 = vector.extract_strided_slice %55 {offsets = [5, 0], sizes = [1, 32], strides = [1, 1]} : vector<8x96xf32> to vector<1x32xf32>
    %174 = vector.shape_cast %173 : vector<1x32xf32> to vector<32xf32>
    %175 = vector.shape_cast %174 : vector<32xf32> to vector<1x32xf32>
    %176 = vector.broadcast %175 : vector<1x32xf32> to vector<16x32xf32>
    %177 = arith.addf %172, %176 : vector<16x32xf32>
    %178 = arith.addf %177, %148 : vector<16x32xf32>
    %179 = vector.extract_strided_slice %55 {offsets = [6, 0], sizes = [1, 32], strides = [1, 1]} : vector<8x96xf32> to vector<1x32xf32>
    %180 = vector.shape_cast %179 : vector<1x32xf32> to vector<32xf32>
    %181 = vector.extract_strided_slice %55 {offsets = [7, 0], sizes = [1, 32], strides = [1, 1]} : vector<8x96xf32> to vector<1x32xf32>
    %182 = vector.shape_cast %181 : vector<1x32xf32> to vector<32xf32>
    %cst_47 = arith.constant dense<0.000000e+00> : vector<16xf32>
    %183 = vector.multi_reduction <add>, %178, %cst_47 [1] : vector<16x32xf32> to vector<16xf32>
    %184 = vector.shape_cast %183 : vector<16xf32> to vector<16x1xf32>
    %cst_48 = arith.constant 3.200000e+01 : f32
    %185 = vector.broadcast %cst_48 : f32 to vector<16x1xf32>
    %186 = arith.divf %184, %185 : vector<16x1xf32>
    %187 = vector.broadcast %186 : vector<16x1xf32> to vector<16x32xf32>
    %188 = arith.subf %178, %187 : vector<16x32xf32>
    %189 = arith.mulf %188, %188 : vector<16x32xf32>
    %cst_49 = arith.constant dense<0.000000e+00> : vector<16xf32>
    %190 = vector.multi_reduction <add>, %189, %cst_49 [1] : vector<16x32xf32> to vector<16xf32>
    %191 = vector.shape_cast %190 : vector<16xf32> to vector<16x1xf32>
    %cst_50 = arith.constant 3.200000e+01 : f32
    %192 = vector.broadcast %cst_50 : f32 to vector<16x1xf32>
    %193 = arith.divf %191, %192 : vector<16x1xf32>
    %194 = vector.broadcast %186 : vector<16x1xf32> to vector<16x32xf32>
    %195 = arith.subf %178, %194 : vector<16x32xf32>
    %cst_51 = arith.constant 9.99999996E-13 : f32
    %196 = vector.broadcast %cst_51 : f32 to vector<16x1xf32>
    %197 = arith.addf %193, %196 : vector<16x1xf32>
    %198 = math.rsqrt %197 : vector<16x1xf32>
    %199 = vector.broadcast %198 : vector<16x1xf32> to vector<16x32xf32>
    %200 = arith.mulf %195, %199 : vector<16x32xf32>
    %201 = vector.shape_cast %180 : vector<32xf32> to vector<1x32xf32>
    %202 = vector.broadcast %201 : vector<1x32xf32> to vector<16x32xf32>
    %203 = arith.mulf %200, %202 : vector<16x32xf32>
    %204 = vector.shape_cast %182 : vector<32xf32> to vector<1x32xf32>
    %205 = vector.broadcast %204 : vector<1x32xf32> to vector<16x32xf32>
    %206 = arith.addf %203, %205 : vector<16x32xf32>
    %c1 = arith.constant 1 : index
    %c0_52 = arith.constant 0 : index
    %c0_53 = arith.constant 0 : index
    %207 = vector.load %arg4[%c1, %c0_52, %c0_53] : memref<2x32x160xbf16, #tpu.memory_space<vmem>>, vector<1x32x160xbf16>
    %208 = vector.shape_cast %207 : vector<1x32x160xbf16> to vector<32x160xbf16>
    %c1_54 = arith.constant 1 : index
    %c0_55 = arith.constant 0 : index
    %c0_56 = arith.constant 0 : index
    %209 = vector.load %arg7[%c1_54, %c0_55, %c0_56] : memref<2x8x96xf32, #tpu.memory_space<vmem>>, vector<1x8x96xf32>
    %210 = vector.shape_cast %209 : vector<1x8x96xf32> to vector<8x96xf32>
    %211 = vector.extract_strided_slice %208 {offsets = [0, 0], sizes = [32, 96], strides = [1, 1]} : vector<32x160xbf16> to vector<32x96xbf16>
    %212 = vector.extract_strided_slice %208 {offsets = [0, 96], sizes = [32, 64], strides = [1, 1]} : vector<32x160xbf16> to vector<32x64xbf16>
    %213 = arith.truncf %206 : vector<16x32xf32> to vector<16x32xbf16>
    %cst_57 = arith.constant dense<0.000000e+00> : vector<16x96xf32>
    %214 = tpu.matmul %213, %211, %cst_57 {dimension_numbers = #tpu.dot_dimension_numbers<[1], [0], [0], [1], [0, 0, 1, 1], [], []>} : vector<16x32xbf16>, vector<32x96xbf16>, vector<16x96xf32> -> vector<16x96xf32>
    %215 = vector.extract_strided_slice %210 {offsets = [0, 0], sizes = [1, 96], strides = [1, 1]} : vector<8x96xf32> to vector<1x96xf32>
    %216 = vector.shape_cast %215 : vector<1x96xf32> to vector<96xf32>
    %217 = vector.shape_cast %216 : vector<96xf32> to vector<1x96xf32>
    %218 = vector.broadcast %217 : vector<1x96xf32> to vector<16x96xf32>
    %219 = arith.addf %214, %218 : vector<16x96xf32>
    %220 = vector.extract_strided_slice %219 {offsets = [0, 0], sizes = [16, 8], strides = [1, 1]} : vector<16x96xf32> to vector<16x8xf32>
    %221 = vector.shape_cast %220 : vector<16x8xf32> to vector<2x8x8xf32>
    %222 = vector.extract_strided_slice %219 {offsets = [0, 32], sizes = [16, 8], strides = [1, 1]} : vector<16x96xf32> to vector<16x8xf32>
    %223 = vector.shape_cast %222 : vector<16x8xf32> to vector<2x8x8xf32>
    %224 = vector.extract_strided_slice %219 {offsets = [0, 64], sizes = [16, 8], strides = [1, 1]} : vector<16x96xf32> to vector<16x8xf32>
    %225 = vector.shape_cast %224 : vector<16x8xf32> to vector<2x8x8xf32>
    %226 = vector.extract_strided_slice %219 {offsets = [0, 8], sizes = [16, 8], strides = [1, 1]} : vector<16x96xf32> to vector<16x8xf32>
    %227 = vector.shape_cast %226 : vector<16x8xf32> to vector<2x8x8xf32>
    %228 = vector.extract_strided_slice %219 {offsets = [0, 40], sizes = [16, 8], strides = [1, 1]} : vector<16x96xf32> to vector<16x8xf32>
    %229 = vector.shape_cast %228 : vector<16x8xf32> to vector<2x8x8xf32>
    %230 = vector.extract_strided_slice %219 {offsets = [0, 72], sizes = [16, 8], strides = [1, 1]} : vector<16x96xf32> to vector<16x8xf32>
    %231 = vector.shape_cast %230 : vector<16x8xf32> to vector<2x8x8xf32>
    %232 = vector.extract_strided_slice %219 {offsets = [0, 16], sizes = [16, 8], strides = [1, 1]} : vector<16x96xf32> to vector<16x8xf32>
    %233 = vector.shape_cast %232 : vector<16x8xf32> to vector<2x8x8xf32>
    %234 = vector.extract_strided_slice %219 {offsets = [0, 48], sizes = [16, 8], strides = [1, 1]} : vector<16x96xf32> to vector<16x8xf32>
    %235 = vector.shape_cast %234 : vector<16x8xf32> to vector<2x8x8xf32>
    %236 = vector.extract_strided_slice %219 {offsets = [0, 80], sizes = [16, 8], strides = [1, 1]} : vector<16x96xf32> to vector<16x8xf32>
    %237 = vector.shape_cast %236 : vector<16x8xf32> to vector<2x8x8xf32>
    %238 = vector.extract_strided_slice %219 {offsets = [0, 24], sizes = [16, 8], strides = [1, 1]} : vector<16x96xf32> to vector<16x8xf32>
    %239 = vector.shape_cast %238 : vector<16x8xf32> to vector<2x8x8xf32>
    %240 = vector.extract_strided_slice %219 {offsets = [0, 56], sizes = [16, 8], strides = [1, 1]} : vector<16x96xf32> to vector<16x8xf32>
    %241 = vector.shape_cast %240 : vector<16x8xf32> to vector<2x8x8xf32>
    %242 = vector.extract_strided_slice %219 {offsets = [0, 88], sizes = [16, 8], strides = [1, 1]} : vector<16x96xf32> to vector<16x8xf32>
    %243 = vector.shape_cast %242 : vector<16x8xf32> to vector<2x8x8xf32>
    %244 = tpu.concatenate %221, %227, %233, %239 in 0 : vector<2x8x8xf32>, vector<2x8x8xf32>, vector<2x8x8xf32>, vector<2x8x8xf32> -> vector<8x8x8xf32>
    %245 = arith.truncf %244 : vector<8x8x8xf32> to vector<8x8x8xbf16>
    %246 = tpu.concatenate %223, %229, %235, %241 in 0 : vector<2x8x8xf32>, vector<2x8x8xf32>, vector<2x8x8xf32>, vector<2x8x8xf32> -> vector<8x8x8xf32>
    %247 = arith.truncf %246 : vector<8x8x8xf32> to vector<8x8x8xbf16>
    %248 = tpu.concatenate %225, %231, %237, %243 in 0 : vector<2x8x8xf32>, vector<2x8x8xf32>, vector<2x8x8xf32>, vector<2x8x8xf32> -> vector<8x8x8xf32>
    %249 = arith.truncf %248 : vector<8x8x8xf32> to vector<8x8x8xbf16>
    "tpu.trace_start"() <{level = 10 : i32, message = "zqd,zkd->zqk"}> : () -> ()
    %cst_58 = arith.constant dense<0.000000e+00> : vector<8x8x8xf32>
    %250 = tpu.matmul %245, %247, %cst_58 {dimension_numbers = #tpu.dot_dimension_numbers<[2], [2], [1], [1], [0, 0, 0, 1, 1, 1], [0], [0]>} : vector<8x8x8xbf16>, vector<8x8x8xbf16>, vector<8x8x8xf32> -> vector<8x8x8xf32>
    "tpu.trace_stop"() : () -> ()
    %251 = arith.addf %250, %51 : vector<8x8x8xf32>
    %cst_59 = arith.constant dense<0xFF800000> : vector<8x8xf32>
    %252 = vector.multi_reduction <maximumf>, %251, %cst_59 [2] : vector<8x8x8xf32> to vector<8x8xf32>
    %253 = vector.shape_cast %252 : vector<8x8xf32> to vector<8x8x1xf32>
    %254 = vector.broadcast %253 : vector<8x8x1xf32> to vector<8x8x8xf32>
    %255 = arith.subf %251, %254 : vector<8x8x8xf32>
    %256 = math.exp %255 : vector<8x8x8xf32>
    %cst_60 = arith.constant dense<0.000000e+00> : vector<8x8xf32>
    %257 = vector.multi_reduction <add>, %256, %cst_60 [2] : vector<8x8x8xf32> to vector<8x8xf32>
    %258 = vector.shape_cast %257 : vector<8x8xf32> to vector<8x8x1xf32>
    %259 = tpu.reciprocal %258 {approx = true} : vector<8x8x1xf32> -> vector<8x8x1xf32>
    %260 = vector.broadcast %259 : vector<8x8x1xf32> to vector<8x8x8xf32>
    %261 = arith.mulf %256, %260 : vector<8x8x8xf32>
    %262 = arith.truncf %261 : vector<8x8x8xf32> to vector<8x8x8xbf16>
    "tpu.trace_start"() <{level = 10 : i32, message = "zqk,zkd->zqd"}> : () -> ()
    %cst_61 = arith.constant dense<0.000000e+00> : vector<8x8x8xf32>
    %263 = tpu.matmul %262, %249, %cst_61 {dimension_numbers = #tpu.dot_dimension_numbers<[2], [1], [1], [2], [0, 0, 0, 1, 1, 2], [0], [0]>} : vector<8x8x8xbf16>, vector<8x8x8xbf16>, vector<8x8x8xf32> -> vector<8x8x8xf32>
    "tpu.trace_stop"() : () -> ()
    %264 = vector.shape_cast %263 : vector<8x8x8xf32> to vector<4x16x8xf32>
    %265 = arith.truncf %264 : vector<4x16x8xf32> to vector<4x16x8xbf16>
    %c1_62 = arith.constant 1 : index
    %c0_63 = arith.constant 0 : index
    %c0_64 = arith.constant 0 : index
    %c0_65 = arith.constant 0 : index
    %266 = vector.load %arg5[%c1_62, %c0_63, %c0_64, %c0_65] : memref<2x4x8x32xbf16, #tpu.memory_space<vmem>>, vector<1x4x8x32xbf16>
    %267 = vector.shape_cast %266 : vector<1x4x8x32xbf16> to vector<4x8x32xbf16>
    "tpu.trace_start"() <{level = 10 : i32, message = "hnd,hde->hne"}> : () -> ()
    %cst_66 = arith.constant dense<0.000000e+00> : vector<4x16x32xf32>
    %268 = tpu.matmul %265, %267, %cst_66 {dimension_numbers = #tpu.dot_dimension_numbers<[2], [1], [1], [2], [0, 0, 0, 1, 1, 2], [0], [0]>} : vector<4x16x8xbf16>, vector<4x8x32xbf16>, vector<4x16x32xf32> -> vector<4x16x32xf32>
    "tpu.trace_stop"() : () -> ()
    %cst_67 = arith.constant dense<0.000000e+00> : vector<16x32xf32>
    %269 = vector.multi_reduction <add>, %268, %cst_67 [0] : vector<4x16x32xf32> to vector<16x32xf32>
    %270 = vector.extract_strided_slice %210 {offsets = [1, 0], sizes = [1, 32], strides = [1, 1]} : vector<8x96xf32> to vector<1x32xf32>
    %271 = vector.shape_cast %270 : vector<1x32xf32> to vector<32xf32>
    %272 = vector.shape_cast %271 : vector<32xf32> to vector<1x32xf32>
    %273 = vector.broadcast %272 : vector<1x32xf32> to vector<16x32xf32>
    %274 = arith.addf %269, %273 : vector<16x32xf32>
    %275 = arith.addf %274, %206 : vector<16x32xf32>
    %276 = vector.extract_strided_slice %210 {offsets = [2, 0], sizes = [1, 32], strides = [1, 1]} : vector<8x96xf32> to vector<1x32xf32>
    %277 = vector.shape_cast %276 : vector<1x32xf32> to vector<32xf32>
    %278 = vector.extract_strided_slice %210 {offsets = [3, 0], sizes = [1, 32], strides = [1, 1]} : vector<8x96xf32> to vector<1x32xf32>
    %279 = vector.shape_cast %278 : vector<1x32xf32> to vector<32xf32>
    %cst_68 = arith.constant dense<0.000000e+00> : vector<16xf32>
    %280 = vector.multi_reduction <add>, %275, %cst_68 [1] : vector<16x32xf32> to vector<16xf32>
    %281 = vector.shape_cast %280 : vector<16xf32> to vector<16x1xf32>
    %cst_69 = arith.constant 3.200000e+01 : f32
    %282 = vector.broadcast %cst_69 : f32 to vector<16x1xf32>
    %283 = arith.divf %281, %282 : vector<16x1xf32>
    %284 = vector.broadcast %283 : vector<16x1xf32> to vector<16x32xf32>
    %285 = arith.subf %275, %284 : vector<16x32xf32>
    %286 = arith.mulf %285, %285 : vector<16x32xf32>
    %cst_70 = arith.constant dense<0.000000e+00> : vector<16xf32>
    %287 = vector.multi_reduction <add>, %286, %cst_70 [1] : vector<16x32xf32> to vector<16xf32>
    %288 = vector.shape_cast %287 : vector<16xf32> to vector<16x1xf32>
    %cst_71 = arith.constant 3.200000e+01 : f32
    %289 = vector.broadcast %cst_71 : f32 to vector<16x1xf32>
    %290 = arith.divf %288, %289 : vector<16x1xf32>
    %291 = vector.broadcast %283 : vector<16x1xf32> to vector<16x32xf32>
    %292 = arith.subf %275, %291 : vector<16x32xf32>
    %cst_72 = arith.constant 9.99999996E-13 : f32
    %293 = vector.broadcast %cst_72 : f32 to vector<16x1xf32>
    %294 = arith.addf %290, %293 : vector<16x1xf32>
    %295 = math.rsqrt %294 : vector<16x1xf32>
    %296 = vector.broadcast %295 : vector<16x1xf32> to vector<16x32xf32>
    %297 = arith.mulf %292, %296 : vector<16x32xf32>
    %298 = vector.shape_cast %277 : vector<32xf32> to vector<1x32xf32>
    %299 = vector.broadcast %298 : vector<1x32xf32> to vector<16x32xf32>
    %300 = arith.mulf %297, %299 : vector<16x32xf32>
    %301 = vector.shape_cast %279 : vector<32xf32> to vector<1x32xf32>
    %302 = vector.broadcast %301 : vector<1x32xf32> to vector<16x32xf32>
    %303 = arith.addf %300, %302 : vector<16x32xf32>
    %304 = arith.truncf %303 : vector<16x32xf32> to vector<16x32xbf16>
    %cst_73 = arith.constant dense<0.000000e+00> : vector<16x64xf32>
    %305 = tpu.matmul %304, %212, %cst_73 {dimension_numbers = #tpu.dot_dimension_numbers<[1], [0], [0], [1], [0, 0, 1, 1], [], []>} : vector<16x32xbf16>, vector<32x64xbf16>, vector<16x64xf32> -> vector<16x64xf32>
    %306 = vector.extract_strided_slice %210 {offsets = [4, 0], sizes = [1, 64], strides = [1, 1]} : vector<8x96xf32> to vector<1x64xf32>
    %307 = vector.shape_cast %306 : vector<1x64xf32> to vector<64xf32>
    %308 = vector.shape_cast %307 : vector<64xf32> to vector<1x64xf32>
    %309 = vector.broadcast %308 : vector<1x64xf32> to vector<16x64xf32>
    %310 = arith.addf %305, %309 : vector<16x64xf32>
    %311 = arith.mulf %310, %310 : vector<16x64xf32>
    %cst_74 = arith.constant 5.000000e-01 : f32
    %312 = vector.broadcast %cst_74 : f32 to vector<16x64xf32>
    %313 = arith.mulf %312, %310 : vector<16x64xf32>
    %cst_75 = arith.constant 4.471500e-02 : f32
    %314 = vector.broadcast %cst_75 : f32 to vector<16x64xf32>
    %315 = arith.mulf %314, %310 : vector<16x64xf32>
    %316 = arith.mulf %315, %311 : vector<16x64xf32>
    %317 = arith.addf %310, %316 : vector<16x64xf32>
    %cst_76 = arith.constant 0.797884583 : f32
    %318 = vector.broadcast %cst_76 : f32 to vector<16x64xf32>
    %319 = arith.mulf %318, %317 : vector<16x64xf32>
    %320 = math.tanh %319 : vector<16x64xf32>
    %cst_77 = arith.constant 1.000000e+00 : f32
    %321 = vector.broadcast %cst_77 : f32 to vector<16x64xf32>
    %322 = arith.addf %321, %320 : vector<16x64xf32>
    %323 = arith.mulf %313, %322 : vector<16x64xf32>
    %c1_78 = arith.constant 1 : index
    %c0_79 = arith.constant 0 : index
    %c0_80 = arith.constant 0 : index
    %324 = vector.load %arg6[%c1_78, %c0_79, %c0_80] : memref<2x64x32xbf16, #tpu.memory_space<vmem>>, vector<1x64x32xbf16>
    %325 = vector.shape_cast %324 : vector<1x64x32xbf16> to vector<64x32xbf16>
    %326 = arith.truncf %323 : vector<16x64xf32> to vector<16x64xbf16>
    %cst_81 = arith.constant dense<0.000000e+00> : vector<16x32xf32>
    %327 = tpu.matmul %326, %325, %cst_81 {dimension_numbers = #tpu.dot_dimension_numbers<[1], [0], [0], [1], [0, 0, 1, 1], [], []>} : vector<16x64xbf16>, vector<64x32xbf16>, vector<16x32xf32> -> vector<16x32xf32>
    %328 = vector.extract_strided_slice %210 {offsets = [5, 0], sizes = [1, 32], strides = [1, 1]} : vector<8x96xf32> to vector<1x32xf32>
    %329 = vector.shape_cast %328 : vector<1x32xf32> to vector<32xf32>
    %330 = vector.shape_cast %329 : vector<32xf32> to vector<1x32xf32>
    %331 = vector.broadcast %330 : vector<1x32xf32> to vector<16x32xf32>
    %332 = arith.addf %327, %331 : vector<16x32xf32>
    %333 = arith.addf %332, %303 : vector<16x32xf32>
    %334 = vector.extract_strided_slice %210 {offsets = [6, 0], sizes = [1, 32], strides = [1, 1]} : vector<8x96xf32> to vector<1x32xf32>
    %335 = vector.shape_cast %334 : vector<1x32xf32> to vector<32xf32>
    %336 = vector.extract_strided_slice %210 {offsets = [7, 0], sizes = [1, 32], strides = [1, 1]} : vector<8x96xf32> to vector<1x32xf32>
    %337 = vector.shape_cast %336 : vector<1x32xf32> to vector<32xf32>
    %cst_82 = arith.constant dense<0.000000e+00> : vector<16xf32>
    %338 = vector.multi_reduction <add>, %333, %cst_82 [1] : vector<16x32xf32> to vector<16xf32>
    %339 = vector.shape_cast %338 : vector<16xf32> to vector<16x1xf32>
    %cst_83 = arith.constant 3.200000e+01 : f32
    %340 = vector.broadcast %cst_83 : f32 to vector<16x1xf32>
    %341 = arith.divf %339, %340 : vector<16x1xf32>
    %342 = vector.broadcast %341 : vector<16x1xf32> to vector<16x32xf32>
    %343 = arith.subf %333, %342 : vector<16x32xf32>
    %344 = arith.mulf %343, %343 : vector<16x32xf32>
    %cst_84 = arith.constant dense<0.000000e+00> : vector<16xf32>
    %345 = vector.multi_reduction <add>, %344, %cst_84 [1] : vector<16x32xf32> to vector<16xf32>
    %346 = vector.shape_cast %345 : vector<16xf32> to vector<16x1xf32>
    %cst_85 = arith.constant 3.200000e+01 : f32
    %347 = vector.broadcast %cst_85 : f32 to vector<16x1xf32>
    %348 = arith.divf %346, %347 : vector<16x1xf32>
    %349 = vector.broadcast %341 : vector<16x1xf32> to vector<16x32xf32>
    %350 = arith.subf %333, %349 : vector<16x32xf32>
    %cst_86 = arith.constant 9.99999996E-13 : f32
    %351 = vector.broadcast %cst_86 : f32 to vector<16x1xf32>
    %352 = arith.addf %348, %351 : vector<16x1xf32>
    %353 = math.rsqrt %352 : vector<16x1xf32>
    %354 = vector.broadcast %353 : vector<16x1xf32> to vector<16x32xf32>
    %355 = arith.mulf %350, %354 : vector<16x32xf32>
    %356 = vector.shape_cast %335 : vector<32xf32> to vector<1x32xf32>
    %357 = vector.broadcast %356 : vector<1x32xf32> to vector<16x32xf32>
    %358 = arith.mulf %355, %357 : vector<16x32xf32>
    %359 = vector.shape_cast %337 : vector<32xf32> to vector<1x32xf32>
    %360 = vector.broadcast %359 : vector<1x32xf32> to vector<16x32xf32>
    %361 = arith.addf %358, %360 : vector<16x32xf32>
    %362 = vector.shape_cast %361 : vector<16x32xf32> to vector<2x8x32xf32>
    %cst_87 = arith.constant dense<0.000000e+00> : vector<2x32xf32>
    %363 = vector.multi_reduction <add>, %362, %cst_87 [1] : vector<2x8x32xf32> to vector<2x32xf32>
    %cst_88 = arith.constant 8.000000e+00 : f32
    %364 = vector.broadcast %cst_88 : f32 to vector<2x32xf32>
    %365 = arith.divf %363, %364 : vector<2x32xf32>
    %c0_89 = arith.constant 0 : index
    %c0_90 = arith.constant 0 : index
    %366 = vector.load %arg8[%c0_89, %c0_90] : memref<32x32xbf16, #tpu.memory_space<vmem>>, vector<32x32xbf16>
    %367 = arith.truncf %365 : vector<2x32xf32> to vector<2x32xbf16>
    %cst_91 = arith.constant dense<0.000000e+00> : vector<2x32xf32>
    %368 = tpu.matmul %367, %366, %cst_91 {dimension_numbers = #tpu.dot_dimension_numbers<[1], [0], [0], [1], [0, 0, 1, 1], [], []>} : vector<2x32xbf16>, vector<32x32xbf16>, vector<2x32xf32> -> vector<2x32xf32>
    %369 = vector.extract_strided_slice %14 {offsets = [2, 0], sizes = [1, 32], strides = [1, 1]} : vector<3x32xf32> to vector<1x32xf32>
    %370 = vector.shape_cast %369 : vector<1x32xf32> to vector<32xf32>
    %371 = vector.shape_cast %370 : vector<32xf32> to vector<1x32xf32>
    %372 = vector.broadcast %371 : vector<1x32xf32> to vector<2x32xf32>
    %373 = arith.addf %368, %372 : vector<2x32xf32>
    %374 = math.tanh %373 : vector<2x32xf32>
    %c0_92 = arith.constant 0 : index
    %c0_93 = arith.constant 0 : index
    %375 = vector.load %arg9[%c0_92, %c0_93] : memref<2x32xf32, #tpu.memory_space<vmem>>, vector<2x32xf32>
    tpu.vector_store %arg9[%c0_92, %c0_93], %374 {strides = array<i32>} : memref<2x32xf32, #tpu.memory_space<vmem>>, vector<2x32xf32>,
    return
  }
}

</mosaic_0001>

<llo_original>
// kernel: sentence_encoder_forward.1
$region0: #{sentence_encoder_forward.1}
  #allocation0 [shape = 'u32[]', space=smem, size = 0x4, offset = 0x4, fixed_abs, tag = 'smem constant byte address 0x4 - core index']
  #allocation1 [shape = 'u32[144,128]{1,0:T(1,128)}', space=vmem, size = 0x12000, scoped, tag = 'internal scratch']
  %s0 = inlined_call_operand.vmem [shape: s32[16,1], index: 0, kind: input, shape index: {}]
  %s1 = inlined_call_operand.vmem [shape: f32[2,1,8], index: 1, kind: input, shape index: {}]
  %s2 = inlined_call_operand.hbm [shape: f32[144,32], index: 2, kind: input, shape index: {}]
  %s3 = inlined_call_operand.hbm [shape: f32[3,32], index: 3, kind: input, shape index: {}]
  %s4 = inlined_call_operand.hbm [shape: bf16[2,32,160], index: 4, kind: input, shape index: {}]
  %s5 = inlined_call_operand.vmem [shape: bf16[2,4,8,32], index: 5, kind: input, shape index: {}]
  %s6 = inlined_call_operand.hbm [shape: bf16[2,64,32], index: 6, kind: input, shape index: {}]
  %s7 = inlined_call_operand.hbm [shape: f32[2,8,96], index: 7, kind: input, shape index: {}]
  %s8 = inlined_call_operand.hbm [shape: bf16[32,32], index: 8, kind: input, shape index: {}]
  %s9 = inlined_call_operand.hbm [shape: f32[2,32], index: 9, kind: output, shape index: {}]
  %s10 = sld [smem:[#allocation0]]
  $region70: #{sentence_encoder_forward.1} parent=0
    _
  %s12 = ssub.s32 1, %s10
  %s13 = scalar_select 0, %s12, %s10
  $region1: #{sentence_encoder_forward.1} parent=0
    #allocation2 [shape = 'u8[73728]{0}', space=vmem, size = 0x12000, scoped, tag = 'input window, operand 2, single buffered']
    #allocation3 [shape = 's32[1]{0}', space=sflag, size = 0x4, scoped, tag = 'scoped memory for sentence_encoder_forward.1']
    #allocation4 [shape = 's32[1]{0}', space=sflag, size = 0x4, scoped, tag = 'scoped memory for sentence_encoder_forward.1']
    #allocation5 [shape = 'u8[2048]{0}', space=vmem, size = 0x800, scoped, tag = 'input window, operand 3, single buffered']
    #allocation6 [shape = 's32[1]{0}', space=sflag, size = 0x4, scoped, tag = 'scoped memory for sentence_encoder_forward.1']
    #allocation7 [shape = 'u8[32768]{0}', space=vmem, size = 0x8000, scoped, tag = 'input window, operand 4, single buffered']
    #allocation8 [shape = 'u8[32768]{0}', space=vmem, size = 0x8000, scoped, tag = 'input window, operand 6, single buffered']
    #allocation9 [shape = 's32[1]{0}', space=sflag, size = 0x4, scoped, tag = 'scoped memory for sentence_encoder_forward.1']
    #allocation10 [shape = 'u8[8192]{0}', space=vmem, size = 0x2000, scoped, tag = 'input window, operand 7, single buffered']
    #allocation11 [shape = 'u8[8192]{0}', space=vmem, size = 0x2000, scoped, tag = 'input window, operand 8, single buffered']
    #allocation12 [shape = 's32[1]{0}', space=sflag, size = 0x4, scoped, tag = 'scoped memory for sentence_encoder_forward.1']
    #allocation13 [shape = 'u8[1024]{0}', space=vmem, size = 0x400, scoped, tag = 'output window, operand 0, single buffered']
    %14 = vsyncpa [#allocation3], 0
    %15 = vsyncpa [#allocation6], 0
    %16 = vsyncpa [#allocation9], 0
    %17 = vsyncpa [#allocation12], 0
    %18 = vsyncpa [#allocation4], 0
    // Predicated region
    $region2: #{sentence_encoder_forward.1} parent=1 // pred_check
      _
    $region3: #{sentence_encoder_forward.1} parent=1 // pred_check_branch
      %20 = sbr.rel (0) target = $region5
    $region4: #{sentence_encoder_forward.1} parent=1 // pred_region
      _
    $region5: #{sentence_encoder_forward.1} parent=1 // pred_fallthru
      _
    // Predicated region
    $region6: #{sentence_encoder_forward.1} parent=1 // pred_check
      _
    $region7: #{sentence_encoder_forward.1} parent=1 // pred_check_branch
      %22 = sbr.rel (0) target = $region9
    $region8: #{sentence_encoder_forward.1} parent=1 // pred_region
      _
    $region9: #{sentence_encoder_forward.1} parent=1 // pred_fallthru
      _
    // Predicated region
    $region10: #{sentence_encoder_forward.1} parent=1 // pred_check
      _
    $region11: #{sentence_encoder_forward.1} parent=1 // pred_check_branch
      %24 = sbr.rel (0) target = $region13
    $region12: #{sentence_encoder_forward.1} parent=1 // pred_region
      %s26 = ssub.s32 2304, 2304
      %27 = vsyncadd [#allocation3], %s26
      %s28 = sshll.u32 [#allocation2], 4
      %s29 = int_to_ptr.vmem [resolvable:$true] %s28
      %34 = dma.hbm_to_vmem [thread:$0]  %s2, 2304, %s29, [#allocation3], 128, 128, 8
    $region13: #{sentence_encoder_forward.1} parent=1 // pred_fallthru
      _
    // Predicated region
    $region14: #{sentence_encoder_forward.1} parent=1 // pred_check
      _
    $region15: #{sentence_encoder_forward.1} parent=1 // pred_check_branch
      %36 = sbr.rel (0) target = $region17
    $region16: #{sentence_encoder_forward.1} parent=1 // pred_region
      %s38 = ssub.s32 64, 64
      %39 = vsyncadd [#allocation6], %s38
      %s41 = sshll.u32 [#allocation5], 4
      %s42 = int_to_ptr.vmem [resolvable:$true] %s41
      %44 = dma.hbm_to_vmem [thread:$0]  %s3, 64, %s42, [#allocation6]
    $region17: #{sentence_encoder_forward.1} parent=1 // pred_fallthru
      _
    // Predicated region
    $region18: #{sentence_encoder_forward.1} parent=1 // pred_check
      _
    $region19: #{sentence_encoder_forward.1} parent=1 // pred_check_branch
      %46 = sbr.rel (0) target = $region21
    $region20: #{sentence_encoder_forward.1} parent=1 // pred_region
      %s48 = ssub.s32 1024, 1024
      %49 = vsyncadd [#allocation6], %s48
      %s50 = sshll.u32 [#allocation7], 4
      %s51 = int_to_ptr.vmem [resolvable:$true] %s50
      %56 = dma.hbm_to_vmem [thread:$0]  %s4, 1024, %s51, [#allocation6], 128, 128, 8
    $region21: #{sentence_encoder_forward.1} parent=1 // pred_fallthru
      _
    // Predicated region
    $region22: #{sentence_encoder_forward.1} parent=1 // pred_check
      _
    $region23: #{sentence_encoder_forward.1} parent=1 // pred_check_branch
      %58 = sbr.rel (0) target = $region25
    $region24: #{sentence_encoder_forward.1} parent=1 // pred_region
      _
    $region25: #{sentence_encoder_forward.1} parent=1 // pred_fallthru
      _
    // Predicated region
    $region26: #{sentence_encoder_forward.1} parent=1 // pred_check
      _
    $region27: #{sentence_encoder_forward.1} parent=1 // pred_check_branch
      %60 = sbr.rel (0) target = $region29
    $region28: #{sentence_encoder_forward.1} parent=1 // pred_region
      %s62 = ssub.s32 1024, 1024
      %63 = vsyncadd [#allocation9], %s62
      %s64 = sshll.u32 [#allocation8], 4
      %s65 = int_to_ptr.vmem [resolvable:$true] %s64
      %70 = dma.hbm_to_vmem [thread:$0]  %s6, 1024, %s65, [#allocation9], 64, 64, 4
    $region29: #{sentence_encoder_forward.1} parent=1 // pred_fallthru
      _
    // Predicated region
    $region30: #{sentence_encoder_forward.1} parent=1 // pred_check
      _
    $region31: #{sentence_encoder_forward.1} parent=1 // pred_check_branch
      %72 = sbr.rel (0) target = $region33
    $region32: #{sentence_encoder_forward.1} parent=1 // pred_region
      %s74 = ssub.s32 256, 256
      %75 = vsyncadd [#allocation9], %s74
      %s76 = sshll.u32 [#allocation10], 4
      %s77 = int_to_ptr.vmem [resolvable:$true] %s76
      %82 = dma.hbm_to_vmem [thread:$0]  %s7, 256, %s77, [#allocation9], 128, 128, 8
    $region33: #{sentence_encoder_forward.1} parent=1 // pred_fallthru
      _
    // Predicated region
    $region34: #{sentence_encoder_forward.1} parent=1 // pred_check
      _
    $region35: #{sentence_encoder_forward.1} parent=1 // pred_check_branch
      %84 = sbr.rel (0) target = $region37
    $region36: #{sentence_encoder_forward.1} parent=1 // pred_region
      %s86 = ssub.s32 256, 256
      %87 = vsyncadd [#allocation12], %s86
      %s88 = sshll.u32 [#allocation11], 4
      %s89 = int_to_ptr.vmem [resolvable:$true] %s88
      %94 = dma.hbm_to_vmem [thread:$0]  %s8, 256, %s89, [#allocation12], 64, 64, 4
    $region37: #{sentence_encoder_forward.1} parent=1 // pred_fallthru
      _
    // Predicated region
    $region38: #{sentence_encoder_forward.1} parent=1 // pred_check
      _
    $region39: #{sentence_encoder_forward.1} parent=1 // pred_check_branch
      %96 = sbr.rel (0) target = $region41
    $region40: #{sentence_encoder_forward.1} parent=1 // pred_region
      %97 = dma.done [#allocation3], 2304
    $region41: #{sentence_encoder_forward.1} parent=1 // pred_fallthru
      _
    // Predicated region
    $region42: #{sentence_encoder_forward.1} parent=1 // pred_check
      _
    $region43: #{sentence_encoder_forward.1} parent=1 // pred_check_branch
      %99 = sbr.rel (0) target = $region45
    $region44: #{sentence_encoder_forward.1} parent=1 // pred_region
      %100 = dma.done [#allocation6], 64
    $region45: #{sentence_encoder_forward.1} parent=1 // pred_fallthru
      _
    // Predicated region
    $region46: #{sentence_encoder_forward.1} parent=1 // pred_check
      _
    $region47: #{sentence_encoder_forward.1} parent=1 // pred_check_branch
      %102 = sbr.rel (0) target = $region49
    $region48: #{sentence_encoder_forward.1} parent=1 // pred_region
      %103 = dma.done [#allocation6], 1024
    $region49: #{sentence_encoder_forward.1} parent=1 // pred_fallthru
      _
    // Predicated region
    $region50: #{sentence_encoder_forward.1} parent=1 // pred_check
      _
    $region51: #{sentence_encoder_forward.1} parent=1 // pred_check_branch
      %105 = sbr.rel (0) target = $region53
    $region52: #{sentence_encoder_forward.1} parent=1 // pred_region
      %106 = dma.done [#allocation9], 1024
    $region53: #{sentence_encoder_forward.1} parent=1 // pred_fallthru
      _
    // Predicated region
    $region54: #{sentence_encoder_forward.1} parent=1 // pred_check
      _
    $region55: #{sentence_encoder_forward.1} parent=1 // pred_check_branch
      %108 = sbr.rel (0) target = $region57
    $region56: #{sentence_encoder_forward.1} parent=1 // pred_region
      %109 = dma.done [#allocation9], 256
    $region57: #{sentence_encoder_forward.1} parent=1 // pred_fallthru
      _
    // Predicated region
    $region58: #{sentence_encoder_forward.1} parent=1 // pred_check
      _
    $region59: #{sentence_encoder_forward.1} parent=1 // pred_check_branch
      %111 = sbr.rel (0) target = $region61
    $region60: #{sentence_encoder_forward.1} parent=1 // pred_region
      %112 = dma.done [#allocation12], 256
    $region61: #{sentence_encoder_forward.1} parent=1 // pred_fallthru
      _
    %v114 = vld [vmem:[%s0] sm:$0xff]
    %v115 = vld [vmem:[%s0 + $0x8] sm:$0xff]
    %v116 = vlaneseq
    %v117 = vand.u32 %v116, 127
    %118 = vset.pattern.permute.xlu0 0
    %119 = vperm.xlu0 %118, %v114
    %v120 = vpop.permute.xlu0 %119
    %121 = vset.pattern.permute.xlu0 0
    %122 = vperm.xlu0 %121, %v115
    %v123 = vpop.permute.xlu0 %122
    %vm124 = vcmp.eq.s32.totalorder %v117, %v120
    %vm125 = vcmp.eq.s32.totalorder %v117, %v123
    %v126 = vsel %vm124, 1, 0
    %v127 = vsel %vm125, 1, 0
    %v128 = vcvt.s32.f32 %v126
    %v129 = vcvt.s32.f32 %v127
    %v130 = vld [vmem:[#allocation2] sm:$0xff]
    %v131 = vld [vmem:[#allocation2 + $0x8] sm:$0xff]
    %v132 = vld [vmem:[#allocation2 + $0x10] sm:$0xff]
    %v133 = vld [vmem:[#allocation2 + $0x18] sm:$0xff]
    %v134 = vld [vmem:[#allocation2 + $0x20] sm:$0xff]
    %v135 = vld [vmem:[#allocation2 + $0x28] sm:$0xff]
    %v136 = vld [vmem:[#allocation2 + $0x30] sm:$0xff]
    %v137 = vld [vmem:[#allocation2 + $0x38] sm:$0xff]
    %v138 = vld [vmem:[#allocation2 + $0x40] sm:$0xff]
    %v139 = vld [vmem:[#allocation2 + $0x48] sm:$0xff]
    %v140 = vld [vmem:[#allocation2 + $0x50] sm:$0xff]
    %v141 = vld [vmem:[#allocation2 + $0x58] sm:$0xff]
    %v142 = vld [vmem:[#allocation2 + $0x60] sm:$0xff]
    %v143 = vld [vmem:[#allocation2 + $0x68] sm:$0xff]
    %v144 = vld [vmem:[#allocation2 + $0x70] sm:$0xff]
    %v145 = vld [vmem:[#allocation2 + $0x78] sm:$0xff]
    %146 = vmatprep.subr.mxu0 0.0
    %147 = vmatpush1.msra.mxu0 %v145
    %148 = vmatprep.subr.mxu0 0.0
    %149 = vmatpush1.msra.mxu0 %v144
    %150 = vmatprep.subr.mxu0 0.0
    %151 = vmatpush1.msra.mxu0 %v143
    %152 = vmatprep.subr.mxu0 0.0
    %153 = vmatpush1.msra.mxu0 %v142
    %154 = vmatprep.subr.mxu0 0.0
    %155 = vmatpush1.msra.mxu0 %v141
    %156 = vmatprep.subr.mxu0 0.0
    %157 = vmatpush1.msra.mxu0 %v140
    %158 = vmatprep.subr.mxu0 0.0
    %159 = vmatpush1.msra.mxu0 %v139
    %160 = vmatprep.subr.mxu0 0.0
    %161 = vmatpush1.msra.mxu0 %v138
    %162 = vmatprep.subr.mxu0 0.0
    %163 = vmatpush1.msra.mxu0 %v137
    %164 = vmatprep.subr.mxu0 0.0
    %165 = vmatpush1.msra.mxu0 %v136
    %166 = vmatprep.subr.mxu0 0.0
    %167 = vmatpush1.msra.mxu0 %v135
    %168 = vmatprep.subr.mxu0 0.0
    %169 = vmatpush1.msra.mxu0 %v134
    %170 = vmatprep.subr.mxu0 0.0
    %171 = vmatpush1.msra.mxu0 %v133
    %172 = vmatprep.subr.mxu0 0.0
    %173 = vmatpush1.msra.mxu0 %v132
    %174 = vmatprep.subr.mxu0 0.0
    %175 = vmatpush1.msra.mxu0 %v131
    %176 = vmatprep.subr.mxu0 0.0
    %177 = vmatpush1.msra.mxu0 %v130
    %178 = vmatprep.subr.mxu0 0.0
    %179 = vmatpush2.msra.mxu0 0.0
    %180 = vmatprep.subr.mxu0 0.0
    %181 = vmatpush2.msra.mxu0 0.0
    %182 = vmatprep.subr.mxu0 0.0
    %183 = vmatpush2.msra.mxu0 0.0
    %184 = vmatprep.subr.mxu0 0.0
    %185 = vmatpush2.msra.mxu0 0.0
    %186 = vmatprep.subr.mxu0 0.0
    %187 = vmatpush2.msra.mxu0 0.0
    %188 = vmatprep.subr.mxu0 0.0
    %189 = vmatpush2.msra.mxu0 0.0
    %190 = vmatprep.subr.mxu0 0.0
    %191 = vmatpush2.msra.mxu0 0.0
    %192 = vmatprep.subr.mxu0 0.0
    %193 = vmatpush2.msra.mxu0 0.0
    %194 = vmatprep.subr.mxu0 0.0
    %195 = vmatpush2.msra.mxu0 0.0
    %196 = vmatprep.subr.mxu0 0.0
    %197 = vmatpush2.msra.mxu0 0.0
    %198 = vmatprep.subr.mxu0 0.0
    %199 = vmatpush2.msra.mxu0 0.0
    %200 = vmatprep.subr.mxu0 0.0
    %201 = vmatpush2.msra.mxu0 0.0
    %202 = vmatprep.subr.mxu0 0.0
    %203 = vmatpush2.msra.mxu0 0.0
    %204 = vmatprep.subr.mxu0 0.0
    %205 = vmatpush2.msra.mxu0 0.0
    %206 = vmatprep.subr.mxu0 0.0
    %207 = vmatpush2.msra.mxu0 0.0
    %208 = vmatprep.subr.mxu0 0.0
    %209 = vmatpush2.msra.mxu0 0.0
    %210 = vmatprep.mubr.f32.mxu0 0.0
    %211 = vmatmul.mubr.f32.gmra.mxu0 %v128
    %v212 = vpop.f32.mrf.mxu0
    %v213 = vadd.f32 0.0, %v212
    %v214 = vpop.f32.mrf.mxu0
    %215 = vmatprep.mubr.f32.mxu0 0.0
    %216 = vmatmul.mubr.f32.gmra.mxu0 %v129
    %v217 = vpop.f32.mrf.mxu0
    %v218 = vadd.f32 0.0, %v217
    %v219 = vpop.f32.mrf.mxu0
    %220 = vdwg.mxu0
    %v221 = vld [vmem:[#allocation2 + $0x80] sm:$0xff]
    %v222 = vadd.f32 %v213, %v221
    %v223 = vadd.f32 %v218, %v221
    %v224 = vld [vmem:[#allocation5] sm:$0x7]
    %vm225 = vcmask 261120
    %v226 = vsel %vm225, %v222, 0.0
    %227 = vadd.xlane.f32.xlu0 %v226
    %v228 = vpop.xlane.xlu0 %227
    %v229 = vsel %vm225, %v223, 0.0
    %230 = vadd.xlane.f32.xlu0 %v229
    %v231 = vpop.xlane.xlu0 %230
    %v232 = vrcp.pop 32.0
    %v233 = vmul.f32 %v228, %v232
    %v234 = vmul.f32 %v231, %v232
    %v235 = vsub.f32 %v222, %v233
    %v236 = vsub.f32 %v223, %v234
    %v237 = vmul.f32 %v235, %v235
    %v238 = vmul.f32 %v236, %v236
    %v239 = vsel %vm225, %v237, 0.0
    %240 = vadd.xlane.f32.xlu0 %v239
    %v241 = vpop.xlane.xlu0 %240
    %v242 = vsel %vm225, %v238, 0.0
    %243 = vadd.xlane.f32.xlu0 %v242
    %v244 = vpop.xlane.xlu0 %243
    %v245 = vmul.f32 %v241, %v232
    %v246 = vmul.f32 %v244, %v232
    %v247 = vadd.f32 %v245, 1e-12
    %v248 = vadd.f32 %v246, 1e-12
    %v249 = vrsqrt.pop %v247
    %v250 = vrsqrt.pop %v248
    %v251 = vmul.f32 %v235, %v249
    %v252 = vmul.f32 %v236, %v250
    %v253 = vlaneseq
    %v254 = vshrl.u32 %v253, 7
    %v255 = vsub.s32 0, %v254
    %v256 = vrot.slane %v224, %v255
    %v257 = vmul.f32 %v251, %v256
    %v258 = vmul.f32 %v252, %v256
    %v259 = vlaneseq
    %v260 = vshrl.u32 %v259, 7
    %v261 = vsub.s32 1, %v260
    %v262 = vrot.slane %v224, %v261
    %v263 = vadd.f32 %v257, %v262
    %v264 = vadd.f32 %v258, %v262
    %v265 = vld [vmem:[%s1] sm:$0x1]
    %v266 = vld [vmem:[%s1 + $0x1] sm:$0x1]
    %v267 = vsub.f32 %v265, 1.0
    %v268 = vsub.f32 %v266, 1.0
    %v269 = vmul.f32 %v267, 1e+09
    %v270 = vmul.f32 %v268, 1e+09
    %v273 = vlaneseq
    %v274 = vshrl.u32 %v273, 7
    %v275 = vsub.s32 0, %v274
    %v276 = vrot.slane %v269, %v275
    %v277 = vlaneseq
    %v278 = vshrl.u32 %v277, 7
    %v279 = vsub.s32 0, %v278
    %v280 = vrot.slane %v270, %v279
    %v283 = vld [vmem:[#allocation7] sm:$0xff]
    %v284 = vld [vmem:[#allocation7 + $0x8] sm:$0xff]
    %v285 = vld [vmem:[#allocation7 + $0x10] sm:$0xff]
    %v286 = vld [vmem:[#allocation7 + $0x18] sm:$0xff]
    %v287 = vld [vmem:[#allocation10] sm:$0xff]
    %v288 = vpack.c.bf16 %v264, %v263
    %v289 = vlaneseq
    %v290 = vshrl.u32 %v289, 7
    %v291 = vsub.s32 0, %v290
    %v292 = vrot.slane %v287, %v291
    %v297 = vunpack.c.l.b16 %v283
    %v298 = vunpack.c.l.b16 %v284
    %v299 = vunpack.c.l.b16 %v285
    %v300 = vunpack.c.l.b16 %v286
    %v301 = vpack.c.b16 %v298, %v297
    %v302 = vpack.c.b16 %v300, %v299
    %v306 = vsel %vm225, %v288, 0
    %308 = vmatprep.subr.bf16.mxu0 0
    %309 = vmatpush1.bf16.msra.mxu0 0
    %310 = vmatprep.subr.bf16.mxu0 0
    %311 = vmatpush1.bf16.msra.mxu0 0
    %312 = vmatprep.subr.bf16.mxu0 0
    %313 = vmatpush1.bf16.msra.mxu0 0
    %314 = vmatprep.subr.bf16.mxu0 0
    %315 = vmatpush1.bf16.msra.mxu0 0
    %316 = vmatprep.subr.bf16.mxu0 0
    %317 = vmatpush1.bf16.msra.mxu0 0
    %318 = vmatprep.subr.bf16.mxu0 0
    %319 = vmatpush1.bf16.msra.mxu0 0
    %320 = vmatprep.subr.bf16.mxu0 0
    %321 = vmatpush1.bf16.msra.mxu0 %v302
    %322 = vmatprep.subr.bf16.mxu0 0
    %323 = vmatpush1.bf16.msra.mxu0 %v301
    %324 = vmatprep.subr.bf16.mxu0 0
    %325 = vmatpush2.bf16.msra.mxu0 0
    %326 = vmatprep.subr.bf16.mxu0 0
    %327 = vmatpush2.bf16.msra.mxu0 0
    %328 = vmatprep.subr.bf16.mxu0 0
    %329 = vmatpush2.bf16.msra.mxu0 0
    %330 = vmatprep.subr.bf16.mxu0 0
    %331 = vmatpush2.bf16.msra.mxu0 0
    %332 = vmatprep.subr.bf16.mxu0 0
    %333 = vmatpush2.bf16.msra.mxu0 0
    %334 = vmatprep.subr.bf16.mxu0 0
    %335 = vmatpush2.bf16.msra.mxu0 0
    %336 = vmatprep.subr.bf16.mxu0 0
    %337 = vmatpush2.bf16.msra.mxu0 0
    %338 = vmatprep.subr.bf16.mxu0 0
    %339 = vmatpush2.bf16.msra.mxu0 0
    %340 = vmatprep.mubr.bf16.mxu0 0
    %341 = vmatmul.mubr.bf16.gmra.mxu0 %v306
    %v342 = vpop.f32.mrf.mxu0
    %v343 = vadd.f32 %v292, %v342
    %v344 = vpop.f32.mrf.mxu0
    %v345 = vpop.f32.mrf.mxu0
    %v346 = vadd.f32 %v292, %v345
    %v347 = vpop.f32.mrf.mxu0
    %348 = vdwg.mxu0
    %351 = vrot.lane.b32.xlu0 %v343, 120
    %v352 = vpop.permute.xlu0 %351
    %353 = vrot.lane.b32.xlu0 %v346, 120
    %v354 = vpop.permute.xlu0 %353
    %357 = vrot.lane.b32.xlu0 %v343, 112
    %v358 = vpop.permute.xlu0 %357
    %359 = vrot.lane.b32.xlu0 %v346, 112
    %v360 = vpop.permute.xlu0 %359
    %363 = vrot.lane.b32.xlu0 %v343, 104
    %v364 = vpop.permute.xlu0 %363
    %365 = vrot.lane.b32.xlu0 %v346, 104
    %v366 = vpop.permute.xlu0 %365
    %v369 = vpack.c.bf16 %v343, %v343
    %v370 = vpack.c.bf16 %v346, %v346
    %v371 = vpack.c.bf16 %v352, %v352
    %v372 = vpack.c.bf16 %v354, %v354
    %v373 = vpack.c.bf16 %v358, %v358
    %v374 = vpack.c.bf16 %v360, %v360
    %v375 = vpack.c.bf16 %v364, %v364
    %v376 = vpack.c.bf16 %v366, %v366
    %378 = vrot.lane.b32.xlu0 %v369, 96
    %v379 = vpop.permute.xlu0 %378
    %vm380 = vcmask 64512
    %v382 = vsel %vm380, %v369, 0
    %v385 = vsel %vm380, %v379, 0
    %387 = vmatprep.subr.bf16.mxu0 0
    %388 = vmatpush1.bf16.xpose.msra.mxu0 0
    %389 = vmatprep.subr.bf16.mxu0 0
    %390 = vmatpush1.bf16.xpose.msra.mxu0 0
    %391 = vmatprep.subr.bf16.mxu0 0
    %392 = vmatpush1.bf16.xpose.msra.mxu0 0
    %393 = vmatprep.subr.bf16.mxu0 0
    %394 = vmatpush1.bf16.xpose.msra.mxu0 0
    %395 = vmatprep.subr.bf16.mxu0 0
    %396 = vmatpush1.bf16.xpose.msra.mxu0 0
    %397 = vmatprep.subr.bf16.mxu0 0
    %398 = vmatpush1.bf16.xpose.msra.mxu0 0
    %399 = vmatprep.subr.bf16.mxu0 0
    %400 = vmatpush1.bf16.xpose.msra.mxu0 0
    %401 = vmatprep.subr.bf16.mxu0 0
    %402 = vmatpush1.bf16.xpose.msra.mxu0 %v385
    %403 = vmatprep.subr.bf16.mxu0 0
    %404 = vmatpush2.bf16.xpose.msra.mxu0 0
    %405 = vmatprep.subr.bf16.mxu0 0
    %406 = vmatpush2.bf16.xpose.msra.mxu0 0
    %407 = vmatprep.subr.bf16.mxu0 0
    %408 = vmatpush2.bf16.xpose.msra.mxu0 0
    %409 = vmatprep.subr.bf16.mxu0 0
    %410 = vmatpush2.bf16.xpose.msra.mxu0 0
    %411 = vmatprep.subr.bf16.mxu0 0
    %412 = vmatpush2.bf16.xpose.msra.mxu0 0
    %413 = vmatprep.subr.bf16.mxu0 0
    %414 = vmatpush2.bf16.xpose.msra.mxu0 0
    %415 = vmatprep.subr.bf16.mxu0 0
    %416 = vmatpush2.bf16.xpose.msra.mxu0 0
    %417 = vmatprep.subr.bf16.mxu0 0
    %418 = vmatpush2.bf16.xpose.msra.mxu0 0
    %419 = vmatprep.mubr.bf16.mxu0 0
    %420 = vmatmul.mubr.bf16.gmra.mxu0 %v382
    %v421 = vpop.f32.mrf.mxu0
    %v422 = vadd.f32 %v276, %v421
    %v423 = vpop.f32.mrf.mxu0
    %v424 = vpop.f32.mrf.mxu0
    %v425 = vpop.f32.mrf.mxu0
    %426 = vdwg.mxu0
    %428 = vrot.lane.b32.xlu0 %v370, 96
    %v429 = vpop.permute.xlu0 %428
    %v431 = vsel %vm380, %v370, 0
    %v434 = vsel %vm380, %v429, 0
    %436 = vmatprep.subr.bf16.mxu0 0
    %437 = vmatpush1.bf16.xpose.msra.mxu0 0
    %438 = vmatprep.subr.bf16.mxu0 0
    %439 = vmatpush1.bf16.xpose.msra.mxu0 0
    %440 = vmatprep.subr.bf16.mxu0 0
    %441 = vmatpush1.bf16.xpose.msra.mxu0 0
    %442 = vmatprep.subr.bf16.mxu0 0
    %443 = vmatpush1.bf16.xpose.msra.mxu0 0
    %444 = vmatprep.subr.bf16.mxu0 0
    %445 = vmatpush1.bf16.xpose.msra.mxu0 0
    %446 = vmatprep.subr.bf16.mxu0 0
    %447 = vmatpush1.bf16.xpose.msra.mxu0 0
    %448 = vmatprep.subr.bf16.mxu0 0
    %449 = vmatpush1.bf16.xpose.msra.mxu0 0
    %450 = vmatprep.subr.bf16.mxu0 0
    %451 = vmatpush1.bf16.xpose.msra.mxu0 %v434
    %452 = vmatprep.subr.bf16.mxu0 0
    %453 = vmatpush2.bf16.xpose.msra.mxu0 0
    %454 = vmatprep.subr.bf16.mxu0 0
    %455 = vmatpush2.bf16.xpose.msra.mxu0 0
    %456 = vmatprep.subr.bf16.mxu0 0
    %457 = vmatpush2.bf16.xpose.msra.mxu0 0
    %458 = vmatprep.subr.bf16.mxu0 0
    %459 = vmatpush2.bf16.xpose.msra.mxu0 0
    %460 = vmatprep.subr.bf16.mxu0 0
    %461 = vmatpush2.bf16.xpose.msra.mxu0 0
    %462 = vmatprep.subr.bf16.mxu0 0
    %463 = vmatpush2.bf16.xpose.msra.mxu0 0
    %464 = vmatprep.subr.bf16.mxu0 0
    %465 = vmatpush2.bf16.xpose.msra.mxu0 0
    %466 = vmatprep.subr.bf16.mxu0 0
    %467 = vmatpush2.bf16.xpose.msra.mxu0 0
    %468 = vmatprep.mubr.bf16.mxu0 0
    %469 = vmatmul.mubr.bf16.gmra.mxu0 %v431
    %v470 = vpop.f32.mrf.mxu0
    %v471 = vadd.f32 %v280, %v470
    %v472 = vpop.f32.mrf.mxu0
    %v473 = vpop.f32.mrf.mxu0
    %v474 = vpop.f32.mrf.mxu0
    %475 = vdwg.mxu0
    %477 = vrot.lane.b32.xlu0 %v371, 96
    %v478 = vpop.permute.xlu0 %477
    %v480 = vsel %vm380, %v371, 0
    %v483 = vsel %vm380, %v478, 0
    %485 = vmatprep.subr.bf16.mxu0 0
    %486 = vmatpush1.bf16.xpose.msra.mxu0 0
    %487 = vmatprep.subr.bf16.mxu0 0
    %488 = vmatpush1.bf16.xpose.msra.mxu0 0
    %489 = vmatprep.subr.bf16.mxu0 0
    %490 = vmatpush1.bf16.xpose.msra.mxu0 0
    %491 = vmatprep.subr.bf16.mxu0 0
    %492 = vmatpush1.bf16.xpose.msra.mxu0 0
    %493 = vmatprep.subr.bf16.mxu0 0
    %494 = vmatpush1.bf16.xpose.msra.mxu0 0
    %495 = vmatprep.subr.bf16.mxu0 0
    %496 = vmatpush1.bf16.xpose.msra.mxu0 0
    %497 = vmatprep.subr.bf16.mxu0 0
    %498 = vmatpush1.bf16.xpose.msra.mxu0 0
    %499 = vmatprep.subr.bf16.mxu0 0
    %500 = vmatpush1.bf16.xpose.msra.mxu0 %v483
    %501 = vmatprep.subr.bf16.mxu0 0
    %502 = vmatpush2.bf16.xpose.msra.mxu0 0
    %503 = vmatprep.subr.bf16.mxu0 0
    %504 = vmatpush2.bf16.xpose.msra.mxu0 0
    %505 = vmatprep.subr.bf16.mxu0 0
    %506 = vmatpush2.bf16.xpose.msra.mxu0 0
    %507 = vmatprep.subr.bf16.mxu0 0
    %508 = vmatpush2.bf16.xpose.msra.mxu0 0
    %509 = vmatprep.subr.bf16.mxu0 0
    %510 = vmatpush2.bf16.xpose.msra.mxu0 0
    %511 = vmatprep.subr.bf16.mxu0 0
    %512 = vmatpush2.bf16.xpose.msra.mxu0 0
    %513 = vmatprep.subr.bf16.mxu0 0
    %514 = vmatpush2.bf16.xpose.msra.mxu0 0
    %515 = vmatprep.subr.bf16.mxu0 0
    %516 = vmatpush2.bf16.xpose.msra.mxu0 0
    %517 = vmatprep.mubr.bf16.mxu0 0
    %518 = vmatmul.mubr.bf16.gmra.mxu0 %v480
    %v519 = vpop.f32.mrf.mxu0
    %v520 = vadd.f32 %v276, %v519
    %v521 = vpop.f32.mrf.mxu0
    %v522 = vpop.f32.mrf.mxu0
    %v523 = vpop.f32.mrf.mxu0
    %524 = vdwg.mxu0
    %526 = vrot.lane.b32.xlu0 %v372, 96
    %v527 = vpop.permute.xlu0 %526
    %v529 = vsel %vm380, %v372, 0
    %v532 = vsel %vm380, %v527, 0
    %534 = vmatprep.subr.bf16.mxu0 0
    %535 = vmatpush1.bf16.xpose.msra.mxu0 0
    %536 = vmatprep.subr.bf16.mxu0 0
    %537 = vmatpush1.bf16.xpose.msra.mxu0 0
    %538 = vmatprep.subr.bf16.mxu0 0
    %539 = vmatpush1.bf16.xpose.msra.mxu0 0
    %540 = vmatprep.subr.bf16.mxu0 0
    %541 = vmatpush1.bf16.xpose.msra.mxu0 0
    %542 = vmatprep.subr.bf16.mxu0 0
    %543 = vmatpush1.bf16.xpose.msra.mxu0 0
    %544 = vmatprep.subr.bf16.mxu0 0
    %545 = vmatpush1.bf16.xpose.msra.mxu0 0
    %546 = vmatprep.subr.bf16.mxu0 0
    %547 = vmatpush1.bf16.xpose.msra.mxu0 0
    %548 = vmatprep.subr.bf16.mxu0 0
    %549 = vmatpush1.bf16.xpose.msra.mxu0 %v532
    %550 = vmatprep.subr.bf16.mxu0 0
    %551 = vmatpush2.bf16.xpose.msra.mxu0 0
    %552 = vmatprep.subr.bf16.mxu0 0
    %553 = vmatpush2.bf16.xpose.msra.mxu0 0
    %554 = vmatprep.subr.bf16.mxu0 0
    %555 = vmatpush2.bf16.xpose.msra.mxu0 0
    %556 = vmatprep.subr.bf16.mxu0 0
    %557 = vmatpush2.bf16.xpose.msra.mxu0 0
    %558 = vmatprep.subr.bf16.mxu0 0
    %559 = vmatpush2.bf16.xpose.msra.mxu0 0
    %560 = vmatprep.subr.bf16.mxu0 0
    %561 = vmatpush2.bf16.xpose.msra.mxu0 0
    %562 = vmatprep.subr.bf16.mxu0 0
    %563 = vmatpush2.bf16.xpose.msra.mxu0 0
    %564 = vmatprep.subr.bf16.mxu0 0
    %565 = vmatpush2.bf16.xpose.msra.mxu0 0
    %566 = vmatprep.mubr.bf16.mxu0 0
    %567 = vmatmul.mubr.bf16.gmra.mxu0 %v529
    %v568 = vpop.f32.mrf.mxu0
    %v569 = vadd.f32 %v280, %v568
    %v570 = vpop.f32.mrf.mxu0
    %v571 = vpop.f32.mrf.mxu0
    %v572 = vpop.f32.mrf.mxu0
    %573 = vdwg.mxu0
    %575 = vrot.lane.b32.xlu0 %v373, 96
    %v576 = vpop.permute.xlu0 %575
    %v578 = vsel %vm380, %v373, 0
    %v581 = vsel %vm380, %v576, 0
    %583 = vmatprep.subr.bf16.mxu0 0
    %584 = vmatpush1.bf16.xpose.msra.mxu0 0
    %585 = vmatprep.subr.bf16.mxu0 0
    %586 = vmatpush1.bf16.xpose.msra.mxu0 0
    %587 = vmatprep.subr.bf16.mxu0 0
    %588 = vmatpush1.bf16.xpose.msra.mxu0 0
    %589 = vmatprep.subr.bf16.mxu0 0
    %590 = vmatpush1.bf16.xpose.msra.mxu0 0
    %591 = vmatprep.subr.bf16.mxu0 0
    %592 = vmatpush1.bf16.xpose.msra.mxu0 0
    %593 = vmatprep.subr.bf16.mxu0 0
    %594 = vmatpush1.bf16.xpose.msra.mxu0 0
    %595 = vmatprep.subr.bf16.mxu0 0
    %596 = vmatpush1.bf16.xpose.msra.mxu0 0
    %597 = vmatprep.subr.bf16.mxu0 0
    %598 = vmatpush1.bf16.xpose.msra.mxu0 %v581
    %599 = vmatprep.subr.bf16.mxu0 0
    %600 = vmatpush2.bf16.xpose.msra.mxu0 0
    %601 = vmatprep.subr.bf16.mxu0 0
    %602 = vmatpush2.bf16.xpose.msra.mxu0 0
    %603 = vmatprep.subr.bf16.mxu0 0
    %604 = vmatpush2.bf16.xpose.msra.mxu0 0
    %605 = vmatprep.subr.bf16.mxu0 0
    %606 = vmatpush2.bf16.xpose.msra.mxu0 0
    %607 = vmatprep.subr.bf16.mxu0 0
    %608 = vmatpush2.bf16.xpose.msra.mxu0 0
    %609 = vmatprep.subr.bf16.mxu0 0
    %610 = vmatpush2.bf16.xpose.msra.mxu0 0
    %611 = vmatprep.subr.bf16.mxu0 0
    %612 = vmatpush2.bf16.xpose.msra.mxu0 0
    %613 = vmatprep.subr.bf16.mxu0 0
    %614 = vmatpush2.bf16.xpose.msra.mxu0 0
    %615 = vmatprep.mubr.bf16.mxu0 0
    %616 = vmatmul.mubr.bf16.gmra.mxu0 %v578
    %v617 = vpop.f32.mrf.mxu0
    %v618 = vadd.f32 %v276, %v617
    %v619 = vpop.f32.mrf.mxu0
    %v620 = vpop.f32.mrf.mxu0
    %v621 = vpop.f32.mrf.mxu0
    %622 = vdwg.mxu0
    %624 = vrot.lane.b32.xlu0 %v374, 96
    %v625 = vpop.permute.xlu0 %624
    %v627 = vsel %vm380, %v374, 0
    %v630 = vsel %vm380, %v625, 0
    %632 = vmatprep.subr.bf16.mxu0 0
    %633 = vmatpush1.bf16.xpose.msra.mxu0 0
    %634 = vmatprep.subr.bf16.mxu0 0
    %635 = vmatpush1.bf16.xpose.msra.mxu0 0
    %636 = vmatprep.subr.bf16.mxu0 0
    %637 = vmatpush1.bf16.xpose.msra.mxu0 0
    %638 = vmatprep.subr.bf16.mxu0 0
    %639 = vmatpush1.bf16.xpose.msra.mxu0 0
    %640 = vmatprep.subr.bf16.mxu0 0
    %641 = vmatpush1.bf16.xpose.msra.mxu0 0
    %642 = vmatprep.subr.bf16.mxu0 0
    %643 = vmatpush1.bf16.xpose.msra.mxu0 0
    %644 = vmatprep.subr.bf16.mxu0 0
    %645 = vmatpush1.bf16.xpose.msra.mxu0 0
    %646 = vmatprep.subr.bf16.mxu0 0
    %647 = vmatpush1.bf16.xpose.msra.mxu0 %v630
    %648 = vmatprep.subr.bf16.mxu0 0
    %649 = vmatpush2.bf16.xpose.msra.mxu0 0
    %650 = vmatprep.subr.bf16.mxu0 0
    %651 = vmatpush2.bf16.xpose.msra.mxu0 0
    %652 = vmatprep.subr.bf16.mxu0 0
    %653 = vmatpush2.bf16.xpose.msra.mxu0 0
    %654 = vmatprep.subr.bf16.mxu0 0
    %655 = vmatpush2.bf16.xpose.msra.mxu0 0
    %656 = vmatprep.subr.bf16.mxu0 0
    %657 = vmatpush2.bf16.xpose.msra.mxu0 0
    %658 = vmatprep.subr.bf16.mxu0 0
    %659 = vmatpush2.bf16.xpose.msra.mxu0 0
    %660 = vmatprep.subr.bf16.mxu0 0
    %661 = vmatpush2.bf16.xpose.msra.mxu0 0
    %662 = vmatprep.subr.bf16.mxu0 0
    %663 = vmatpush2.bf16.xpose.msra.mxu0 0
    %664 = vmatprep.mubr.bf16.mxu0 0
    %665 = vmatmul.mubr.bf16.gmra.mxu0 %v627
    %v666 = vpop.f32.mrf.mxu0
    %v667 = vadd.f32 %v280, %v666
    %v668 = vpop.f32.mrf.mxu0
    %v669 = vpop.f32.mrf.mxu0
    %v670 = vpop.f32.mrf.mxu0
    %671 = vdwg.mxu0
    %673 = vrot.lane.b32.xlu0 %v375, 96
    %v674 = vpop.permute.xlu0 %673
    %v676 = vsel %vm380, %v375, 0
    %v679 = vsel %vm380, %v674, 0
    %681 = vmatprep.subr.bf16.mxu0 0
    %682 = vmatpush1.bf16.xpose.msra.mxu0 0
    %683 = vmatprep.subr.bf16.mxu0 0
    %684 = vmatpush1.bf16.xpose.msra.mxu0 0
    %685 = vmatprep.subr.bf16.mxu0 0
    %686 = vmatpush1.bf16.xpose.msra.mxu0 0
    %687 = vmatprep.subr.bf16.mxu0 0
    %688 = vmatpush1.bf16.xpose.msra.mxu0 0
    %689 = vmatprep.subr.bf16.mxu0 0
    %690 = vmatpush1.bf16.xpose.msra.mxu0 0
    %691 = vmatprep.subr.bf16.mxu0 0
    %692 = vmatpush1.bf16.xpose.msra.mxu0 0
    %693 = vmatprep.subr.bf16.mxu0 0
    %694 = vmatpush1.bf16.xpose.msra.mxu0 0
    %695 = vmatprep.subr.bf16.mxu0 0
    %696 = vmatpush1.bf16.xpose.msra.mxu0 %v679
    %697 = vmatprep.subr.bf16.mxu0 0
    %698 = vmatpush2.bf16.xpose.msra.mxu0 0
    %699 = vmatprep.subr.bf16.mxu0 0
    %700 = vmatpush2.bf16.xpose.msra.mxu0 0
    %701 = vmatprep.subr.bf16.mxu0 0
    %702 = vmatpush2.bf16.xpose.msra.mxu0 0
    %703 = vmatprep.subr.bf16.mxu0 0
    %704 = vmatpush2.bf16.xpose.msra.mxu0 0
    %705 = vmatprep.subr.bf16.mxu0 0
    %706 = vmatpush2.bf16.xpose.msra.mxu0 0
    %707 = vmatprep.subr.bf16.mxu0 0
    %708 = vmatpush2.bf16.xpose.msra.mxu0 0
    %709 = vmatprep.subr.bf16.mxu0 0
    %710 = vmatpush2.bf16.xpose.msra.mxu0 0
    %711 = vmatprep.subr.bf16.mxu0 0
    %712 = vmatpush2.bf16.xpose.msra.mxu0 0
    %713 = vmatprep.mubr.bf16.mxu0 0
    %714 = vmatmul.mubr.bf16.gmra.mxu0 %v676
    %v715 = vpop.f32.mrf.mxu0
    %v716 = vadd.f32 %v276, %v715
    %v717 = vpop.f32.mrf.mxu0
    %v718 = vpop.f32.mrf.mxu0
    %v719 = vpop.f32.mrf.mxu0
    %720 = vdwg.mxu0
    %722 = vrot.lane.b32.xlu0 %v376, 96
    %v723 = vpop.permute.xlu0 %722
    %v725 = vsel %vm380, %v376, 0
    %v728 = vsel %vm380, %v723, 0
    %730 = vmatprep.subr.bf16.mxu0 0
    %731 = vmatpush1.bf16.xpose.msra.mxu0 0
    %732 = vmatprep.subr.bf16.mxu0 0
    %733 = vmatpush1.bf16.xpose.msra.mxu0 0
    %734 = vmatprep.subr.bf16.mxu0 0
    %735 = vmatpush1.bf16.xpose.msra.mxu0 0
    %736 = vmatprep.subr.bf16.mxu0 0
    %737 = vmatpush1.bf16.xpose.msra.mxu0 0
    %738 = vmatprep.subr.bf16.mxu0 0
    %739 = vmatpush1.bf16.xpose.msra.mxu0 0
    %740 = vmatprep.subr.bf16.mxu0 0
    %741 = vmatpush1.bf16.xpose.msra.mxu0 0
    %742 = vmatprep.subr.bf16.mxu0 0
    %743 = vmatpush1.bf16.xpose.msra.mxu0 0
    %744 = vmatprep.subr.bf16.mxu0 0
    %745 = vmatpush1.bf16.xpose.msra.mxu0 %v728
    %746 = vmatprep.subr.bf16.mxu0 0
    %747 = vmatpush2.bf16.xpose.msra.mxu0 0
    %748 = vmatprep.subr.bf16.mxu0 0
    %749 = vmatpush2.bf16.xpose.msra.mxu0 0
    %750 = vmatprep.subr.bf16.mxu0 0
    %751 = vmatpush2.bf16.xpose.msra.mxu0 0
    %752 = vmatprep.subr.bf16.mxu0 0
    %753 = vmatpush2.bf16.xpose.msra.mxu0 0
    %754 = vmatprep.subr.bf16.mxu0 0
    %755 = vmatpush2.bf16.xpose.msra.mxu0 0
    %756 = vmatprep.subr.bf16.mxu0 0
    %757 = vmatpush2.bf16.xpose.msra.mxu0 0
    %758 = vmatprep.subr.bf16.mxu0 0
    %759 = vmatpush2.bf16.xpose.msra.mxu0 0
    %760 = vmatprep.subr.bf16.mxu0 0
    %761 = vmatpush2.bf16.xpose.msra.mxu0 0
    %762 = vmatprep.mubr.bf16.mxu0 0
    %763 = vmatmul.mubr.bf16.gmra.mxu0 %v725
    %v764 = vpop.f32.mrf.mxu0
    %v765 = vadd.f32 %v280, %v764
    %v766 = vpop.f32.mrf.mxu0
    %v767 = vpop.f32.mrf.mxu0
    %v768 = vpop.f32.mrf.mxu0
    %769 = vdwg.mxu0
    %v770 = vsel %vm380, %v422, -inf
    %771 = vmax.xlane.f32.xlu0 %v770
    %v772 = vpop.xlane.xlu0 %771
    %v773 = vsel %vm380, %v471, -inf
    %774 = vmax.xlane.f32.xlu0 %v773
    %v775 = vpop.xlane.xlu0 %774
    %v776 = vsel %vm380, %v520, -inf
    %777 = vmax.xlane.f32.xlu0 %v776
    %v778 = vpop.xlane.xlu0 %777
    %v779 = vsel %vm380, %v569, -inf
    %780 = vmax.xlane.f32.xlu0 %v779
    %v781 = vpop.xlane.xlu0 %780
    %v782 = vsel %vm380, %v618, -inf
    %783 = vmax.xlane.f32.xlu0 %v782
    %v784 = vpop.xlane.xlu0 %783
    %v785 = vsel %vm380, %v667, -inf
    %786 = vmax.xlane.f32.xlu0 %v785
    %v787 = vpop.xlane.xlu0 %786
    %v788 = vsel %vm380, %v716, -inf
    %789 = vmax.xlane.f32.xlu0 %v788
    %v790 = vpop.xlane.xlu0 %789
    %v791 = vsel %vm380, %v765, -inf
    %792 = vmax.xlane.f32.xlu0 %v791
    %v793 = vpop.xlane.xlu0 %792
    %v794 = vsub.f32 %v422, %v772
    %v795 = vsub.f32 %v471, %v775
    %v796 = vsub.f32 %v520, %v778
    %v797 = vsub.f32 %v569, %v781
    %v798 = vsub.f32 %v618, %v784
    %v799 = vsub.f32 %v667, %v787
    %v800 = vsub.f32 %v716, %v790
    %v801 = vsub.f32 %v765, %v793
    %v802 = vmul.f32 %v794, 1.442695
    %v803 = vpow.pop %v802
    %v804 = vmul.f32 %v795, 1.442695
    %v805 = vpow.pop %v804
    %v806 = vmul.f32 %v796, 1.442695
    %v807 = vpow.pop %v806
    %v808 = vmul.f32 %v797, 1.442695
    %v809 = vpow.pop %v808
    %v810 = vmul.f32 %v798, 1.442695
    %v811 = vpow.pop %v810
    %v812 = vmul.f32 %v799, 1.442695
    %v813 = vpow.pop %v812
    %v814 = vmul.f32 %v800, 1.442695
    %v815 = vpow.pop %v814
    %v816 = vmul.f32 %v801, 1.442695
    %v817 = vpow.pop %v816
    %v818 = vsel %vm380, %v803, 0.0
    %819 = vadd.xlane.f32.xlu0 %v818
    %v820 = vpop.xlane.xlu0 %819
    %v821 = vsel %vm380, %v805, 0.0
    %822 = vadd.xlane.f32.xlu0 %v821
    %v823 = vpop.xlane.xlu0 %822
    %v824 = vsel %vm380, %v807, 0.0
    %825 = vadd.xlane.f32.xlu0 %v824
    %v826 = vpop.xlane.xlu0 %825
    %v827 = vsel %vm380, %v809, 0.0
    %828 = vadd.xlane.f32.xlu0 %v827
    %v829 = vpop.xlane.xlu0 %828
    %v830 = vsel %vm380, %v811, 0.0
    %831 = vadd.xlane.f32.xlu0 %v830
    %v832 = vpop.xlane.xlu0 %831
    %v833 = vsel %vm380, %v813, 0.0
    %834 = vadd.xlane.f32.xlu0 %v833
    %v835 = vpop.xlane.xlu0 %834
    %v836 = vsel %vm380, %v815, 0.0
    %837 = vadd.xlane.f32.xlu0 %v836
    %v838 = vpop.xlane.xlu0 %837
    %v839 = vsel %vm380, %v817, 0.0
    %840 = vadd.xlane.f32.xlu0 %v839
    %v841 = vpop.xlane.xlu0 %840
    %v842 = vrcp.pop %v820
    %v843 = vrcp.pop %v823
    %v844 = vrcp.pop %v826
    %v845 = vrcp.pop %v829
    %v846 = vrcp.pop %v832
    %v847 = vrcp.pop %v835
    %v848 = vrcp.pop %v838
    %v849 = vrcp.pop %v841
    %v850 = vmul.f32 %v803, %v842
    %v851 = vmul.f32 %v805, %v843
    %v852 = vmul.f32 %v807, %v844
    %v853 = vmul.f32 %v809, %v845
    %v854 = vmul.f32 %v811, %v846
    %v855 = vmul.f32 %v813, %v847
    %v856 = vmul.f32 %v815, %v848
    %v857 = vmul.f32 %v817, %v849
    %v858 = vpack.c.bf16 %v850, %v850
    %v859 = vpack.c.bf16 %v851, %v851
    %v860 = vpack.c.bf16 %v852, %v852
    %v861 = vpack.c.bf16 %v853, %v853
    %v862 = vpack.c.bf16 %v854, %v854
    %v863 = vpack.c.bf16 %v855, %v855
    %v864 = vpack.c.bf16 %v856, %v856
    %v865 = vpack.c.bf16 %v857, %v857
    %866 = vrot.lane.b32.xlu0 %v369, 64
    %v867 = vpop.permute.xlu0 %866
    %v869 = vsel %vm380, %v858, 0
    %vm871 = vcmask 1043456
    %v873 = vsel %vm871, %v867, 0
    %875 = vmatprep.subr.bf16.mxu0 0
    %876 = vmatpush1.bf16.msra.mxu0 0
    %877 = vmatprep.subr.bf16.mxu0 0
    %878 = vmatpush1.bf16.msra.mxu0 0
    %879 = vmatprep.subr.bf16.mxu0 0
    %880 = vmatpush1.bf16.msra.mxu0 0
    %881 = vmatprep.subr.bf16.mxu0 0
    %882 = vmatpush1.bf16.msra.mxu0 0
    %883 = vmatprep.subr.bf16.mxu0 0
    %884 = vmatpush1.bf16.msra.mxu0 0
    %885 = vmatprep.subr.bf16.mxu0 0
    %886 = vmatpush1.bf16.msra.mxu0 0
    %887 = vmatprep.subr.bf16.mxu0 0
    %888 = vmatpush1.bf16.msra.mxu0 0
    %889 = vmatprep.subr.bf16.mxu0 0
    %890 = vmatpush1.bf16.msra.mxu0 %v873
    %891 = vmatprep.subr.bf16.mxu0 0
    %892 = vmatpush2.bf16.msra.mxu0 0
    %893 = vmatprep.subr.bf16.mxu0 0
    %894 = vmatpush2.bf16.msra.mxu0 0
    %895 = vmatprep.subr.bf16.mxu0 0
    %896 = vmatpush2.bf16.msra.mxu0 0
    %897 = vmatprep.subr.bf16.mxu0 0
    %898 = vmatpush2.bf16.msra.mxu0 0
    %899 = vmatprep.subr.bf16.mxu0 0
    %900 = vmatpush2.bf16.msra.mxu0 0
    %901 = vmatprep.subr.bf16.mxu0 0
    %902 = vmatpush2.bf16.msra.mxu0 0
    %903 = vmatprep.subr.bf16.mxu0 0
    %904 = vmatpush2.bf16.msra.mxu0 0
    %905 = vmatprep.subr.bf16.mxu0 0
    %906 = vmatpush2.bf16.msra.mxu0 0
    %907 = vmatprep.mubr.bf16.mxu0 0
    %908 = vmatmul.mubr.bf16.gmra.mxu0 %v869
    %v909 = vpop.f32.mrf.mxu0
    %v910 = vadd.f32 0.0, %v909
    %v911 = vpop.f32.mrf.mxu0
    %v912 = vpop.f32.mrf.mxu0
    %v913 = vpop.f32.mrf.mxu0
    %914 = vdwg.mxu0
    %915 = vrot.lane.b32.xlu0 %v370, 64
    %v916 = vpop.permute.xlu0 %915
    %v918 = vsel %vm380, %v859, 0
    %v921 = vsel %vm871, %v916, 0
    %923 = vmatprep.subr.bf16.mxu0 0
    %924 = vmatpush1.bf16.msra.mxu0 0
    %925 = vmatprep.subr.bf16.mxu0 0
    %926 = vmatpush1.bf16.msra.mxu0 0
    %927 = vmatprep.subr.bf16.mxu0 0
    %928 = vmatpush1.bf16.msra.mxu0 0
    %929 = vmatprep.subr.bf16.mxu0 0
    %930 = vmatpush1.bf16.msra.mxu0 0
    %931 = vmatprep.subr.bf16.mxu0 0
    %932 = vmatpush1.bf16.msra.mxu0 0
    %933 = vmatprep.subr.bf16.mxu0 0
    %934 = vmatpush1.bf16.msra.mxu0 0
    %935 = vmatprep.subr.bf16.mxu0 0
    %936 = vmatpush1.bf16.msra.mxu0 0
    %937 = vmatprep.subr.bf16.mxu0 0
    %938 = vmatpush1.bf16.msra.mxu0 %v921
    %939 = vmatprep.subr.bf16.mxu0 0
    %940 = vmatpush2.bf16.msra.mxu0 0
    %941 = vmatprep.subr.bf16.mxu0 0
    %942 = vmatpush2.bf16.msra.mxu0 0
    %943 = vmatprep.subr.bf16.mxu0 0
    %944 = vmatpush2.bf16.msra.mxu0 0
    %945 = vmatprep.subr.bf16.mxu0 0
    %946 = vmatpush2.bf16.msra.mxu0 0
    %947 = vmatprep.subr.bf16.mxu0 0
    %948 = vmatpush2.bf16.msra.mxu0 0
    %949 = vmatprep.subr.bf16.mxu0 0
    %950 = vmatpush2.bf16.msra.mxu0 0
    %951 = vmatprep.subr.bf16.mxu0 0
    %952 = vmatpush2.bf16.msra.mxu0 0
    %953 = vmatprep.subr.bf16.mxu0 0
    %954 = vmatpush2.bf16.msra.mxu0 0
    %955 = vmatprep.mubr.bf16.mxu0 0
    %956 = vmatmul.mubr.bf16.gmra.mxu0 %v918
    %v957 = vpop.f32.mrf.mxu0
    %v958 = vadd.f32 0.0, %v957
    %v959 = vpop.f32.mrf.mxu0
    %v960 = vpop.f32.mrf.mxu0
    %v961 = vpop.f32.mrf.mxu0
    %962 = vdwg.mxu0
    %963 = vrot.lane.b32.xlu0 %v371, 64
    %v964 = vpop.permute.xlu0 %963
    %v966 = vsel %vm380, %v860, 0
    %v969 = vsel %vm871, %v964, 0
    %971 = vmatprep.subr.bf16.mxu0 0
    %972 = vmatpush1.bf16.msra.mxu0 0
    %973 = vmatprep.subr.bf16.mxu0 0
    %974 = vmatpush1.bf16.msra.mxu0 0
    %975 = vmatprep.subr.bf16.mxu0 0
    %976 = vmatpush1.bf16.msra.mxu0 0
    %977 = vmatprep.subr.bf16.mxu0 0
    %978 = vmatpush1.bf16.msra.mxu0 0
    %979 = vmatprep.subr.bf16.mxu0 0
    %980 = vmatpush1.bf16.msra.mxu0 0
    %981 = vmatprep.subr.bf16.mxu0 0
    %982 = vmatpush1.bf16.msra.mxu0 0
    %983 = vmatprep.subr.bf16.mxu0 0
    %984 = vmatpush1.bf16.msra.mxu0 0
    %985 = vmatprep.subr.bf16.mxu0 0
    %986 = vmatpush1.bf16.msra.mxu0 %v969
    %987 = vmatprep.subr.bf16.mxu0 0
    %988 = vmatpush2.bf16.msra.mxu0 0
    %989 = vmatprep.subr.bf16.mxu0 0
    %990 = vmatpush2.bf16.msra.mxu0 0
    %991 = vmatprep.subr.bf16.mxu0 0
    %992 = vmatpush2.bf16.msra.mxu0 0
    %993 = vmatprep.subr.bf16.mxu0 0
    %994 = vmatpush2.bf16.msra.mxu0 0
    %995 = vmatprep.subr.bf16.mxu0 0
    %996 = vmatpush2.bf16.msra.mxu0 0
    %997 = vmatprep.subr.bf16.mxu0 0
    %998 = vmatpush2.bf16.msra.mxu0 0
    %999 = vmatprep.subr.bf16.mxu0 0
    %1000 = vmatpush2.bf16.msra.mxu0 0
    %1001 = vmatprep.subr.bf16.mxu0 0
    %1002 = vmatpush2.bf16.msra.mxu0 0
    %1003 = vmatprep.mubr.bf16.mxu0 0
    %1004 = vmatmul.mubr.bf16.gmra.mxu0 %v966
    %v1005 = vpop.f32.mrf.mxu0
    %v1006 = vadd.f32 0.0, %v1005
    %v1007 = vpop.f32.mrf.mxu0
    %v1008 = vpop.f32.mrf.mxu0
    %v1009 = vpop.f32.mrf.mxu0
    %1010 = vdwg.mxu0
    %1011 = vrot.lane.b32.xlu0 %v372, 64
    %v1012 = vpop.permute.xlu0 %1011
    %v1014 = vsel %vm380, %v861, 0
    %v1017 = vsel %vm871, %v1012, 0
    %1019 = vmatprep.subr.bf16.mxu0 0
    %1020 = vmatpush1.bf16.msra.mxu0 0
    %1021 = vmatprep.subr.bf16.mxu0 0
    %1022 = vmatpush1.bf16.msra.mxu0 0
    %1023 = vmatprep.subr.bf16.mxu0 0
    %1024 = vmatpush1.bf16.msra.mxu0 0
    %1025 = vmatprep.subr.bf16.mxu0 0
    %1026 = vmatpush1.bf16.msra.mxu0 0
    %1027 = vmatprep.subr.bf16.mxu0 0
    %1028 = vmatpush1.bf16.msra.mxu0 0
    %1029 = vmatprep.subr.bf16.mxu0 0
    %1030 = vmatpush1.bf16.msra.mxu0 0
    %1031 = vmatprep.subr.bf16.mxu0 0
    %1032 = vmatpush1.bf16.msra.mxu0 0
    %1033 = vmatprep.subr.bf16.mxu0 0
    %1034 = vmatpush1.bf16.msra.mxu0 %v1017
    %1035 = vmatprep.subr.bf16.mxu0 0
    %1036 = vmatpush2.bf16.msra.mxu0 0
    %1037 = vmatprep.subr.bf16.mxu0 0
    %1038 = vmatpush2.bf16.msra.mxu0 0
    %1039 = vmatprep.subr.bf16.mxu0 0
    %1040 = vmatpush2.bf16.msra.mxu0 0
    %1041 = vmatprep.subr.bf16.mxu0 0
    %1042 = vmatpush2.bf16.msra.mxu0 0
    %1043 = vmatprep.subr.bf16.mxu0 0
    %1044 = vmatpush2.bf16.msra.mxu0 0
    %1045 = vmatprep.subr.bf16.mxu0 0
    %1046 = vmatpush2.bf16.msra.mxu0 0
    %1047 = vmatprep.subr.bf16.mxu0 0
    %1048 = vmatpush2.bf16.msra.mxu0 0
    %1049 = vmatprep.subr.bf16.mxu0 0
    %1050 = vmatpush2.bf16.msra.mxu0 0
    %1051 = vmatprep.mubr.bf16.mxu0 0
    %1052 = vmatmul.mubr.bf16.gmra.mxu0 %v1014
    %v1053 = vpop.f32.mrf.mxu0
    %v1054 = vadd.f32 0.0, %v1053
    %v1055 = vpop.f32.mrf.mxu0
    %v1056 = vpop.f32.mrf.mxu0
    %v1057 = vpop.f32.mrf.mxu0
    %1058 = vdwg.mxu0
    %1059 = vrot.lane.b32.xlu0 %v373, 64
    %v1060 = vpop.permute.xlu0 %1059
    %v1062 = vsel %vm380, %v862, 0
    %v1065 = vsel %vm871, %v1060, 0
    %1067 = vmatprep.subr.bf16.mxu0 0
    %1068 = vmatpush1.bf16.msra.mxu0 0
    %1069 = vmatprep.subr.bf16.mxu0 0
    %1070 = vmatpush1.bf16.msra.mxu0 0
    %1071 = vmatprep.subr.bf16.mxu0 0
    %1072 = vmatpush1.bf16.msra.mxu0 0
    %1073 = vmatprep.subr.bf16.mxu0 0
    %1074 = vmatpush1.bf16.msra.mxu0 0
    %1075 = vmatprep.subr.bf16.mxu0 0
    %1076 = vmatpush1.bf16.msra.mxu0 0
    %1077 = vmatprep.subr.bf16.mxu0 0
    %1078 = vmatpush1.bf16.msra.mxu0 0
    %1079 = vmatprep.subr.bf16.mxu0 0
    %1080 = vmatpush1.bf16.msra.mxu0 0
    %1081 = vmatprep.subr.bf16.mxu0 0
    %1082 = vmatpush1.bf16.msra.mxu0 %v1065
    %1083 = vmatprep.subr.bf16.mxu0 0
    %1084 = vmatpush2.bf16.msra.mxu0 0
    %1085 = vmatprep.subr.bf16.mxu0 0
    %1086 = vmatpush2.bf16.msra.mxu0 0
    %1087 = vmatprep.subr.bf16.mxu0 0
    %1088 = vmatpush2.bf16.msra.mxu0 0
    %1089 = vmatprep.subr.bf16.mxu0 0
    %1090 = vmatpush2.bf16.msra.mxu0 0
    %1091 = vmatprep.subr.bf16.mxu0 0
    %1092 = vmatpush2.bf16.msra.mxu0 0
    %1093 = vmatprep.subr.bf16.mxu0 0
    %1094 = vmatpush2.bf16.msra.mxu0 0
    %1095 = vmatprep.subr.bf16.mxu0 0
    %1096 = vmatpush2.bf16.msra.mxu0 0
    %1097 = vmatprep.subr.bf16.mxu0 0
    %1098 = vmatpush2.bf16.msra.mxu0 0
    %1099 = vmatprep.mubr.bf16.mxu0 0
    %1100 = vmatmul.mubr.bf16.gmra.mxu0 %v1062
    %v1101 = vpop.f32.mrf.mxu0
    %v1102 = vadd.f32 0.0, %v1101
    %v1103 = vpop.f32.mrf.mxu0
    %v1104 = vpop.f32.mrf.mxu0
    %v1105 = vpop.f32.mrf.mxu0
    %1106 = vdwg.mxu0
    %1107 = vrot.lane.b32.xlu0 %v374, 64
    %v1108 = vpop.permute.xlu0 %1107
    %v1110 = vsel %vm380, %v863, 0
    %v1113 = vsel %vm871, %v1108, 0
    %1115 = vmatprep.subr.bf16.mxu0 0
    %1116 = vmatpush1.bf16.msra.mxu0 0
    %1117 = vmatprep.subr.bf16.mxu0 0
    %1118 = vmatpush1.bf16.msra.mxu0 0
    %1119 = vmatprep.subr.bf16.mxu0 0
    %1120 = vmatpush1.bf16.msra.mxu0 0
    %1121 = vmatprep.subr.bf16.mxu0 0
    %1122 = vmatpush1.bf16.msra.mxu0 0
    %1123 = vmatprep.subr.bf16.mxu0 0
    %1124 = vmatpush1.bf16.msra.mxu0 0
    %1125 = vmatprep.subr.bf16.mxu0 0
    %1126 = vmatpush1.bf16.msra.mxu0 0
    %1127 = vmatprep.subr.bf16.mxu0 0
    %1128 = vmatpush1.bf16.msra.mxu0 0
    %1129 = vmatprep.subr.bf16.mxu0 0
    %1130 = vmatpush1.bf16.msra.mxu0 %v1113
    %1131 = vmatprep.subr.bf16.mxu0 0
    %1132 = vmatpush2.bf16.msra.mxu0 0
    %1133 = vmatprep.subr.bf16.mxu0 0
    %1134 = vmatpush2.bf16.msra.mxu0 0
    %1135 = vmatprep.subr.bf16.mxu0 0
    %1136 = vmatpush2.bf16.msra.mxu0 0
    %1137 = vmatprep.subr.bf16.mxu0 0
    %1138 = vmatpush2.bf16.msra.mxu0 0
    %1139 = vmatprep.subr.bf16.mxu0 0
    %1140 = vmatpush2.bf16.msra.mxu0 0
    %1141 = vmatprep.subr.bf16.mxu0 0
    %1142 = vmatpush2.bf16.msra.mxu0 0
    %1143 = vmatprep.subr.bf16.mxu0 0
    %1144 = vmatpush2.bf16.msra.mxu0 0
    %1145 = vmatprep.subr.bf16.mxu0 0
    %1146 = vmatpush2.bf16.msra.mxu0 0
    %1147 = vmatprep.mubr.bf16.mxu0 0
    %1148 = vmatmul.mubr.bf16.gmra.mxu0 %v1110
    %v1149 = vpop.f32.mrf.mxu0
    %v1150 = vadd.f32 0.0, %v1149
    %v1151 = vpop.f32.mrf.mxu0
    %v1152 = vpop.f32.mrf.mxu0
    %v1153 = vpop.f32.mrf.mxu0
    %1154 = vdwg.mxu0
    %1155 = vrot.lane.b32.xlu0 %v375, 64
    %v1156 = vpop.permute.xlu0 %1155
    %v1158 = vsel %vm380, %v864, 0
    %v1161 = vsel %vm871, %v1156, 0
    %1163 = vmatprep.subr.bf16.mxu0 0
    %1164 = vmatpush1.bf16.msra.mxu0 0
    %1165 = vmatprep.subr.bf16.mxu0 0
    %1166 = vmatpush1.bf16.msra.mxu0 0
    %1167 = vmatprep.subr.bf16.mxu0 0
    %1168 = vmatpush1.bf16.msra.mxu0 0
    %1169 = vmatprep.subr.bf16.mxu0 0
    %1170 = vmatpush1.bf16.msra.mxu0 0
    %1171 = vmatprep.subr.bf16.mxu0 0
    %1172 = vmatpush1.bf16.msra.mxu0 0
    %1173 = vmatprep.subr.bf16.mxu0 0
    %1174 = vmatpush1.bf16.msra.mxu0 0
    %1175 = vmatprep.subr.bf16.mxu0 0
    %1176 = vmatpush1.bf16.msra.mxu0 0
    %1177 = vmatprep.subr.bf16.mxu0 0
    %1178 = vmatpush1.bf16.msra.mxu0 %v1161
    %1179 = vmatprep.subr.bf16.mxu0 0
    %1180 = vmatpush2.bf16.msra.mxu0 0
    %1181 = vmatprep.subr.bf16.mxu0 0
    %1182 = vmatpush2.bf16.msra.mxu0 0
    %1183 = vmatprep.subr.bf16.mxu0 0
    %1184 = vmatpush2.bf16.msra.mxu0 0
    %1185 = vmatprep.subr.bf16.mxu0 0
    %1186 = vmatpush2.bf16.msra.mxu0 0
    %1187 = vmatprep.subr.bf16.mxu0 0
    %1188 = vmatpush2.bf16.msra.mxu0 0
    %1189 = vmatprep.subr.bf16.mxu0 0
    %1190 = vmatpush2.bf16.msra.mxu0 0
    %1191 = vmatprep.subr.bf16.mxu0 0
    %1192 = vmatpush2.bf16.msra.mxu0 0
    %1193 = vmatprep.subr.bf16.mxu0 0
    %1194 = vmatpush2.bf16.msra.mxu0 0
    %1195 = vmatprep.mubr.bf16.mxu0 0
    %1196 = vmatmul.mubr.bf16.gmra.mxu0 %v1158
    %v1197 = vpop.f32.mrf.mxu0
    %v1198 = vadd.f32 0.0, %v1197
    %v1199 = vpop.f32.mrf.mxu0
    %v1200 = vpop.f32.mrf.mxu0
    %v1201 = vpop.f32.mrf.mxu0
    %1202 = vdwg.mxu0
    %1203 = vrot.lane.b32.xlu0 %v376, 64
    %v1204 = vpop.permute.xlu0 %1203
    %v1206 = vsel %vm380, %v865, 0
    %v1209 = vsel %vm871, %v1204, 0
    %1211 = vmatprep.subr.bf16.mxu0 0
    %1212 = vmatpush1.bf16.msra.mxu0 0
    %1213 = vmatprep.subr.bf16.mxu0 0
    %1214 = vmatpush1.bf16.msra.mxu0 0
    %1215 = vmatprep.subr.bf16.mxu0 0
    %1216 = vmatpush1.bf16.msra.mxu0 0
    %1217 = vmatprep.subr.bf16.mxu0 0
    %1218 = vmatpush1.bf16.msra.mxu0 0
    %1219 = vmatprep.subr.bf16.mxu0 0
    %1220 = vmatpush1.bf16.msra.mxu0 0
    %1221 = vmatprep.subr.bf16.mxu0 0
    %1222 = vmatpush1.bf16.msra.mxu0 0
    %1223 = vmatprep.subr.bf16.mxu0 0
    %1224 = vmatpush1.bf16.msra.mxu0 0
    %1225 = vmatprep.subr.bf16.mxu0 0
    %1226 = vmatpush1.bf16.msra.mxu0 %v1209
    %1227 = vmatprep.subr.bf16.mxu0 0
    %1228 = vmatpush2.bf16.msra.mxu0 0
    %1229 = vmatprep.subr.bf16.mxu0 0
    %1230 = vmatpush2.bf16.msra.mxu0 0
    %1231 = vmatprep.subr.bf16.mxu0 0
    %1232 = vmatpush2.bf16.msra.mxu0 0
    %1233 = vmatprep.subr.bf16.mxu0 0
    %1234 = vmatpush2.bf16.msra.mxu0 0
    %1235 = vmatprep.subr.bf16.mxu0 0
    %1236 = vmatpush2.bf16.msra.mxu0 0
    %1237 = vmatprep.subr.bf16.mxu0 0
    %1238 = vmatpush2.bf16.msra.mxu0 0
    %1239 = vmatprep.subr.bf16.mxu0 0
    %1240 = vmatpush2.bf16.msra.mxu0 0
    %1241 = vmatprep.subr.bf16.mxu0 0
    %1242 = vmatpush2.bf16.msra.mxu0 0
    %1243 = vmatprep.mubr.bf16.mxu0 0
    %1244 = vmatmul.mubr.bf16.gmra.mxu0 %v1206
    %v1245 = vpop.f32.mrf.mxu0
    %v1246 = vadd.f32 0.0, %v1245
    %v1247 = vpop.f32.mrf.mxu0
    %v1248 = vpop.f32.mrf.mxu0
    %v1249 = vpop.f32.mrf.mxu0
    %1250 = vdwg.mxu0
    %v1251 = vpack.c.bf16 %v958, %v910
    %v1252 = vpack.c.bf16 %v1054, %v1006
    %v1253 = vpack.c.bf16 %v1150, %v1102
    %v1254 = vpack.c.bf16 %v1246, %v1198
    %v1255 = vld [vmem:[%s5] sm:$0xf]
    %v1256 = vld [vmem:[%s5 + $0x4] sm:$0xf]
    %v1257 = vld [vmem:[%s5 + $0x8] sm:$0xf]
    %v1258 = vld [vmem:[%s5 + $0xc] sm:$0xf]
    %v1260 = vsel %vm380, %v1251, 0
    %v1263 = vsel %vm871, %v1255, 0
    %1265 = vmatprep.subr.bf16.mxu0 0
    %1266 = vmatpush1.bf16.msra.mxu0 0
    %1267 = vmatprep.subr.bf16.mxu0 0
    %1268 = vmatpush1.bf16.msra.mxu0 0
    %1269 = vmatprep.subr.bf16.mxu0 0
    %1270 = vmatpush1.bf16.msra.mxu0 0
    %1271 = vmatprep.subr.bf16.mxu0 0
    %1272 = vmatpush1.bf16.msra.mxu0 0
    %1273 = vmatprep.subr.bf16.mxu0 0
    %1274 = vmatpush1.bf16.msra.mxu0 0
    %1275 = vmatprep.subr.bf16.mxu0 0
    %1276 = vmatpush1.bf16.msra.mxu0 0
    %1277 = vmatprep.subr.bf16.mxu0 0
    %1278 = vmatpush1.bf16.msra.mxu0 0
    %1279 = vmatprep.subr.bf16.mxu0 0
    %1280 = vmatpush1.bf16.msra.mxu0 %v1263
    %1281 = vmatprep.subr.bf16.mxu0 0
    %1282 = vmatpush2.bf16.msra.mxu0 0
    %1283 = vmatprep.subr.bf16.mxu0 0
    %1284 = vmatpush2.bf16.msra.mxu0 0
    %1285 = vmatprep.subr.bf16.mxu0 0
    %1286 = vmatpush2.bf16.msra.mxu0 0
    %1287 = vmatprep.subr.bf16.mxu0 0
    %1288 = vmatpush2.bf16.msra.mxu0 0
    %1289 = vmatprep.subr.bf16.mxu0 0
    %1290 = vmatpush2.bf16.msra.mxu0 0
    %1291 = vmatprep.subr.bf16.mxu0 0
    %1292 = vmatpush2.bf16.msra.mxu0 0
    %1293 = vmatprep.subr.bf16.mxu0 0
    %1294 = vmatpush2.bf16.msra.mxu0 0
    %1295 = vmatprep.subr.bf16.mxu0 0
    %1296 = vmatpush2.bf16.msra.mxu0 0
    %1297 = vmatprep.mubr.bf16.mxu0 0
    %1298 = vmatmul.mubr.bf16.gmra.mxu0 %v1260
    %v1299 = vpop.f32.mrf.mxu0
    %v1300 = vadd.f32 0.0, %v1299
    %v1301 = vpop.f32.mrf.mxu0
    %v1302 = vpop.f32.mrf.mxu0
    %v1303 = vadd.f32 0.0, %v1302
    %v1304 = vpop.f32.mrf.mxu0
    %1305 = vdwg.mxu0
    %v1307 = vsel %vm380, %v1252, 0
    %v1310 = vsel %vm871, %v1256, 0
    %1312 = vmatprep.subr.bf16.mxu0 0
    %1313 = vmatpush1.bf16.msra.mxu0 0
    %1314 = vmatprep.subr.bf16.mxu0 0
    %1315 = vmatpush1.bf16.msra.mxu0 0
    %1316 = vmatprep.subr.bf16.mxu0 0
    %1317 = vmatpush1.bf16.msra.mxu0 0
    %1318 = vmatprep.subr.bf16.mxu0 0
    %1319 = vmatpush1.bf16.msra.mxu0 0
    %1320 = vmatprep.subr.bf16.mxu0 0
    %1321 = vmatpush1.bf16.msra.mxu0 0
    %1322 = vmatprep.subr.bf16.mxu0 0
    %1323 = vmatpush1.bf16.msra.mxu0 0
    %1324 = vmatprep.subr.bf16.mxu0 0
    %1325 = vmatpush1.bf16.msra.mxu0 0
    %1326 = vmatprep.subr.bf16.mxu0 0
    %1327 = vmatpush1.bf16.msra.mxu0 %v1310
    %1328 = vmatprep.subr.bf16.mxu0 0
    %1329 = vmatpush2.bf16.msra.mxu0 0
    %1330 = vmatprep.subr.bf16.mxu0 0
    %1331 = vmatpush2.bf16.msra.mxu0 0
    %1332 = vmatprep.subr.bf16.mxu0 0
    %1333 = vmatpush2.bf16.msra.mxu0 0
    %1334 = vmatprep.subr.bf16.mxu0 0
    %1335 = vmatpush2.bf16.msra.mxu0 0
    %1336 = vmatprep.subr.bf16.mxu0 0
    %1337 = vmatpush2.bf16.msra.mxu0 0
    %1338 = vmatprep.subr.bf16.mxu0 0
    %1339 = vmatpush2.bf16.msra.mxu0 0
    %1340 = vmatprep.subr.bf16.mxu0 0
    %1341 = vmatpush2.bf16.msra.mxu0 0
    %1342 = vmatprep.subr.bf16.mxu0 0
    %1343 = vmatpush2.bf16.msra.mxu0 0
    %1344 = vmatprep.mubr.bf16.mxu0 0
    %1345 = vmatmul.mubr.bf16.gmra.mxu0 %v1307
    %v1346 = vpop.f32.mrf.mxu0
    %v1347 = vadd.f32 0.0, %v1346
    %v1348 = vpop.f32.mrf.mxu0
    %v1349 = vpop.f32.mrf.mxu0
    %v1350 = vadd.f32 0.0, %v1349
    %v1351 = vpop.f32.mrf.mxu0
    %1352 = vdwg.mxu0
    %v1354 = vsel %vm380, %v1253, 0
    %v1357 = vsel %vm871, %v1257, 0
    %1359 = vmatprep.subr.bf16.mxu0 0
    %1360 = vmatpush1.bf16.msra.mxu0 0
    %1361 = vmatprep.subr.bf16.mxu0 0
    %1362 = vmatpush1.bf16.msra.mxu0 0
    %1363 = vmatprep.subr.bf16.mxu0 0
    %1364 = vmatpush1.bf16.msra.mxu0 0
    %1365 = vmatprep.subr.bf16.mxu0 0
    %1366 = vmatpush1.bf16.msra.mxu0 0
    %1367 = vmatprep.subr.bf16.mxu0 0
    %1368 = vmatpush1.bf16.msra.mxu0 0
    %1369 = vmatprep.subr.bf16.mxu0 0
    %1370 = vmatpush1.bf16.msra.mxu0 0
    %1371 = vmatprep.subr.bf16.mxu0 0
    %1372 = vmatpush1.bf16.msra.mxu0 0
    %1373 = vmatprep.subr.bf16.mxu0 0
    %1374 = vmatpush1.bf16.msra.mxu0 %v1357
    %1375 = vmatprep.subr.bf16.mxu0 0
    %1376 = vmatpush2.bf16.msra.mxu0 0
    %1377 = vmatprep.subr.bf16.mxu0 0
    %1378 = vmatpush2.bf16.msra.mxu0 0
    %1379 = vmatprep.subr.bf16.mxu0 0
    %1380 = vmatpush2.bf16.msra.mxu0 0
    %1381 = vmatprep.subr.bf16.mxu0 0
    %1382 = vmatpush2.bf16.msra.mxu0 0
    %1383 = vmatprep.subr.bf16.mxu0 0
    %1384 = vmatpush2.bf16.msra.mxu0 0
    %1385 = vmatprep.subr.bf16.mxu0 0
    %1386 = vmatpush2.bf16.msra.mxu0 0
    %1387 = vmatprep.subr.bf16.mxu0 0
    %1388 = vmatpush2.bf16.msra.mxu0 0
    %1389 = vmatprep.subr.bf16.mxu0 0
    %1390 = vmatpush2.bf16.msra.mxu0 0
    %1391 = vmatprep.mubr.bf16.mxu0 0
    %1392 = vmatmul.mubr.bf16.gmra.mxu0 %v1354
    %v1393 = vpop.f32.mrf.mxu0
    %v1394 = vadd.f32 0.0, %v1393
    %v1395 = vpop.f32.mrf.mxu0
    %v1396 = vpop.f32.mrf.mxu0
    %v1397 = vadd.f32 0.0, %v1396
    %v1398 = vpop.f32.mrf.mxu0
    %1399 = vdwg.mxu0
    %v1401 = vsel %vm380, %v1254, 0
    %v1404 = vsel %vm871, %v1258, 0
    %1406 = vmatprep.subr.bf16.mxu0 0
    %1407 = vmatpush1.bf16.msra.mxu0 0
    %1408 = vmatprep.subr.bf16.mxu0 0
    %1409 = vmatpush1.bf16.msra.mxu0 0
    %1410 = vmatprep.subr.bf16.mxu0 0
    %1411 = vmatpush1.bf16.msra.mxu0 0
    %1412 = vmatprep.subr.bf16.mxu0 0
    %1413 = vmatpush1.bf16.msra.mxu0 0
    %1414 = vmatprep.subr.bf16.mxu0 0
    %1415 = vmatpush1.bf16.msra.mxu0 0
    %1416 = vmatprep.subr.bf16.mxu0 0
    %1417 = vmatpush1.bf16.msra.mxu0 0
    %1418 = vmatprep.subr.bf16.mxu0 0
    %1419 = vmatpush1.bf16.msra.mxu0 0
    %1420 = vmatprep.subr.bf16.mxu0 0
    %1421 = vmatpush1.bf16.msra.mxu0 %v1404
    %1422 = vmatprep.subr.bf16.mxu0 0
    %1423 = vmatpush2.bf16.msra.mxu0 0
    %1424 = vmatprep.subr.bf16.mxu0 0
    %1425 = vmatpush2.bf16.msra.mxu0 0
    %1426 = vmatprep.subr.bf16.mxu0 0
    %1427 = vmatpush2.bf16.msra.mxu0 0
    %1428 = vmatprep.subr.bf16.mxu0 0
    %1429 = vmatpush2.bf16.msra.mxu0 0
    %1430 = vmatprep.subr.bf16.mxu0 0
    %1431 = vmatpush2.bf16.msra.mxu0 0
    %1432 = vmatprep.subr.bf16.mxu0 0
    %1433 = vmatpush2.bf16.msra.mxu0 0
    %1434 = vmatprep.subr.bf16.mxu0 0
    %1435 = vmatpush2.bf16.msra.mxu0 0
    %1436 = vmatprep.subr.bf16.mxu0 0
    %1437 = vmatpush2.bf16.msra.mxu0 0
    %1438 = vmatprep.mubr.bf16.mxu0 0
    %1439 = vmatmul.mubr.bf16.gmra.mxu0 %v1401
    %v1440 = vpop.f32.mrf.mxu0
    %v1441 = vadd.f32 0.0, %v1440
    %v1442 = vpop.f32.mrf.mxu0
    %v1443 = vpop.f32.mrf.mxu0
    %v1444 = vadd.f32 0.0, %v1443
    %v1445 = vpop.f32.mrf.mxu0
    %1446 = vdwg.mxu0
    %v1447 = vsel %vm225, %v1300, 0.0
    %v1448 = vsel %vm225, %v1347, 0.0
    %v1449 = vadd.f32 %v1447, %v1448
    %v1450 = vsel %vm225, %v1394, 0.0
    %v1451 = vadd.f32 %v1449, %v1450
    %v1452 = vsel %vm225, %v1441, 0.0
    %v1453 = vadd.f32 %v1451, %v1452
    %v1454 = vsel %vm225, %v1303, 0.0
    %v1455 = vsel %vm225, %v1350, 0.0
    %v1456 = vadd.f32 %v1454, %v1455
    %v1457 = vsel %vm225, %v1397, 0.0
    %v1458 = vadd.f32 %v1456, %v1457
    %v1459 = vsel %vm225, %v1444, 0.0
    %v1460 = vadd.f32 %v1458, %v1459
    %v1461 = vlaneseq
    %v1462 = vshrl.u32 %v1461, 7
    %v1463 = vsub.s32 1, %v1462
    %v1464 = vrot.slane %v287, %v1463
    %v1465 = vadd.f32 %v1453, %v1464
    %v1466 = vadd.f32 %v1460, %v1464
    %v1467 = vadd.f32 %v1465, %v263
    %v1468 = vadd.f32 %v1466, %v264
    %v1469 = vsel %vm225, %v1467, 0.0
    %1470 = vadd.xlane.f32.xlu0 %v1469
    %v1471 = vpop.xlane.xlu0 %1470
    %v1472 = vsel %vm225, %v1468, 0.0
    %1473 = vadd.xlane.f32.xlu0 %v1472
    %v1474 = vpop.xlane.xlu0 %1473
    %v1475 = vmul.f32 %v1471, %v232
    %v1476 = vmul.f32 %v1474, %v232
    %v1477 = vsub.f32 %v1467, %v1475
    %v1478 = vsub.f32 %v1468, %v1476
    %v1479 = vmul.f32 %v1477, %v1477
    %v1480 = vmul.f32 %v1478, %v1478
    %v1481 = vsel %vm225, %v1479, 0.0
    %1482 = vadd.xlane.f32.xlu0 %v1481
    %v1483 = vpop.xlane.xlu0 %1482
    %v1484 = vsel %vm225, %v1480, 0.0
    %1485 = vadd.xlane.f32.xlu0 %v1484
    %v1486 = vpop.xlane.xlu0 %1485
    %v1487 = vmul.f32 %v1483, %v232
    %v1488 = vmul.f32 %v1486, %v232
    %v1489 = vadd.f32 %v1487, 1e-12
    %v1490 = vadd.f32 %v1488, 1e-12
    %v1491 = vrsqrt.pop %v1489
    %v1492 = vrsqrt.pop %v1490
    %v1493 = vmul.f32 %v1477, %v1491
    %v1494 = vmul.f32 %v1478, %v1492
    %v1495 = vlaneseq
    %v1496 = vshrl.u32 %v1495, 7
    %v1497 = vsub.s32 2, %v1496
    %v1498 = vrot.slane %v287, %v1497
    %v1499 = vmul.f32 %v1493, %v1498
    %v1500 = vmul.f32 %v1494, %v1498
    %v1501 = vlaneseq
    %v1502 = vshrl.u32 %v1501, 7
    %v1503 = vsub.s32 3, %v1502
    %v1504 = vrot.slane %v287, %v1503
    %v1505 = vadd.f32 %v1499, %v1504
    %v1506 = vadd.f32 %v1500, %v1504
    %v1507 = vpack.c.bf16 %v1506, %v1505
    %v1508 = vlaneseq
    %v1509 = vshrl.u32 %v1508, 7
    %v1510 = vsub.s32 4, %v1509
    %v1511 = vrot.slane %v287, %v1510
    %v1512 = vunpack.c.h.b16 %v283
    %v1513 = vunpack.c.h.b16 %v284
    %v1514 = vunpack.c.h.b16 %v285
    %v1515 = vunpack.c.h.b16 %v286
    %v1516 = vpack.c.b16 %v1513, %v1512
    %v1517 = vpack.c.b16 %v1515, %v1514
    %1518 = vrot.lane.b32.xlu0 %v301, 32
    %v1519 = vpop.permute.xlu0 %1518
    %1520 = vrot.lane.b32.xlu0 %v1516, 32
    %v1521 = vpop.permute.xlu0 %1520
    %1522 = vrot.lane.b32.xlu0 %v302, 32
    %v1523 = vpop.permute.xlu0 %1522
    %1524 = vrot.lane.b32.xlu0 %v1517, 32
    %v1525 = vpop.permute.xlu0 %1524
    %vm1526 = vcmask 261120
    %v1527 = vsel %vm1526, %v1519, %v1521
    %v1528 = vsel %vm1526, %v1523, %v1525
    %v1532 = vsel %vm225, %v1507, 0
    %1534 = vmatprep.subr.bf16.mxu0 0
    %1535 = vmatpush1.bf16.msra.mxu0 0
    %1536 = vmatprep.subr.bf16.mxu0 0
    %1537 = vmatpush1.bf16.msra.mxu0 0
    %1538 = vmatprep.subr.bf16.mxu0 0
    %1539 = vmatpush1.bf16.msra.mxu0 0
    %1540 = vmatprep.subr.bf16.mxu0 0
    %1541 = vmatpush1.bf16.msra.mxu0 0
    %1542 = vmatprep.subr.bf16.mxu0 0
    %1543 = vmatpush1.bf16.msra.mxu0 0
    %1544 = vmatprep.subr.bf16.mxu0 0
    %1545 = vmatpush1.bf16.msra.mxu0 0
    %1546 = vmatprep.subr.bf16.mxu0 0
    %1547 = vmatpush1.bf16.msra.mxu0 %v1528
    %1548 = vmatprep.subr.bf16.mxu0 0
    %1549 = vmatpush1.bf16.msra.mxu0 %v1527
    %1550 = vmatprep.subr.bf16.mxu0 0
    %1551 = vmatpush2.bf16.msra.mxu0 0
    %1552 = vmatprep.subr.bf16.mxu0 0
    %1553 = vmatpush2.bf16.msra.mxu0 0
    %1554 = vmatprep.subr.bf16.mxu0 0
    %1555 = vmatpush2.bf16.msra.mxu0 0
    %1556 = vmatprep.subr.bf16.mxu0 0
    %1557 = vmatpush2.bf16.msra.mxu0 0
    %1558 = vmatprep.subr.bf16.mxu0 0
    %1559 = vmatpush2.bf16.msra.mxu0 0
    %1560 = vmatprep.subr.bf16.mxu0 0
    %1561 = vmatpush2.bf16.msra.mxu0 0
    %1562 = vmatprep.subr.bf16.mxu0 0
    %1563 = vmatpush2.bf16.msra.mxu0 0
    %1564 = vmatprep.subr.bf16.mxu0 0
    %1565 = vmatpush2.bf16.msra.mxu0 0
    %1566 = vmatprep.mubr.bf16.mxu0 0
    %1567 = vmatmul.mubr.bf16.gmra.mxu0 %v1532
    %v1568 = vpop.f32.mrf.mxu0
    %v1569 = vadd.f32 %v1511, %v1568
    %v1570 = vpop.f32.mrf.mxu0
    %v1571 = vpop.f32.mrf.mxu0
    %v1572 = vadd.f32 %v1511, %v1571
    %v1573 = vpop.f32.mrf.mxu0
    %1574 = vdwg.mxu0
    %v1575 = vmul.f32 %v1569, %v1569
    %v1576 = vmul.f32 %v1572, %v1572
    %v1577 = vmul.f32 %v1569, 0.5
    %v1578 = vmul.f32 %v1572, 0.5
    %v1579 = vmul.f32 %v1569, 0.044715
    %v1580 = vmul.f32 %v1572, 0.044715
    %v1581 = vmul.f32 %v1579, %v1575
    %v1582 = vmul.f32 %v1580, %v1576
    %v1583 = vadd.f32 %v1569, %v1581
    %v1584 = vadd.f32 %v1572, %v1582
    %v1585 = vmul.f32 %v1583, 0.7978846
    %v1586 = vmul.f32 %v1584, 0.7978846
    %v1587 = vtanh.pop %v1585
    %v1588 = vtanh.pop %v1586
    %v1589 = vadd.f32 %v1587, 1.0
    %v1590 = vadd.f32 %v1588, 1.0
    %v1591 = vmul.f32 %v1577, %v1589
    %v1592 = vmul.f32 %v1578, %v1590
    %v1593 = vld [vmem:[#allocation8] sm:$0xf]
    %v1594 = vld [vmem:[#allocation8 + $0x4] sm:$0xf]
    %v1595 = vld [vmem:[#allocation8 + $0x8] sm:$0xf]
    %v1596 = vld [vmem:[#allocation8 + $0xc] sm:$0xf]
    %v1597 = vld [vmem:[#allocation8 + $0x10] sm:$0xf]
    %v1598 = vld [vmem:[#allocation8 + $0x14] sm:$0xf]
    %v1599 = vld [vmem:[#allocation8 + $0x18] sm:$0xf]
    %v1600 = vld [vmem:[#allocation8 + $0x1c] sm:$0xf]
    %v1601 = vpack.c.bf16 %v1592, %v1591
    %v1602 = vlaneseq
    %v1603 = vshrl.u32 %v1602, 7
    %v1604 = vsub.s32 5, %v1603
    %v1605 = vrot.slane %v287, %v1604
    %v1614 = vunpack.c.l.b16 %v1593
    %v1615 = vunpack.c.l.b16 %v1594
    %v1616 = vunpack.c.l.b16 %v1595
    %v1617 = vunpack.c.l.b16 %v1596
    %v1618 = vunpack.c.l.b16 %v1597
    %v1619 = vunpack.c.l.b16 %v1598
    %v1620 = vunpack.c.l.b16 %v1599
    %v1621 = vunpack.c.l.b16 %v1600
    %v1622 = vpack.c.b16 %v1615, %v1614
    %v1623 = vpack.c.b16 %v1617, %v1616
    %v1624 = vpack.c.b16 %v1619, %v1618
    %v1625 = vpack.c.b16 %v1621, %v1620
    %vm1630 = vcmask 523264
    %v1632 = vsel %vm1630, %v1601, 0
    %1634 = vmatprep.subr.bf16.mxu0 0
    %1635 = vmatpush1.bf16.msra.mxu0 0
    %1636 = vmatprep.subr.bf16.mxu0 0
    %1637 = vmatpush1.bf16.msra.mxu0 0
    %1638 = vmatprep.subr.bf16.mxu0 0
    %1639 = vmatpush1.bf16.msra.mxu0 0
    %1640 = vmatprep.subr.bf16.mxu0 0
    %1641 = vmatpush1.bf16.msra.mxu0 0
    %1642 = vmatprep.subr.bf16.mxu0 0
    %1643 = vmatpush1.bf16.msra.mxu0 %v1625
    %1644 = vmatprep.subr.bf16.mxu0 0
    %1645 = vmatpush1.bf16.msra.mxu0 %v1624
    %1646 = vmatprep.subr.bf16.mxu0 0
    %1647 = vmatpush1.bf16.msra.mxu0 %v1623
    %1648 = vmatprep.subr.bf16.mxu0 0
    %1649 = vmatpush1.bf16.msra.mxu0 %v1622
    %1650 = vmatprep.subr.bf16.mxu0 0
    %1651 = vmatpush2.bf16.msra.mxu0 0
    %1652 = vmatprep.subr.bf16.mxu0 0
    %1653 = vmatpush2.bf16.msra.mxu0 0
    %1654 = vmatprep.subr.bf16.mxu0 0
    %1655 = vmatpush2.bf16.msra.mxu0 0
    %1656 = vmatprep.subr.bf16.mxu0 0
    %1657 = vmatpush2.bf16.msra.mxu0 0
    %1658 = vmatprep.subr.bf16.mxu0 0
    %1659 = vmatpush2.bf16.msra.mxu0 0
    %1660 = vmatprep.subr.bf16.mxu0 0
    %1661 = vmatpush2.bf16.msra.mxu0 0
    %1662 = vmatprep.subr.bf16.mxu0 0
    %1663 = vmatpush2.bf16.msra.mxu0 0
    %1664 = vmatprep.subr.bf16.mxu0 0
    %1665 = vmatpush2.bf16.msra.mxu0 0
    %1666 = vmatprep.mubr.bf16.mxu0 0
    %1667 = vmatmul.mubr.bf16.gmra.mxu0 %v1632
    %v1668 = vpop.f32.mrf.mxu0
    %v1669 = vadd.f32 %v1605, %v1668
    %v1670 = vpop.f32.mrf.mxu0
    %v1671 = vpop.f32.mrf.mxu0
    %v1672 = vadd.f32 %v1605, %v1671
    %v1673 = vpop.f32.mrf.mxu0
    %1674 = vdwg.mxu0
    %v1675 = vadd.f32 %v1669, %v1505
    %v1676 = vadd.f32 %v1672, %v1506
    %v1677 = vsel %vm225, %v1675, 0.0
    %1678 = vadd.xlane.f32.xlu0 %v1677
    %v1679 = vpop.xlane.xlu0 %1678
    %v1680 = vsel %vm225, %v1676, 0.0
    %1681 = vadd.xlane.f32.xlu0 %v1680
    %v1682 = vpop.xlane.xlu0 %1681
    %v1683 = vmul.f32 %v1679, %v232
    %v1684 = vmul.f32 %v1682, %v232
    %v1685 = vsub.f32 %v1675, %v1683
    %v1686 = vsub.f32 %v1676, %v1684
    %v1687 = vmul.f32 %v1685, %v1685
    %v1688 = vmul.f32 %v1686, %v1686
    %v1689 = vsel %vm225, %v1687, 0.0
    %1690 = vadd.xlane.f32.xlu0 %v1689
    %v1691 = vpop.xlane.xlu0 %1690
    %v1692 = vsel %vm225, %v1688, 0.0
    %1693 = vadd.xlane.f32.xlu0 %v1692
    %v1694 = vpop.xlane.xlu0 %1693
    %v1695 = vmul.f32 %v1691, %v232
    %v1696 = vmul.f32 %v1694, %v232
    %v1697 = vadd.f32 %v1695, 1e-12
    %v1698 = vadd.f32 %v1696, 1e-12
    %v1699 = vrsqrt.pop %v1697
    %v1700 = vrsqrt.pop %v1698
    %v1701 = vmul.f32 %v1685, %v1699
    %v1702 = vmul.f32 %v1686, %v1700
    %v1703 = vlaneseq
    %v1704 = vshrl.u32 %v1703, 7
    %v1705 = vsub.s32 6, %v1704
    %v1706 = vrot.slane %v287, %v1705
    %v1707 = vmul.f32 %v1701, %v1706
    %v1708 = vmul.f32 %v1702, %v1706
    %v1709 = vlaneseq
    %v1710 = vshrl.u32 %v1709, 7
    %v1711 = vsub.s32 7, %v1710
    %v1712 = vrot.slane %v287, %v1711
    %v1713 = vadd.f32 %v1707, %v1712
    %v1714 = vadd.f32 %v1708, %v1712
    %s1715 = scalar_lea.vmem [#allocation7], 32
    %v1716 = vld [vmem:[%s1715] sm:$0xff]
    %v1717 = vld [vmem:[%s1715 + $0x8] sm:$0xff]
    %v1718 = vld [vmem:[%s1715 + $0x10] sm:$0xff]
    %v1719 = vld [vmem:[%s1715 + $0x18] sm:$0xff]
    %s1720 = scalar_lea.vmem [#allocation10], 8
    %v1721 = vld [vmem:[%s1720] sm:$0xff]
    %v1722 = vpack.c.bf16 %v1714, %v1713
    %v1723 = vlaneseq
    %v1724 = vshrl.u32 %v1723, 7
    %v1725 = vsub.s32 0, %v1724
    %v1726 = vrot.slane %v1721, %v1725
    %v1731 = vunpack.c.l.b16 %v1716
    %v1732 = vunpack.c.l.b16 %v1717
    %v1733 = vunpack.c.l.b16 %v1718
    %v1734 = vunpack.c.l.b16 %v1719
    %v1735 = vpack.c.b16 %v1732, %v1731
    %v1736 = vpack.c.b16 %v1734, %v1733
    %v1740 = vsel %vm225, %v1722, 0
    %1742 = vmatprep.subr.bf16.mxu0 0
    %1743 = vmatpush1.bf16.msra.mxu0 0
    %1744 = vmatprep.subr.bf16.mxu0 0
    %1745 = vmatpush1.bf16.msra.mxu0 0
    %1746 = vmatprep.subr.bf16.mxu0 0
    %1747 = vmatpush1.bf16.msra.mxu0 0
    %1748 = vmatprep.subr.bf16.mxu0 0
    %1749 = vmatpush1.bf16.msra.mxu0 0
    %1750 = vmatprep.subr.bf16.mxu0 0
    %1751 = vmatpush1.bf16.msra.mxu0 0
    %1752 = vmatprep.subr.bf16.mxu0 0
    %1753 = vmatpush1.bf16.msra.mxu0 0
    %1754 = vmatprep.subr.bf16.mxu0 0
    %1755 = vmatpush1.bf16.msra.mxu0 %v1736
    %1756 = vmatprep.subr.bf16.mxu0 0
    %1757 = vmatpush1.bf16.msra.mxu0 %v1735
    %1758 = vmatprep.subr.bf16.mxu0 0
    %1759 = vmatpush2.bf16.msra.mxu0 0
    %1760 = vmatprep.subr.bf16.mxu0 0
    %1761 = vmatpush2.bf16.msra.mxu0 0
    %1762 = vmatprep.subr.bf16.mxu0 0
    %1763 = vmatpush2.bf16.msra.mxu0 0
    %1764 = vmatprep.subr.bf16.mxu0 0
    %1765 = vmatpush2.bf16.msra.mxu0 0
    %1766 = vmatprep.subr.bf16.mxu0 0
    %1767 = vmatpush2.bf16.msra.mxu0 0
    %1768 = vmatprep.subr.bf16.mxu0 0
    %1769 = vmatpush2.bf16.msra.mxu0 0
    %1770 = vmatprep.subr.bf16.mxu0 0
    %1771 = vmatpush2.bf16.msra.mxu0 0
    %1772 = vmatprep.subr.bf16.mxu0 0
    %1773 = vmatpush2.bf16.msra.mxu0 0
    %1774 = vmatprep.mubr.bf16.mxu0 0
    %1775 = vmatmul.mubr.bf16.gmra.mxu0 %v1740
    %v1776 = vpop.f32.mrf.mxu0
    %v1777 = vadd.f32 %v1726, %v1776
    %v1778 = vpop.f32.mrf.mxu0
    %v1779 = vpop.f32.mrf.mxu0
    %v1780 = vadd.f32 %v1726, %v1779
    %v1781 = vpop.f32.mrf.mxu0
    %1782 = vdwg.mxu0
    %1785 = vrot.lane.b32.xlu0 %v1777, 120
    %v1786 = vpop.permute.xlu0 %1785
    %1787 = vrot.lane.b32.xlu0 %v1780, 120
    %v1788 = vpop.permute.xlu0 %1787
    %1791 = vrot.lane.b32.xlu0 %v1777, 112
    %v1792 = vpop.permute.xlu0 %1791
    %1793 = vrot.lane.b32.xlu0 %v1780, 112
    %v1794 = vpop.permute.xlu0 %1793
    %1797 = vrot.lane.b32.xlu0 %v1777, 104
    %v1798 = vpop.permute.xlu0 %1797
    %1799 = vrot.lane.b32.xlu0 %v1780, 104
    %v1800 = vpop.permute.xlu0 %1799
    %v1803 = vpack.c.bf16 %v1777, %v1777
    %v1804 = vpack.c.bf16 %v1780, %v1780
    %v1805 = vpack.c.bf16 %v1786, %v1786
    %v1806 = vpack.c.bf16 %v1788, %v1788
    %v1807 = vpack.c.bf16 %v1792, %v1792
    %v1808 = vpack.c.bf16 %v1794, %v1794
    %v1809 = vpack.c.bf16 %v1798, %v1798
    %v1810 = vpack.c.bf16 %v1800, %v1800
    %1812 = vrot.lane.b32.xlu0 %v1803, 96
    %v1813 = vpop.permute.xlu0 %1812
    %v1815 = vsel %vm380, %v1803, 0
    %v1818 = vsel %vm380, %v1813, 0
    %1820 = vmatprep.subr.bf16.mxu0 0
    %1821 = vmatpush1.bf16.xpose.msra.mxu0 0
    %1822 = vmatprep.subr.bf16.mxu0 0
    %1823 = vmatpush1.bf16.xpose.msra.mxu0 0
    %1824 = vmatprep.subr.bf16.mxu0 0
    %1825 = vmatpush1.bf16.xpose.msra.mxu0 0
    %1826 = vmatprep.subr.bf16.mxu0 0
    %1827 = vmatpush1.bf16.xpose.msra.mxu0 0
    %1828 = vmatprep.subr.bf16.mxu0 0
    %1829 = vmatpush1.bf16.xpose.msra.mxu0 0
    %1830 = vmatprep.subr.bf16.mxu0 0
    %1831 = vmatpush1.bf16.xpose.msra.mxu0 0
    %1832 = vmatprep.subr.bf16.mxu0 0
    %1833 = vmatpush1.bf16.xpose.msra.mxu0 0
    %1834 = vmatprep.subr.bf16.mxu0 0
    %1835 = vmatpush1.bf16.xpose.msra.mxu0 %v1818
    %1836 = vmatprep.subr.bf16.mxu0 0
    %1837 = vmatpush2.bf16.xpose.msra.mxu0 0
    %1838 = vmatprep.subr.bf16.mxu0 0
    %1839 = vmatpush2.bf16.xpose.msra.mxu0 0
    %1840 = vmatprep.subr.bf16.mxu0 0
    %1841 = vmatpush2.bf16.xpose.msra.mxu0 0
    %1842 = vmatprep.subr.bf16.mxu0 0
    %1843 = vmatpush2.bf16.xpose.msra.mxu0 0
    %1844 = vmatprep.subr.bf16.mxu0 0
    %1845 = vmatpush2.bf16.xpose.msra.mxu0 0
    %1846 = vmatprep.subr.bf16.mxu0 0
    %1847 = vmatpush2.bf16.xpose.msra.mxu0 0
    %1848 = vmatprep.subr.bf16.mxu0 0
    %1849 = vmatpush2.bf16.xpose.msra.mxu0 0
    %1850 = vmatprep.subr.bf16.mxu0 0
    %1851 = vmatpush2.bf16.xpose.msra.mxu0 0
    %1852 = vmatprep.mubr.bf16.mxu0 0
    %1853 = vmatmul.mubr.bf16.gmra.mxu0 %v1815
    %v1854 = vpop.f32.mrf.mxu0
    %v1855 = vadd.f32 %v276, %v1854
    %v1856 = vpop.f32.mrf.mxu0
    %v1857 = vpop.f32.mrf.mxu0
    %v1858 = vpop.f32.mrf.mxu0
    %1859 = vdwg.mxu0
    %1861 = vrot.lane.b32.xlu0 %v1804, 96
    %v1862 = vpop.permute.xlu0 %1861
    %v1864 = vsel %vm380, %v1804, 0
    %v1867 = vsel %vm380, %v1862, 0
    %1869 = vmatprep.subr.bf16.mxu0 0
    %1870 = vmatpush1.bf16.xpose.msra.mxu0 0
    %1871 = vmatprep.subr.bf16.mxu0 0
    %1872 = vmatpush1.bf16.xpose.msra.mxu0 0
    %1873 = vmatprep.subr.bf16.mxu0 0
    %1874 = vmatpush1.bf16.xpose.msra.mxu0 0
    %1875 = vmatprep.subr.bf16.mxu0 0
    %1876 = vmatpush1.bf16.xpose.msra.mxu0 0
    %1877 = vmatprep.subr.bf16.mxu0 0
    %1878 = vmatpush1.bf16.xpose.msra.mxu0 0
    %1879 = vmatprep.subr.bf16.mxu0 0
    %1880 = vmatpush1.bf16.xpose.msra.mxu0 0
    %1881 = vmatprep.subr.bf16.mxu0 0
    %1882 = vmatpush1.bf16.xpose.msra.mxu0 0
    %1883 = vmatprep.subr.bf16.mxu0 0
    %1884 = vmatpush1.bf16.xpose.msra.mxu0 %v1867
    %1885 = vmatprep.subr.bf16.mxu0 0
    %1886 = vmatpush2.bf16.xpose.msra.mxu0 0
    %1887 = vmatprep.subr.bf16.mxu0 0
    %1888 = vmatpush2.bf16.xpose.msra.mxu0 0
    %1889 = vmatprep.subr.bf16.mxu0 0
    %1890 = vmatpush2.bf16.xpose.msra.mxu0 0
    %1891 = vmatprep.subr.bf16.mxu0 0
    %1892 = vmatpush2.bf16.xpose.msra.mxu0 0
    %1893 = vmatprep.subr.bf16.mxu0 0
    %1894 = vmatpush2.bf16.xpose.msra.mxu0 0
    %1895 = vmatprep.subr.bf16.mxu0 0
    %1896 = vmatpush2.bf16.xpose.msra.mxu0 0
    %1897 = vmatprep.subr.bf16.mxu0 0
    %1898 = vmatpush2.bf16.xpose.msra.mxu0 0
    %1899 = vmatprep.subr.bf16.mxu0 0
    %1900 = vmatpush2.bf16.xpose.msra.mxu0 0
    %1901 = vmatprep.mubr.bf16.mxu0 0
    %1902 = vmatmul.mubr.bf16.gmra.mxu0 %v1864
    %v1903 = vpop.f32.mrf.mxu0
    %v1904 = vadd.f32 %v280, %v1903
    %v1905 = vpop.f32.mrf.mxu0
    %v1906 = vpop.f32.mrf.mxu0
    %v1907 = vpop.f32.mrf.mxu0
    %1908 = vdwg.mxu0
    %1910 = vrot.lane.b32.xlu0 %v1805, 96
    %v1911 = vpop.permute.xlu0 %1910
    %v1913 = vsel %vm380, %v1805, 0
    %v1916 = vsel %vm380, %v1911, 0
    %1918 = vmatprep.subr.bf16.mxu0 0
    %1919 = vmatpush1.bf16.xpose.msra.mxu0 0
    %1920 = vmatprep.subr.bf16.mxu0 0
    %1921 = vmatpush1.bf16.xpose.msra.mxu0 0
    %1922 = vmatprep.subr.bf16.mxu0 0
    %1923 = vmatpush1.bf16.xpose.msra.mxu0 0
    %1924 = vmatprep.subr.bf16.mxu0 0
    %1925 = vmatpush1.bf16.xpose.msra.mxu0 0
    %1926 = vmatprep.subr.bf16.mxu0 0
    %1927 = vmatpush1.bf16.xpose.msra.mxu0 0
    %1928 = vmatprep.subr.bf16.mxu0 0
    %1929 = vmatpush1.bf16.xpose.msra.mxu0 0
    %1930 = vmatprep.subr.bf16.mxu0 0
    %1931 = vmatpush1.bf16.xpose.msra.mxu0 0
    %1932 = vmatprep.subr.bf16.mxu0 0
    %1933 = vmatpush1.bf16.xpose.msra.mxu0 %v1916
    %1934 = vmatprep.subr.bf16.mxu0 0
    %1935 = vmatpush2.bf16.xpose.msra.mxu0 0
    %1936 = vmatprep.subr.bf16.mxu0 0
    %1937 = vmatpush2.bf16.xpose.msra.mxu0 0
    %1938 = vmatprep.subr.bf16.mxu0 0
    %1939 = vmatpush2.bf16.xpose.msra.mxu0 0
    %1940 = vmatprep.subr.bf16.mxu0 0
    %1941 = vmatpush2.bf16.xpose.msra.mxu0 0
    %1942 = vmatprep.subr.bf16.mxu0 0
    %1943 = vmatpush2.bf16.xpose.msra.mxu0 0
    %1944 = vmatprep.subr.bf16.mxu0 0
    %1945 = vmatpush2.bf16.xpose.msra.mxu0 0
    %1946 = vmatprep.subr.bf16.mxu0 0
    %1947 = vmatpush2.bf16.xpose.msra.mxu0 0
    %1948 = vmatprep.subr.bf16.mxu0 0
    %1949 = vmatpush2.bf16.xpose.msra.mxu0 0
    %1950 = vmatprep.mubr.bf16.mxu0 0
    %1951 = vmatmul.mubr.bf16.gmra.mxu0 %v1913
    %v1952 = vpop.f32.mrf.mxu0
    %v1953 = vadd.f32 %v276, %v1952
    %v1954 = vpop.f32.mrf.mxu0
    %v1955 = vpop.f32.mrf.mxu0
    %v1956 = vpop.f32.mrf.mxu0
    %1957 = vdwg.mxu0
    %1959 = vrot.lane.b32.xlu0 %v1806, 96
    %v1960 = vpop.permute.xlu0 %1959
    %v1962 = vsel %vm380, %v1806, 0
    %v1965 = vsel %vm380, %v1960, 0
    %1967 = vmatprep.subr.bf16.mxu0 0
    %1968 = vmatpush1.bf16.xpose.msra.mxu0 0
    %1969 = vmatprep.subr.bf16.mxu0 0
    %1970 = vmatpush1.bf16.xpose.msra.mxu0 0
    %1971 = vmatprep.subr.bf16.mxu0 0
    %1972 = vmatpush1.bf16.xpose.msra.mxu0 0
    %1973 = vmatprep.subr.bf16.mxu0 0
    %1974 = vmatpush1.bf16.xpose.msra.mxu0 0
    %1975 = vmatprep.subr.bf16.mxu0 0
    %1976 = vmatpush1.bf16.xpose.msra.mxu0 0
    %1977 = vmatprep.subr.bf16.mxu0 0
    %1978 = vmatpush1.bf16.xpose.msra.mxu0 0
    %1979 = vmatprep.subr.bf16.mxu0 0
    %1980 = vmatpush1.bf16.xpose.msra.mxu0 0
    %1981 = vmatprep.subr.bf16.mxu0 0
    %1982 = vmatpush1.bf16.xpose.msra.mxu0 %v1965
    %1983 = vmatprep.subr.bf16.mxu0 0
    %1984 = vmatpush2.bf16.xpose.msra.mxu0 0
    %1985 = vmatprep.subr.bf16.mxu0 0
    %1986 = vmatpush2.bf16.xpose.msra.mxu0 0
    %1987 = vmatprep.subr.bf16.mxu0 0
    %1988 = vmatpush2.bf16.xpose.msra.mxu0 0
    %1989 = vmatprep.subr.bf16.mxu0 0
    %1990 = vmatpush2.bf16.xpose.msra.mxu0 0
    %1991 = vmatprep.subr.bf16.mxu0 0
    %1992 = vmatpush2.bf16.xpose.msra.mxu0 0
    %1993 = vmatprep.subr.bf16.mxu0 0
    %1994 = vmatpush2.bf16.xpose.msra.mxu0 0
    %1995 = vmatprep.subr.bf16.mxu0 0
    %1996 = vmatpush2.bf16.xpose.msra.mxu0 0
    %1997 = vmatprep.subr.bf16.mxu0 0
    %1998 = vmatpush2.bf16.xpose.msra.mxu0 0
    %1999 = vmatprep.mubr.bf16.mxu0 0
    %2000 = vmatmul.mubr.bf16.gmra.mxu0 %v1962
    %v2001 = vpop.f32.mrf.mxu0
    %v2002 = vadd.f32 %v280, %v2001
    %v2003 = vpop.f32.mrf.mxu0
    %v2004 = vpop.f32.mrf.mxu0
    %v2005 = vpop.f32.mrf.mxu0
    %2006 = vdwg.mxu0
    %2008 = vrot.lane.b32.xlu0 %v1807, 96
    %v2009 = vpop.permute.xlu0 %2008
    %v2011 = vsel %vm380, %v1807, 0
    %v2014 = vsel %vm380, %v2009, 0
    %2016 = vmatprep.subr.bf16.mxu0 0
    %2017 = vmatpush1.bf16.xpose.msra.mxu0 0
    %2018 = vmatprep.subr.bf16.mxu0 0
    %2019 = vmatpush1.bf16.xpose.msra.mxu0 0
    %2020 = vmatprep.subr.bf16.mxu0 0
    %2021 = vmatpush1.bf16.xpose.msra.mxu0 0
    %2022 = vmatprep.subr.bf16.mxu0 0
    %2023 = vmatpush1.bf16.xpose.msra.mxu0 0
    %2024 = vmatprep.subr.bf16.mxu0 0
    %2025 = vmatpush1.bf16.xpose.msra.mxu0 0
    %2026 = vmatprep.subr.bf16.mxu0 0
    %2027 = vmatpush1.bf16.xpose.msra.mxu0 0
    %2028 = vmatprep.subr.bf16.mxu0 0
    %2029 = vmatpush1.bf16.xpose.msra.mxu0 0
    %2030 = vmatprep.subr.bf16.mxu0 0
    %2031 = vmatpush1.bf16.xpose.msra.mxu0 %v2014
    %2032 = vmatprep.subr.bf16.mxu0 0
    %2033 = vmatpush2.bf16.xpose.msra.mxu0 0
    %2034 = vmatprep.subr.bf16.mxu0 0
    %2035 = vmatpush2.bf16.xpose.msra.mxu0 0
    %2036 = vmatprep.subr.bf16.mxu0 0
    %2037 = vmatpush2.bf16.xpose.msra.mxu0 0
    %2038 = vmatprep.subr.bf16.mxu0 0
    %2039 = vmatpush2.bf16.xpose.msra.mxu0 0
    %2040 = vmatprep.subr.bf16.mxu0 0
    %2041 = vmatpush2.bf16.xpose.msra.mxu0 0
    %2042 = vmatprep.subr.bf16.mxu0 0
    %2043 = vmatpush2.bf16.xpose.msra.mxu0 0
    %2044 = vmatprep.subr.bf16.mxu0 0
    %2045 = vmatpush2.bf16.xpose.msra.mxu0 0
    %2046 = vmatprep.subr.bf16.mxu0 0
    %2047 = vmatpush2.bf16.xpose.msra.mxu0 0
    %2048 = vmatprep.mubr.bf16.mxu0 0
    %2049 = vmatmul.mubr.bf16.gmra.mxu0 %v2011
    %v2050 = vpop.f32.mrf.mxu0
    %v2051 = vadd.f32 %v276, %v2050
    %v2052 = vpop.f32.mrf.mxu0
    %v2053 = vpop.f32.mrf.mxu0
    %v2054 = vpop.f32.mrf.mxu0
    %2055 = vdwg.mxu0
    %2057 = vrot.lane.b32.xlu0 %v1808, 96
    %v2058 = vpop.permute.xlu0 %2057
    %v2060 = vsel %vm380, %v1808, 0
    %v2063 = vsel %vm380, %v2058, 0
    %2065 = vmatprep.subr.bf16.mxu0 0
    %2066 = vmatpush1.bf16.xpose.msra.mxu0 0
    %2067 = vmatprep.subr.bf16.mxu0 0
    %2068 = vmatpush1.bf16.xpose.msra.mxu0 0
    %2069 = vmatprep.subr.bf16.mxu0 0
    %2070 = vmatpush1.bf16.xpose.msra.mxu0 0
    %2071 = vmatprep.subr.bf16.mxu0 0
    %2072 = vmatpush1.bf16.xpose.msra.mxu0 0
    %2073 = vmatprep.subr.bf16.mxu0 0
    %2074 = vmatpush1.bf16.xpose.msra.mxu0 0
    %2075 = vmatprep.subr.bf16.mxu0 0
    %2076 = vmatpush1.bf16.xpose.msra.mxu0 0
    %2077 = vmatprep.subr.bf16.mxu0 0
    %2078 = vmatpush1.bf16.xpose.msra.mxu0 0
    %2079 = vmatprep.subr.bf16.mxu0 0
    %2080 = vmatpush1.bf16.xpose.msra.mxu0 %v2063
    %2081 = vmatprep.subr.bf16.mxu0 0
    %2082 = vmatpush2.bf16.xpose.msra.mxu0 0
    %2083 = vmatprep.subr.bf16.mxu0 0
    %2084 = vmatpush2.bf16.xpose.msra.mxu0 0
    %2085 = vmatprep.subr.bf16.mxu0 0
    %2086 = vmatpush2.bf16.xpose.msra.mxu0 0
    %2087 = vmatprep.subr.bf16.mxu0 0
    %2088 = vmatpush2.bf16.xpose.msra.mxu0 0
    %2089 = vmatprep.subr.bf16.mxu0 0
    %2090 = vmatpush2.bf16.xpose.msra.mxu0 0
    %2091 = vmatprep.subr.bf16.mxu0 0
    %2092 = vmatpush2.bf16.xpose.msra.mxu0 0
    %2093 = vmatprep.subr.bf16.mxu0 0
    %2094 = vmatpush2.bf16.xpose.msra.mxu0 0
    %2095 = vmatprep.subr.bf16.mxu0 0
    %2096 = vmatpush2.bf16.xpose.msra.mxu0 0
    %2097 = vmatprep.mubr.bf16.mxu0 0
    %2098 = vmatmul.mubr.bf16.gmra.mxu0 %v2060
    %v2099 = vpop.f32.mrf.mxu0
    %v2100 = vadd.f32 %v280, %v2099
    %v2101 = vpop.f32.mrf.mxu0
    %v2102 = vpop.f32.mrf.mxu0
    %v2103 = vpop.f32.mrf.mxu0
    %2104 = vdwg.mxu0
    %2106 = vrot.lane.b32.xlu0 %v1809, 96
    %v2107 = vpop.permute.xlu0 %2106
    %v2109 = vsel %vm380, %v1809, 0
    %v2112 = vsel %vm380, %v2107, 0
    %2114 = vmatprep.subr.bf16.mxu0 0
    %2115 = vmatpush1.bf16.xpose.msra.mxu0 0
    %2116 = vmatprep.subr.bf16.mxu0 0
    %2117 = vmatpush1.bf16.xpose.msra.mxu0 0
    %2118 = vmatprep.subr.bf16.mxu0 0
    %2119 = vmatpush1.bf16.xpose.msra.mxu0 0
    %2120 = vmatprep.subr.bf16.mxu0 0
    %2121 = vmatpush1.bf16.xpose.msra.mxu0 0
    %2122 = vmatprep.subr.bf16.mxu0 0
    %2123 = vmatpush1.bf16.xpose.msra.mxu0 0
    %2124 = vmatprep.subr.bf16.mxu0 0
    %2125 = vmatpush1.bf16.xpose.msra.mxu0 0
    %2126 = vmatprep.subr.bf16.mxu0 0
    %2127 = vmatpush1.bf16.xpose.msra.mxu0 0
    %2128 = vmatprep.subr.bf16.mxu0 0
    %2129 = vmatpush1.bf16.xpose.msra.mxu0 %v2112
    %2130 = vmatprep.subr.bf16.mxu0 0
    %2131 = vmatpush2.bf16.xpose.msra.mxu0 0
    %2132 = vmatprep.subr.bf16.mxu0 0
    %2133 = vmatpush2.bf16.xpose.msra.mxu0 0
    %2134 = vmatprep.subr.bf16.mxu0 0
    %2135 = vmatpush2.bf16.xpose.msra.mxu0 0
    %2136 = vmatprep.subr.bf16.mxu0 0
    %2137 = vmatpush2.bf16.xpose.msra.mxu0 0
    %2138 = vmatprep.subr.bf16.mxu0 0
    %2139 = vmatpush2.bf16.xpose.msra.mxu0 0
    %2140 = vmatprep.subr.bf16.mxu0 0
    %2141 = vmatpush2.bf16.xpose.msra.mxu0 0
    %2142 = vmatprep.subr.bf16.mxu0 0
    %2143 = vmatpush2.bf16.xpose.msra.mxu0 0
    %2144 = vmatprep.subr.bf16.mxu0 0
    %2145 = vmatpush2.bf16.xpose.msra.mxu0 0
    %2146 = vmatprep.mubr.bf16.mxu0 0
    %2147 = vmatmul.mubr.bf16.gmra.mxu0 %v2109
    %v2148 = vpop.f32.mrf.mxu0
    %v2149 = vadd.f32 %v276, %v2148
    %v2150 = vpop.f32.mrf.mxu0
    %v2151 = vpop.f32.mrf.mxu0
    %v2152 = vpop.f32.mrf.mxu0
    %2153 = vdwg.mxu0
    %2155 = vrot.lane.b32.xlu0 %v1810, 96
    %v2156 = vpop.permute.xlu0 %2155
    %v2158 = vsel %vm380, %v1810, 0
    %v2161 = vsel %vm380, %v2156, 0
    %2163 = vmatprep.subr.bf16.mxu0 0
    %2164 = vmatpush1.bf16.xpose.msra.mxu0 0
    %2165 = vmatprep.subr.bf16.mxu0 0
    %2166 = vmatpush1.bf16.xpose.msra.mxu0 0
    %2167 = vmatprep.subr.bf16.mxu0 0
    %2168 = vmatpush1.bf16.xpose.msra.mxu0 0
    %2169 = vmatprep.subr.bf16.mxu0 0
    %2170 = vmatpush1.bf16.xpose.msra.mxu0 0
    %2171 = vmatprep.subr.bf16.mxu0 0
    %2172 = vmatpush1.bf16.xpose.msra.mxu0 0
    %2173 = vmatprep.subr.bf16.mxu0 0
    %2174 = vmatpush1.bf16.xpose.msra.mxu0 0
    %2175 = vmatprep.subr.bf16.mxu0 0
    %2176 = vmatpush1.bf16.xpose.msra.mxu0 0
    %2177 = vmatprep.subr.bf16.mxu0 0
    %2178 = vmatpush1.bf16.xpose.msra.mxu0 %v2161
    %2179 = vmatprep.subr.bf16.mxu0 0
    %2180 = vmatpush2.bf16.xpose.msra.mxu0 0
    %2181 = vmatprep.subr.bf16.mxu0 0
    %2182 = vmatpush2.bf16.xpose.msra.mxu0 0
    %2183 = vmatprep.subr.bf16.mxu0 0
    %2184 = vmatpush2.bf16.xpose.msra.mxu0 0
    %2185 = vmatprep.subr.bf16.mxu0 0
    %2186 = vmatpush2.bf16.xpose.msra.mxu0 0
    %2187 = vmatprep.subr.bf16.mxu0 0
    %2188 = vmatpush2.bf16.xpose.msra.mxu0 0
    %2189 = vmatprep.subr.bf16.mxu0 0
    %2190 = vmatpush2.bf16.xpose.msra.mxu0 0
    %2191 = vmatprep.subr.bf16.mxu0 0
    %2192 = vmatpush2.bf16.xpose.msra.mxu0 0
    %2193 = vmatprep.subr.bf16.mxu0 0
    %2194 = vmatpush2.bf16.xpose.msra.mxu0 0
    %2195 = vmatprep.mubr.bf16.mxu0 0
    %2196 = vmatmul.mubr.bf16.gmra.mxu0 %v2158
    %v2197 = vpop.f32.mrf.mxu0
    %v2198 = vadd.f32 %v280, %v2197
    %v2199 = vpop.f32.mrf.mxu0
    %v2200 = vpop.f32.mrf.mxu0
    %v2201 = vpop.f32.mrf.mxu0
    %2202 = vdwg.mxu0
    %v2203 = vsel %vm380, %v1855, -inf
    %2204 = vmax.xlane.f32.xlu0 %v2203
    %v2205 = vpop.xlane.xlu0 %2204
    %v2206 = vsel %vm380, %v1904, -inf
    %2207 = vmax.xlane.f32.xlu0 %v2206
    %v2208 = vpop.xlane.xlu0 %2207
    %v2209 = vsel %vm380, %v1953, -inf
    %2210 = vmax.xlane.f32.xlu0 %v2209
    %v2211 = vpop.xlane.xlu0 %2210
    %v2212 = vsel %vm380, %v2002, -inf
    %2213 = vmax.xlane.f32.xlu0 %v2212
    %v2214 = vpop.xlane.xlu0 %2213
    %v2215 = vsel %vm380, %v2051, -inf
    %2216 = vmax.xlane.f32.xlu0 %v2215
    %v2217 = vpop.xlane.xlu0 %2216
    %v2218 = vsel %vm380, %v2100, -inf
    %2219 = vmax.xlane.f32.xlu0 %v2218
    %v2220 = vpop.xlane.xlu0 %2219
    %v2221 = vsel %vm380, %v2149, -inf
    %2222 = vmax.xlane.f32.xlu0 %v2221
    %v2223 = vpop.xlane.xlu0 %2222
    %v2224 = vsel %vm380, %v2198, -inf
    %2225 = vmax.xlane.f32.xlu0 %v2224
    %v2226 = vpop.xlane.xlu0 %2225
    %v2227 = vsub.f32 %v1855, %v2205
    %v2228 = vsub.f32 %v1904, %v2208
    %v2229 = vsub.f32 %v1953, %v2211
    %v2230 = vsub.f32 %v2002, %v2214
    %v2231 = vsub.f32 %v2051, %v2217
    %v2232 = vsub.f32 %v2100, %v2220
    %v2233 = vsub.f32 %v2149, %v2223
    %v2234 = vsub.f32 %v2198, %v2226
    %v2235 = vmul.f32 %v2227, 1.442695
    %v2236 = vpow.pop %v2235
    %v2237 = vmul.f32 %v2228, 1.442695
    %v2238 = vpow.pop %v2237
    %v2239 = vmul.f32 %v2229, 1.442695
    %v2240 = vpow.pop %v2239
    %v2241 = vmul.f32 %v2230, 1.442695
    %v2242 = vpow.pop %v2241
    %v2243 = vmul.f32 %v2231, 1.442695
    %v2244 = vpow.pop %v2243
    %v2245 = vmul.f32 %v2232, 1.442695
    %v2246 = vpow.pop %v2245
    %v2247 = vmul.f32 %v2233, 1.442695
    %v2248 = vpow.pop %v2247
    %v2249 = vmul.f32 %v2234, 1.442695
    %v2250 = vpow.pop %v2249
    %v2251 = vsel %vm380, %v2236, 0.0
    %2252 = vadd.xlane.f32.xlu0 %v2251
    %v2253 = vpop.xlane.xlu0 %2252
    %v2254 = vsel %vm380, %v2238, 0.0
    %2255 = vadd.xlane.f32.xlu0 %v2254
    %v2256 = vpop.xlane.xlu0 %2255
    %v2257 = vsel %vm380, %v2240, 0.0
    %2258 = vadd.xlane.f32.xlu0 %v2257
    %v2259 = vpop.xlane.xlu0 %2258
    %v2260 = vsel %vm380, %v2242, 0.0
    %2261 = vadd.xlane.f32.xlu0 %v2260
    %v2262 = vpop.xlane.xlu0 %2261
    %v2263 = vsel %vm380, %v2244, 0.0
    %2264 = vadd.xlane.f32.xlu0 %v2263
    %v2265 = vpop.xlane.xlu0 %2264
    %v2266 = vsel %vm380, %v2246, 0.0
    %2267 = vadd.xlane.f32.xlu0 %v2266
    %v2268 = vpop.xlane.xlu0 %2267
    %v2269 = vsel %vm380, %v2248, 0.0
    %2270 = vadd.xlane.f32.xlu0 %v2269
    %v2271 = vpop.xlane.xlu0 %2270
    %v2272 = vsel %vm380, %v2250, 0.0
    %2273 = vadd.xlane.f32.xlu0 %v2272
    %v2274 = vpop.xlane.xlu0 %2273
    %v2275 = vrcp.pop %v2253
    %v2276 = vrcp.pop %v2256
    %v2277 = vrcp.pop %v2259
    %v2278 = vrcp.pop %v2262
    %v2279 = vrcp.pop %v2265
    %v2280 = vrcp.pop %v2268
    %v2281 = vrcp.pop %v2271
    %v2282 = vrcp.pop %v2274
    %v2283 = vmul.f32 %v2236, %v2275
    %v2284 = vmul.f32 %v2238, %v2276
    %v2285 = vmul.f32 %v2240, %v2277
    %v2286 = vmul.f32 %v2242, %v2278
    %v2287 = vmul.f32 %v2244, %v2279
    %v2288 = vmul.f32 %v2246, %v2280
    %v2289 = vmul.f32 %v2248, %v2281
    %v2290 = vmul.f32 %v2250, %v2282
    %v2291 = vpack.c.bf16 %v2283, %v2283
    %v2292 = vpack.c.bf16 %v2284, %v2284
    %v2293 = vpack.c.bf16 %v2285, %v2285
    %v2294 = vpack.c.bf16 %v2286, %v2286
    %v2295 = vpack.c.bf16 %v2287, %v2287
    %v2296 = vpack.c.bf16 %v2288, %v2288
    %v2297 = vpack.c.bf16 %v2289, %v2289
    %v2298 = vpack.c.bf16 %v2290, %v2290
    %2299 = vrot.lane.b32.xlu0 %v1803, 64
    %v2300 = vpop.permute.xlu0 %2299
    %v2302 = vsel %vm380, %v2291, 0
    %v2305 = vsel %vm871, %v2300, 0
    %2307 = vmatprep.subr.bf16.mxu0 0
    %2308 = vmatpush1.bf16.msra.mxu0 0
    %2309 = vmatprep.subr.bf16.mxu0 0
    %2310 = vmatpush1.bf16.msra.mxu0 0
    %2311 = vmatprep.subr.bf16.mxu0 0
    %2312 = vmatpush1.bf16.msra.mxu0 0
    %2313 = vmatprep.subr.bf16.mxu0 0
    %2314 = vmatpush1.bf16.msra.mxu0 0
    %2315 = vmatprep.subr.bf16.mxu0 0
    %2316 = vmatpush1.bf16.msra.mxu0 0
    %2317 = vmatprep.subr.bf16.mxu0 0
    %2318 = vmatpush1.bf16.msra.mxu0 0
    %2319 = vmatprep.subr.bf16.mxu0 0
    %2320 = vmatpush1.bf16.msra.mxu0 0
    %2321 = vmatprep.subr.bf16.mxu0 0
    %2322 = vmatpush1.bf16.msra.mxu0 %v2305
    %2323 = vmatprep.subr.bf16.mxu0 0
    %2324 = vmatpush2.bf16.msra.mxu0 0
    %2325 = vmatprep.subr.bf16.mxu0 0
    %2326 = vmatpush2.bf16.msra.mxu0 0
    %2327 = vmatprep.subr.bf16.mxu0 0
    %2328 = vmatpush2.bf16.msra.mxu0 0
    %2329 = vmatprep.subr.bf16.mxu0 0
    %2330 = vmatpush2.bf16.msra.mxu0 0
    %2331 = vmatprep.subr.bf16.mxu0 0
    %2332 = vmatpush2.bf16.msra.mxu0 0
    %2333 = vmatprep.subr.bf16.mxu0 0
    %2334 = vmatpush2.bf16.msra.mxu0 0
    %2335 = vmatprep.subr.bf16.mxu0 0
    %2336 = vmatpush2.bf16.msra.mxu0 0
    %2337 = vmatprep.subr.bf16.mxu0 0
    %2338 = vmatpush2.bf16.msra.mxu0 0
    %2339 = vmatprep.mubr.bf16.mxu0 0
    %2340 = vmatmul.mubr.bf16.gmra.mxu0 %v2302
    %v2341 = vpop.f32.mrf.mxu0
    %v2342 = vadd.f32 0.0, %v2341
    %v2343 = vpop.f32.mrf.mxu0
    %v2344 = vpop.f32.mrf.mxu0
    %v2345 = vpop.f32.mrf.mxu0
    %2346 = vdwg.mxu0
    %2347 = vrot.lane.b32.xlu0 %v1804, 64
    %v2348 = vpop.permute.xlu0 %2347
    %v2350 = vsel %vm380, %v2292, 0
    %v2353 = vsel %vm871, %v2348, 0
    %2355 = vmatprep.subr.bf16.mxu0 0
    %2356 = vmatpush1.bf16.msra.mxu0 0
    %2357 = vmatprep.subr.bf16.mxu0 0
    %2358 = vmatpush1.bf16.msra.mxu0 0
    %2359 = vmatprep.subr.bf16.mxu0 0
    %2360 = vmatpush1.bf16.msra.mxu0 0
    %2361 = vmatprep.subr.bf16.mxu0 0
    %2362 = vmatpush1.bf16.msra.mxu0 0
    %2363 = vmatprep.subr.bf16.mxu0 0
    %2364 = vmatpush1.bf16.msra.mxu0 0
    %2365 = vmatprep.subr.bf16.mxu0 0
    %2366 = vmatpush1.bf16.msra.mxu0 0
    %2367 = vmatprep.subr.bf16.mxu0 0
    %2368 = vmatpush1.bf16.msra.mxu0 0
    %2369 = vmatprep.subr.bf16.mxu0 0
    %2370 = vmatpush1.bf16.msra.mxu0 %v2353
    %2371 = vmatprep.subr.bf16.mxu0 0
    %2372 = vmatpush2.bf16.msra.mxu0 0
    %2373 = vmatprep.subr.bf16.mxu0 0
    %2374 = vmatpush2.bf16.msra.mxu0 0
    %2375 = vmatprep.subr.bf16.mxu0 0
    %2376 = vmatpush2.bf16.msra.mxu0 0
    %2377 = vmatprep.subr.bf16.mxu0 0
    %2378 = vmatpush2.bf16.msra.mxu0 0
    %2379 = vmatprep.subr.bf16.mxu0 0
    %2380 = vmatpush2.bf16.msra.mxu0 0
    %2381 = vmatprep.subr.bf16.mxu0 0
    %2382 = vmatpush2.bf16.msra.mxu0 0
    %2383 = vmatprep.subr.bf16.mxu0 0
    %2384 = vmatpush2.bf16.msra.mxu0 0
    %2385 = vmatprep.subr.bf16.mxu0 0
    %2386 = vmatpush2.bf16.msra.mxu0 0
    %2387 = vmatprep.mubr.bf16.mxu0 0
    %2388 = vmatmul.mubr.bf16.gmra.mxu0 %v2350
    %v2389 = vpop.f32.mrf.mxu0
    %v2390 = vadd.f32 0.0, %v2389
    %v2391 = vpop.f32.mrf.mxu0
    %v2392 = vpop.f32.mrf.mxu0
    %v2393 = vpop.f32.mrf.mxu0
    %2394 = vdwg.mxu0
    %2395 = vrot.lane.b32.xlu0 %v1805, 64
    %v2396 = vpop.permute.xlu0 %2395
    %v2398 = vsel %vm380, %v2293, 0
    %v2401 = vsel %vm871, %v2396, 0
    %2403 = vmatprep.subr.bf16.mxu0 0
    %2404 = vmatpush1.bf16.msra.mxu0 0
    %2405 = vmatprep.subr.bf16.mxu0 0
    %2406 = vmatpush1.bf16.msra.mxu0 0
    %2407 = vmatprep.subr.bf16.mxu0 0
    %2408 = vmatpush1.bf16.msra.mxu0 0
    %2409 = vmatprep.subr.bf16.mxu0 0
    %2410 = vmatpush1.bf16.msra.mxu0 0
    %2411 = vmatprep.subr.bf16.mxu0 0
    %2412 = vmatpush1.bf16.msra.mxu0 0
    %2413 = vmatprep.subr.bf16.mxu0 0
    %2414 = vmatpush1.bf16.msra.mxu0 0
    %2415 = vmatprep.subr.bf16.mxu0 0
    %2416 = vmatpush1.bf16.msra.mxu0 0
    %2417 = vmatprep.subr.bf16.mxu0 0
    %2418 = vmatpush1.bf16.msra.mxu0 %v2401
    %2419 = vmatprep.subr.bf16.mxu0 0
    %2420 = vmatpush2.bf16.msra.mxu0 0
    %2421 = vmatprep.subr.bf16.mxu0 0
    %2422 = vmatpush2.bf16.msra.mxu0 0
    %2423 = vmatprep.subr.bf16.mxu0 0
    %2424 = vmatpush2.bf16.msra.mxu0 0
    %2425 = vmatprep.subr.bf16.mxu0 0
    %2426 = vmatpush2.bf16.msra.mxu0 0
    %2427 = vmatprep.subr.bf16.mxu0 0
    %2428 = vmatpush2.bf16.msra.mxu0 0
    %2429 = vmatprep.subr.bf16.mxu0 0
    %2430 = vmatpush2.bf16.msra.mxu0 0
    %2431 = vmatprep.subr.bf16.mxu0 0
    %2432 = vmatpush2.bf16.msra.mxu0 0
    %2433 = vmatprep.subr.bf16.mxu0 0
    %2434 = vmatpush2.bf16.msra.mxu0 0
    %2435 = vmatprep.mubr.bf16.mxu0 0
    %2436 = vmatmul.mubr.bf16.gmra.mxu0 %v2398
    %v2437 = vpop.f32.mrf.mxu0
    %v2438 = vadd.f32 0.0, %v2437
    %v2439 = vpop.f32.mrf.mxu0
    %v2440 = vpop.f32.mrf.mxu0
    %v2441 = vpop.f32.mrf.mxu0
    %2442 = vdwg.mxu0
    %2443 = vrot.lane.b32.xlu0 %v1806, 64
    %v2444 = vpop.permute.xlu0 %2443
    %v2446 = vsel %vm380, %v2294, 0
    %v2449 = vsel %vm871, %v2444, 0
    %2451 = vmatprep.subr.bf16.mxu0 0
    %2452 = vmatpush1.bf16.msra.mxu0 0
    %2453 = vmatprep.subr.bf16.mxu0 0
    %2454 = vmatpush1.bf16.msra.mxu0 0
    %2455 = vmatprep.subr.bf16.mxu0 0
    %2456 = vmatpush1.bf16.msra.mxu0 0
    %2457 = vmatprep.subr.bf16.mxu0 0
    %2458 = vmatpush1.bf16.msra.mxu0 0
    %2459 = vmatprep.subr.bf16.mxu0 0
    %2460 = vmatpush1.bf16.msra.mxu0 0
    %2461 = vmatprep.subr.bf16.mxu0 0
    %2462 = vmatpush1.bf16.msra.mxu0 0
    %2463 = vmatprep.subr.bf16.mxu0 0
    %2464 = vmatpush1.bf16.msra.mxu0 0
    %2465 = vmatprep.subr.bf16.mxu0 0
    %2466 = vmatpush1.bf16.msra.mxu0 %v2449
    %2467 = vmatprep.subr.bf16.mxu0 0
    %2468 = vmatpush2.bf16.msra.mxu0 0
    %2469 = vmatprep.subr.bf16.mxu0 0
    %2470 = vmatpush2.bf16.msra.mxu0 0
    %2471 = vmatprep.subr.bf16.mxu0 0
    %2472 = vmatpush2.bf16.msra.mxu0 0
    %2473 = vmatprep.subr.bf16.mxu0 0
    %2474 = vmatpush2.bf16.msra.mxu0 0
    %2475 = vmatprep.subr.bf16.mxu0 0
    %2476 = vmatpush2.bf16.msra.mxu0 0
    %2477 = vmatprep.subr.bf16.mxu0 0
    %2478 = vmatpush2.bf16.msra.mxu0 0
    %2479 = vmatprep.subr.bf16.mxu0 0
    %2480 = vmatpush2.bf16.msra.mxu0 0
    %2481 = vmatprep.subr.bf16.mxu0 0
    %2482 = vmatpush2.bf16.msra.mxu0 0
    %2483 = vmatprep.mubr.bf16.mxu0 0
    %2484 = vmatmul.mubr.bf16.gmra.mxu0 %v2446
    %v2485 = vpop.f32.mrf.mxu0
    %v2486 = vadd.f32 0.0, %v2485
    %v2487 = vpop.f32.mrf.mxu0
    %v2488 = vpop.f32.mrf.mxu0
    %v2489 = vpop.f32.mrf.mxu0
    %2490 = vdwg.mxu0
    %2491 = vrot.lane.b32.xlu0 %v1807, 64
    %v2492 = vpop.permute.xlu0 %2491
    %v2494 = vsel %vm380, %v2295, 0
    %v2497 = vsel %vm871, %v2492, 0
    %2499 = vmatprep.subr.bf16.mxu0 0
    %2500 = vmatpush1.bf16.msra.mxu0 0
    %2501 = vmatprep.subr.bf16.mxu0 0
    %2502 = vmatpush1.bf16.msra.mxu0 0
    %2503 = vmatprep.subr.bf16.mxu0 0
    %2504 = vmatpush1.bf16.msra.mxu0 0
    %2505 = vmatprep.subr.bf16.mxu0 0
    %2506 = vmatpush1.bf16.msra.mxu0 0
    %2507 = vmatprep.subr.bf16.mxu0 0
    %2508 = vmatpush1.bf16.msra.mxu0 0
    %2509 = vmatprep.subr.bf16.mxu0 0
    %2510 = vmatpush1.bf16.msra.mxu0 0
    %2511 = vmatprep.subr.bf16.mxu0 0
    %2512 = vmatpush1.bf16.msra.mxu0 0
    %2513 = vmatprep.subr.bf16.mxu0 0
    %2514 = vmatpush1.bf16.msra.mxu0 %v2497
    %2515 = vmatprep.subr.bf16.mxu0 0
    %2516 = vmatpush2.bf16.msra.mxu0 0
    %2517 = vmatprep.subr.bf16.mxu0 0
    %2518 = vmatpush2.bf16.msra.mxu0 0
    %2519 = vmatprep.subr.bf16.mxu0 0
    %2520 = vmatpush2.bf16.msra.mxu0 0
    %2521 = vmatprep.subr.bf16.mxu0 0
    %2522 = vmatpush2.bf16.msra.mxu0 0
    %2523 = vmatprep.subr.bf16.mxu0 0
    %2524 = vmatpush2.bf16.msra.mxu0 0
    %2525 = vmatprep.subr.bf16.mxu0 0
    %2526 = vmatpush2.bf16.msra.mxu0 0
    %2527 = vmatprep.subr.bf16.mxu0 0
    %2528 = vmatpush2.bf16.msra.mxu0 0
    %2529 = vmatprep.subr.bf16.mxu0 0
    %2530 = vmatpush2.bf16.msra.mxu0 0
    %2531 = vmatprep.mubr.bf16.mxu0 0
    %2532 = vmatmul.mubr.bf16.gmra.mxu0 %v2494
    %v2533 = vpop.f32.mrf.mxu0
    %v2534 = vadd.f32 0.0, %v2533
    %v2535 = vpop.f32.mrf.mxu0
    %v2536 = vpop.f32.mrf.mxu0
    %v2537 = vpop.f32.mrf.mxu0
    %2538 = vdwg.mxu0
    %2539 = vrot.lane.b32.xlu0 %v1808, 64
    %v2540 = vpop.permute.xlu0 %2539
    %v2542 = vsel %vm380, %v2296, 0
    %v2545 = vsel %vm871, %v2540, 0
    %2547 = vmatprep.subr.bf16.mxu0 0
    %2548 = vmatpush1.bf16.msra.mxu0 0
    %2549 = vmatprep.subr.bf16.mxu0 0
    %2550 = vmatpush1.bf16.msra.mxu0 0
    %2551 = vmatprep.subr.bf16.mxu0 0
    %2552 = vmatpush1.bf16.msra.mxu0 0
    %2553 = vmatprep.subr.bf16.mxu0 0
    %2554 = vmatpush1.bf16.msra.mxu0 0
    %2555 = vmatprep.subr.bf16.mxu0 0
    %2556 = vmatpush1.bf16.msra.mxu0 0
    %2557 = vmatprep.subr.bf16.mxu0 0
    %2558 = vmatpush1.bf16.msra.mxu0 0
    %2559 = vmatprep.subr.bf16.mxu0 0
    %2560 = vmatpush1.bf16.msra.mxu0 0
    %2561 = vmatprep.subr.bf16.mxu0 0
    %2562 = vmatpush1.bf16.msra.mxu0 %v2545
    %2563 = vmatprep.subr.bf16.mxu0 0
    %2564 = vmatpush2.bf16.msra.mxu0 0
    %2565 = vmatprep.subr.bf16.mxu0 0
    %2566 = vmatpush2.bf16.msra.mxu0 0
    %2567 = vmatprep.subr.bf16.mxu0 0
    %2568 = vmatpush2.bf16.msra.mxu0 0
    %2569 = vmatprep.subr.bf16.mxu0 0
    %2570 = vmatpush2.bf16.msra.mxu0 0
    %2571 = vmatprep.subr.bf16.mxu0 0
    %2572 = vmatpush2.bf16.msra.mxu0 0
    %2573 = vmatprep.subr.bf16.mxu0 0
    %2574 = vmatpush2.bf16.msra.mxu0 0
    %2575 = vmatprep.subr.bf16.mxu0 0
    %2576 = vmatpush2.bf16.msra.mxu0 0
    %2577 = vmatprep.subr.bf16.mxu0 0
    %2578 = vmatpush2.bf16.msra.mxu0 0
    %2579 = vmatprep.mubr.bf16.mxu0 0
    %2580 = vmatmul.mubr.bf16.gmra.mxu0 %v2542
    %v2581 = vpop.f32.mrf.mxu0
    %v2582 = vadd.f32 0.0, %v2581
    %v2583 = vpop.f32.mrf.mxu0
    %v2584 = vpop.f32.mrf.mxu0
    %v2585 = vpop.f32.mrf.mxu0
    %2586 = vdwg.mxu0
    %2587 = vrot.lane.b32.xlu0 %v1809, 64
    %v2588 = vpop.permute.xlu0 %2587
    %v2590 = vsel %vm380, %v2297, 0
    %v2593 = vsel %vm871, %v2588, 0
    %2595 = vmatprep.subr.bf16.mxu0 0
    %2596 = vmatpush1.bf16.msra.mxu0 0
    %2597 = vmatprep.subr.bf16.mxu0 0
    %2598 = vmatpush1.bf16.msra.mxu0 0
    %2599 = vmatprep.subr.bf16.mxu0 0
    %2600 = vmatpush1.bf16.msra.mxu0 0
    %2601 = vmatprep.subr.bf16.mxu0 0
    %2602 = vmatpush1.bf16.msra.mxu0 0
    %2603 = vmatprep.subr.bf16.mxu0 0
    %2604 = vmatpush1.bf16.msra.mxu0 0
    %2605 = vmatprep.subr.bf16.mxu0 0
    %2606 = vmatpush1.bf16.msra.mxu0 0
    %2607 = vmatprep.subr.bf16.mxu0 0
    %2608 = vmatpush1.bf16.msra.mxu0 0
    %2609 = vmatprep.subr.bf16.mxu0 0
    %2610 = vmatpush1.bf16.msra.mxu0 %v2593
    %2611 = vmatprep.subr.bf16.mxu0 0
    %2612 = vmatpush2.bf16.msra.mxu0 0
    %2613 = vmatprep.subr.bf16.mxu0 0
    %2614 = vmatpush2.bf16.msra.mxu0 0
    %2615 = vmatprep.subr.bf16.mxu0 0
    %2616 = vmatpush2.bf16.msra.mxu0 0
    %2617 = vmatprep.subr.bf16.mxu0 0
    %2618 = vmatpush2.bf16.msra.mxu0 0
    %2619 = vmatprep.subr.bf16.mxu0 0
    %2620 = vmatpush2.bf16.msra.mxu0 0
    %2621 = vmatprep.subr.bf16.mxu0 0
    %2622 = vmatpush2.bf16.msra.mxu0 0
    %2623 = vmatprep.subr.bf16.mxu0 0
    %2624 = vmatpush2.bf16.msra.mxu0 0
    %2625 = vmatprep.subr.bf16.mxu0 0
    %2626 = vmatpush2.bf16.msra.mxu0 0
    %2627 = vmatprep.mubr.bf16.mxu0 0
    %2628 = vmatmul.mubr.bf16.gmra.mxu0 %v2590
    %v2629 = vpop.f32.mrf.mxu0
    %v2630 = vadd.f32 0.0, %v2629
    %v2631 = vpop.f32.mrf.mxu0
    %v2632 = vpop.f32.mrf.mxu0
    %v2633 = vpop.f32.mrf.mxu0
    %2634 = vdwg.mxu0
    %2635 = vrot.lane.b32.xlu0 %v1810, 64
    %v2636 = vpop.permute.xlu0 %2635
    %v2638 = vsel %vm380, %v2298, 0
    %v2641 = vsel %vm871, %v2636, 0
    %2643 = vmatprep.subr.bf16.mxu0 0
    %2644 = vmatpush1.bf16.msra.mxu0 0
    %2645 = vmatprep.subr.bf16.mxu0 0
    %2646 = vmatpush1.bf16.msra.mxu0 0
    %2647 = vmatprep.subr.bf16.mxu0 0
    %2648 = vmatpush1.bf16.msra.mxu0 0
    %2649 = vmatprep.subr.bf16.mxu0 0
    %2650 = vmatpush1.bf16.msra.mxu0 0
    %2651 = vmatprep.subr.bf16.mxu0 0
    %2652 = vmatpush1.bf16.msra.mxu0 0
    %2653 = vmatprep.subr.bf16.mxu0 0
    %2654 = vmatpush1.bf16.msra.mxu0 0
    %2655 = vmatprep.subr.bf16.mxu0 0
    %2656 = vmatpush1.bf16.msra.mxu0 0
    %2657 = vmatprep.subr.bf16.mxu0 0
    %2658 = vmatpush1.bf16.msra.mxu0 %v2641
    %2659 = vmatprep.subr.bf16.mxu0 0
    %2660 = vmatpush2.bf16.msra.mxu0 0
    %2661 = vmatprep.subr.bf16.mxu0 0
    %2662 = vmatpush2.bf16.msra.mxu0 0
    %2663 = vmatprep.subr.bf16.mxu0 0
    %2664 = vmatpush2.bf16.msra.mxu0 0
    %2665 = vmatprep.subr.bf16.mxu0 0
    %2666 = vmatpush2.bf16.msra.mxu0 0
    %2667 = vmatprep.subr.bf16.mxu0 0
    %2668 = vmatpush2.bf16.msra.mxu0 0
    %2669 = vmatprep.subr.bf16.mxu0 0
    %2670 = vmatpush2.bf16.msra.mxu0 0
    %2671 = vmatprep.subr.bf16.mxu0 0
    %2672 = vmatpush2.bf16.msra.mxu0 0
    %2673 = vmatprep.subr.bf16.mxu0 0
    %2674 = vmatpush2.bf16.msra.mxu0 0
    %2675 = vmatprep.mubr.bf16.mxu0 0
    %2676 = vmatmul.mubr.bf16.gmra.mxu0 %v2638
    %v2677 = vpop.f32.mrf.mxu0
    %v2678 = vadd.f32 0.0, %v2677
    %v2679 = vpop.f32.mrf.mxu0
    %v2680 = vpop.f32.mrf.mxu0
    %v2681 = vpop.f32.mrf.mxu0
    %2682 = vdwg.mxu0
    %v2683 = vpack.c.bf16 %v2390, %v2342
    %v2684 = vpack.c.bf16 %v2486, %v2438
    %v2685 = vpack.c.bf16 %v2582, %v2534
    %v2686 = vpack.c.bf16 %v2678, %v2630
    %s2687 = scalar_lea.vmem %s5, 16
    %v2688 = vld [vmem:[%s2687] sm:$0xf]
    %v2689 = vld [vmem:[%s2687 + $0x4] sm:$0xf]
    %v2690 = vld [vmem:[%s2687 + $0x8] sm:$0xf]
    %v2691 = vld [vmem:[%s2687 + $0xc] sm:$0xf]
    %v2693 = vsel %vm380, %v2683, 0
    %v2696 = vsel %vm871, %v2688, 0
    %2698 = vmatprep.subr.bf16.mxu0 0
    %2699 = vmatpush1.bf16.msra.mxu0 0
    %2700 = vmatprep.subr.bf16.mxu0 0
    %2701 = vmatpush1.bf16.msra.mxu0 0
    %2702 = vmatprep.subr.bf16.mxu0 0
    %2703 = vmatpush1.bf16.msra.mxu0 0
    %2704 = vmatprep.subr.bf16.mxu0 0
    %2705 = vmatpush1.bf16.msra.mxu0 0
    %2706 = vmatprep.subr.bf16.mxu0 0
    %2707 = vmatpush1.bf16.msra.mxu0 0
    %2708 = vmatprep.subr.bf16.mxu0 0
    %2709 = vmatpush1.bf16.msra.mxu0 0
    %2710 = vmatprep.subr.bf16.mxu0 0
    %2711 = vmatpush1.bf16.msra.mxu0 0
    %2712 = vmatprep.subr.bf16.mxu0 0
    %2713 = vmatpush1.bf16.msra.mxu0 %v2696
    %2714 = vmatprep.subr.bf16.mxu0 0
    %2715 = vmatpush2.bf16.msra.mxu0 0
    %2716 = vmatprep.subr.bf16.mxu0 0
    %2717 = vmatpush2.bf16.msra.mxu0 0
    %2718 = vmatprep.subr.bf16.mxu0 0
    %2719 = vmatpush2.bf16.msra.mxu0 0
    %2720 = vmatprep.subr.bf16.mxu0 0
    %2721 = vmatpush2.bf16.msra.mxu0 0
    %2722 = vmatprep.subr.bf16.mxu0 0
    %2723 = vmatpush2.bf16.msra.mxu0 0
    %2724 = vmatprep.subr.bf16.mxu0 0
    %2725 = vmatpush2.bf16.msra.mxu0 0
    %2726 = vmatprep.subr.bf16.mxu0 0
    %2727 = vmatpush2.bf16.msra.mxu0 0
    %2728 = vmatprep.subr.bf16.mxu0 0
    %2729 = vmatpush2.bf16.msra.mxu0 0
    %2730 = vmatprep.mubr.bf16.mxu0 0
    %2731 = vmatmul.mubr.bf16.gmra.mxu0 %v2693
    %v2732 = vpop.f32.mrf.mxu0
    %v2733 = vadd.f32 0.0, %v2732
    %v2734 = vpop.f32.mrf.mxu0
    %v2735 = vpop.f32.mrf.mxu0
    %v2736 = vadd.f32 0.0, %v2735
    %v2737 = vpop.f32.mrf.mxu0
    %2738 = vdwg.mxu0
    %v2740 = vsel %vm380, %v2684, 0
    %v2743 = vsel %vm871, %v2689, 0
    %2745 = vmatprep.subr.bf16.mxu0 0
    %2746 = vmatpush1.bf16.msra.mxu0 0
    %2747 = vmatprep.subr.bf16.mxu0 0
    %2748 = vmatpush1.bf16.msra.mxu0 0
    %2749 = vmatprep.subr.bf16.mxu0 0
    %2750 = vmatpush1.bf16.msra.mxu0 0
    %2751 = vmatprep.subr.bf16.mxu0 0
    %2752 = vmatpush1.bf16.msra.mxu0 0
    %2753 = vmatprep.subr.bf16.mxu0 0
    %2754 = vmatpush1.bf16.msra.mxu0 0
    %2755 = vmatprep.subr.bf16.mxu0 0
    %2756 = vmatpush1.bf16.msra.mxu0 0
    %2757 = vmatprep.subr.bf16.mxu0 0
    %2758 = vmatpush1.bf16.msra.mxu0 0
    %2759 = vmatprep.subr.bf16.mxu0 0
    %2760 = vmatpush1.bf16.msra.mxu0 %v2743
    %2761 = vmatprep.subr.bf16.mxu0 0
    %2762 = vmatpush2.bf16.msra.mxu0 0
    %2763 = vmatprep.subr.bf16.mxu0 0
    %2764 = vmatpush2.bf16.msra.mxu0 0
    %2765 = vmatprep.subr.bf16.mxu0 0
    %2766 = vmatpush2.bf16.msra.mxu0 0
    %2767 = vmatprep.subr.bf16.mxu0 0
    %2768 = vmatpush2.bf16.msra.mxu0 0
    %2769 = vmatprep.subr.bf16.mxu0 0
    %2770 = vmatpush2.bf16.msra.mxu0 0
    %2771 = vmatprep.subr.bf16.mxu0 0
    %2772 = vmatpush2.bf16.msra.mxu0 0
    %2773 = vmatprep.subr.bf16.mxu0 0
    %2774 = vmatpush2.bf16.msra.mxu0 0
    %2775 = vmatprep.subr.bf16.mxu0 0
    %2776 = vmatpush2.bf16.msra.mxu0 0
    %2777 = vmatprep.mubr.bf16.mxu0 0
    %2778 = vmatmul.mubr.bf16.gmra.mxu0 %v2740
    %v2779 = vpop.f32.mrf.mxu0
    %v2780 = vadd.f32 0.0, %v2779
    %v2781 = vpop.f32.mrf.mxu0
    %v2782 = vpop.f32.mrf.mxu0
    %v2783 = vadd.f32 0.0, %v2782
    %v2784 = vpop.f32.mrf.mxu0
    %2785 = vdwg.mxu0
    %v2787 = vsel %vm380, %v2685, 0
    %v2790 = vsel %vm871, %v2690, 0
    %2792 = vmatprep.subr.bf16.mxu0 0
    %2793 = vmatpush1.bf16.msra.mxu0 0
    %2794 = vmatprep.subr.bf16.mxu0 0
    %2795 = vmatpush1.bf16.msra.mxu0 0
    %2796 = vmatprep.subr.bf16.mxu0 0
    %2797 = vmatpush1.bf16.msra.mxu0 0
    %2798 = vmatprep.subr.bf16.mxu0 0
    %2799 = vmatpush1.bf16.msra.mxu0 0
    %2800 = vmatprep.subr.bf16.mxu0 0
    %2801 = vmatpush1.bf16.msra.mxu0 0
    %2802 = vmatprep.subr.bf16.mxu0 0
    %2803 = vmatpush1.bf16.msra.mxu0 0
    %2804 = vmatprep.subr.bf16.mxu0 0
    %2805 = vmatpush1.bf16.msra.mxu0 0
    %2806 = vmatprep.subr.bf16.mxu0 0
    %2807 = vmatpush1.bf16.msra.mxu0 %v2790
    %2808 = vmatprep.subr.bf16.mxu0 0
    %2809 = vmatpush2.bf16.msra.mxu0 0
    %2810 = vmatprep.subr.bf16.mxu0 0
    %2811 = vmatpush2.bf16.msra.mxu0 0
    %2812 = vmatprep.subr.bf16.mxu0 0
    %2813 = vmatpush2.bf16.msra.mxu0 0
    %2814 = vmatprep.subr.bf16.mxu0 0
    %2815 = vmatpush2.bf16.msra.mxu0 0
    %2816 = vmatprep.subr.bf16.mxu0 0
    %2817 = vmatpush2.bf16.msra.mxu0 0
    %2818 = vmatprep.subr.bf16.mxu0 0
    %2819 = vmatpush2.bf16.msra.mxu0 0
    %2820 = vmatprep.subr.bf16.mxu0 0
    %2821 = vmatpush2.bf16.msra.mxu0 0
    %2822 = vmatprep.subr.bf16.mxu0 0
    %2823 = vmatpush2.bf16.msra.mxu0 0
    %2824 = vmatprep.mubr.bf16.mxu0 0
    %2825 = vmatmul.mubr.bf16.gmra.mxu0 %v2787
    %v2826 = vpop.f32.mrf.mxu0
    %v2827 = vadd.f32 0.0, %v2826
    %v2828 = vpop.f32.mrf.mxu0
    %v2829 = vpop.f32.mrf.mxu0
    %v2830 = vadd.f32 0.0, %v2829
    %v2831 = vpop.f32.mrf.mxu0
    %2832 = vdwg.mxu0
    %v2834 = vsel %vm380, %v2686, 0
    %v2837 = vsel %vm871, %v2691, 0
    %2839 = vmatprep.subr.bf16.mxu0 0
    %2840 = vmatpush1.bf16.msra.mxu0 0
    %2841 = vmatprep.subr.bf16.mxu0 0
    %2842 = vmatpush1.bf16.msra.mxu0 0
    %2843 = vmatprep.subr.bf16.mxu0 0
    %2844 = vmatpush1.bf16.msra.mxu0 0
    %2845 = vmatprep.subr.bf16.mxu0 0
    %2846 = vmatpush1.bf16.msra.mxu0 0
    %2847 = vmatprep.subr.bf16.mxu0 0
    %2848 = vmatpush1.bf16.msra.mxu0 0
    %2849 = vmatprep.subr.bf16.mxu0 0
    %2850 = vmatpush1.bf16.msra.mxu0 0
    %2851 = vmatprep.subr.bf16.mxu0 0
    %2852 = vmatpush1.bf16.msra.mxu0 0
    %2853 = vmatprep.subr.bf16.mxu0 0
    %2854 = vmatpush1.bf16.msra.mxu0 %v2837
    %2855 = vmatprep.subr.bf16.mxu0 0
    %2856 = vmatpush2.bf16.msra.mxu0 0
    %2857 = vmatprep.subr.bf16.mxu0 0
    %2858 = vmatpush2.bf16.msra.mxu0 0
    %2859 = vmatprep.subr.bf16.mxu0 0
    %2860 = vmatpush2.bf16.msra.mxu0 0
    %2861 = vmatprep.subr.bf16.mxu0 0
    %2862 = vmatpush2.bf16.msra.mxu0 0
    %2863 = vmatprep.subr.bf16.mxu0 0
    %2864 = vmatpush2.bf16.msra.mxu0 0
    %2865 = vmatprep.subr.bf16.mxu0 0
    %2866 = vmatpush2.bf16.msra.mxu0 0
    %2867 = vmatprep.subr.bf16.mxu0 0
    %2868 = vmatpush2.bf16.msra.mxu0 0
    %2869 = vmatprep.subr.bf16.mxu0 0
    %2870 = vmatpush2.bf16.msra.mxu0 0
    %2871 = vmatprep.mubr.bf16.mxu0 0
    %2872 = vmatmul.mubr.bf16.gmra.mxu0 %v2834
    %v2873 = vpop.f32.mrf.mxu0
    %v2874 = vadd.f32 0.0, %v2873
    %v2875 = vpop.f32.mrf.mxu0
    %v2876 = vpop.f32.mrf.mxu0
    %v2877 = vadd.f32 0.0, %v2876
    %v2878 = vpop.f32.mrf.mxu0
    %2879 = vdwg.mxu0
    %v2880 = vsel %vm225, %v2733, 0.0
    %v2881 = vsel %vm225, %v2780, 0.0
    %v2882 = vadd.f32 %v2880, %v2881
    %v2883 = vsel %vm225, %v2827, 0.0
    %v2884 = vadd.f32 %v2882, %v2883
    %v2885 = vsel %vm225, %v2874, 0.0
    %v2886 = vadd.f32 %v2884, %v2885
    %v2887 = vsel %vm225, %v2736, 0.0
    %v2888 = vsel %vm225, %v2783, 0.0
    %v2889 = vadd.f32 %v2887, %v2888
    %v2890 = vsel %vm225, %v2830, 0.0
    %v2891 = vadd.f32 %v2889, %v2890
    %v2892 = vsel %vm225, %v2877, 0.0
    %v2893 = vadd.f32 %v2891, %v2892
    %v2894 = vlaneseq
    %v2895 = vshrl.u32 %v2894, 7
    %v2896 = vsub.s32 1, %v2895
    %v2897 = vrot.slane %v1721, %v2896
    %v2898 = vadd.f32 %v2886, %v2897
    %v2899 = vadd.f32 %v2893, %v2897
    %v2900 = vadd.f32 %v2898, %v1713
    %v2901 = vadd.f32 %v2899, %v1714
    %v2902 = vsel %vm225, %v2900, 0.0
    %2903 = vadd.xlane.f32.xlu0 %v2902
    %v2904 = vpop.xlane.xlu0 %2903
    %v2905 = vsel %vm225, %v2901, 0.0
    %2906 = vadd.xlane.f32.xlu0 %v2905
    %v2907 = vpop.xlane.xlu0 %2906
    %v2908 = vmul.f32 %v2904, %v232
    %v2909 = vmul.f32 %v2907, %v232
    %v2910 = vsub.f32 %v2900, %v2908
    %v2911 = vsub.f32 %v2901, %v2909
    %v2912 = vmul.f32 %v2910, %v2910
    %v2913 = vmul.f32 %v2911, %v2911
    %v2914 = vsel %vm225, %v2912, 0.0
    %2915 = vadd.xlane.f32.xlu0 %v2914
    %v2916 = vpop.xlane.xlu0 %2915
    %v2917 = vsel %vm225, %v2913, 0.0
    %2918 = vadd.xlane.f32.xlu0 %v2917
    %v2919 = vpop.xlane.xlu0 %2918
    %v2920 = vmul.f32 %v2916, %v232
    %v2921 = vmul.f32 %v2919, %v232
    %v2922 = vadd.f32 %v2920, 1e-12
    %v2923 = vadd.f32 %v2921, 1e-12
    %v2924 = vrsqrt.pop %v2922
    %v2925 = vrsqrt.pop %v2923
    %v2926 = vmul.f32 %v2910, %v2924
    %v2927 = vmul.f32 %v2911, %v2925
    %v2928 = vlaneseq
    %v2929 = vshrl.u32 %v2928, 7
    %v2930 = vsub.s32 2, %v2929
    %v2931 = vrot.slane %v1721, %v2930
    %v2932 = vmul.f32 %v2926, %v2931
    %v2933 = vmul.f32 %v2927, %v2931
    %v2934 = vlaneseq
    %v2935 = vshrl.u32 %v2934, 7
    %v2936 = vsub.s32 3, %v2935
    %v2937 = vrot.slane %v1721, %v2936
    %v2938 = vadd.f32 %v2932, %v2937
    %v2939 = vadd.f32 %v2933, %v2937
    %v2940 = vpack.c.bf16 %v2939, %v2938
    %v2941 = vlaneseq
    %v2942 = vshrl.u32 %v2941, 7
    %v2943 = vsub.s32 4, %v2942
    %v2944 = vrot.slane %v1721, %v2943
    %v2945 = vunpack.c.h.b16 %v1716
    %v2946 = vunpack.c.h.b16 %v1717
    %v2947 = vunpack.c.h.b16 %v1718
    %v2948 = vunpack.c.h.b16 %v1719
    %v2949 = vpack.c.b16 %v2946, %v2945
    %v2950 = vpack.c.b16 %v2948, %v2947
    %2951 = vrot.lane.b32.xlu0 %v1735, 32
    %v2952 = vpop.permute.xlu0 %2951
    %2953 = vrot.lane.b32.xlu0 %v2949, 32
    %v2954 = vpop.permute.xlu0 %2953
    %2955 = vrot.lane.b32.xlu0 %v1736, 32
    %v2956 = vpop.permute.xlu0 %2955
    %2957 = vrot.lane.b32.xlu0 %v2950, 32
    %v2958 = vpop.permute.xlu0 %2957
    %v2959 = vsel %vm1526, %v2952, %v2954
    %v2960 = vsel %vm1526, %v2956, %v2958
    %v2964 = vsel %vm225, %v2940, 0
    %2966 = vmatprep.subr.bf16.mxu0 0
    %2967 = vmatpush1.bf16.msra.mxu0 0
    %2968 = vmatprep.subr.bf16.mxu0 0
    %2969 = vmatpush1.bf16.msra.mxu0 0
    %2970 = vmatprep.subr.bf16.mxu0 0
    %2971 = vmatpush1.bf16.msra.mxu0 0
    %2972 = vmatprep.subr.bf16.mxu0 0
    %2973 = vmatpush1.bf16.msra.mxu0 0
    %2974 = vmatprep.subr.bf16.mxu0 0
    %2975 = vmatpush1.bf16.msra.mxu0 0
    %2976 = vmatprep.subr.bf16.mxu0 0
    %2977 = vmatpush1.bf16.msra.mxu0 0
    %2978 = vmatprep.subr.bf16.mxu0 0
    %2979 = vmatpush1.bf16.msra.mxu0 %v2960
    %2980 = vmatprep.subr.bf16.mxu0 0
    %2981 = vmatpush1.bf16.msra.mxu0 %v2959
    %2982 = vmatprep.subr.bf16.mxu0 0
    %2983 = vmatpush2.bf16.msra.mxu0 0
    %2984 = vmatprep.subr.bf16.mxu0 0
    %2985 = vmatpush2.bf16.msra.mxu0 0
    %2986 = vmatprep.subr.bf16.mxu0 0
    %2987 = vmatpush2.bf16.msra.mxu0 0
    %2988 = vmatprep.subr.bf16.mxu0 0
    %2989 = vmatpush2.bf16.msra.mxu0 0
    %2990 = vmatprep.subr.bf16.mxu0 0
    %2991 = vmatpush2.bf16.msra.mxu0 0
    %2992 = vmatprep.subr.bf16.mxu0 0
    %2993 = vmatpush2.bf16.msra.mxu0 0
    %2994 = vmatprep.subr.bf16.mxu0 0
    %2995 = vmatpush2.bf16.msra.mxu0 0
    %2996 = vmatprep.subr.bf16.mxu0 0
    %2997 = vmatpush2.bf16.msra.mxu0 0
    %2998 = vmatprep.mubr.bf16.mxu0 0
    %2999 = vmatmul.mubr.bf16.gmra.mxu0 %v2964
    %v3000 = vpop.f32.mrf.mxu0
    %v3001 = vadd.f32 %v2944, %v3000
    %v3002 = vpop.f32.mrf.mxu0
    %v3003 = vpop.f32.mrf.mxu0
    %v3004 = vadd.f32 %v2944, %v3003
    %v3005 = vpop.f32.mrf.mxu0
    %3006 = vdwg.mxu0
    %v3007 = vmul.f32 %v3001, %v3001
    %v3008 = vmul.f32 %v3004, %v3004
    %v3009 = vmul.f32 %v3001, 0.5
    %v3010 = vmul.f32 %v3004, 0.5
    %v3011 = vmul.f32 %v3001, 0.044715
    %v3012 = vmul.f32 %v3004, 0.044715
    %v3013 = vmul.f32 %v3011, %v3007
    %v3014 = vmul.f32 %v3012, %v3008
    %v3015 = vadd.f32 %v3001, %v3013
    %v3016 = vadd.f32 %v3004, %v3014
    %v3017 = vmul.f32 %v3015, 0.7978846
    %v3018 = vmul.f32 %v3016, 0.7978846
    %v3019 = vtanh.pop %v3017
    %v3020 = vtanh.pop %v3018
    %v3021 = vadd.f32 %v3019, 1.0
    %v3022 = vadd.f32 %v3020, 1.0
    %v3023 = vmul.f32 %v3009, %v3021
    %v3024 = vmul.f32 %v3010, %v3022
    %s3025 = scalar_lea.vmem [#allocation8], 32
    %v3026 = vld [vmem:[%s3025] sm:$0xf]
    %v3027 = vld [vmem:[%s3025 + $0x4] sm:$0xf]
    %v3028 = vld [vmem:[%s3025 + $0x8] sm:$0xf]
    %v3029 = vld [vmem:[%s3025 + $0xc] sm:$0xf]
    %v3030 = vld [vmem:[%s3025 + $0x10] sm:$0xf]
    %v3031 = vld [vmem:[%s3025 + $0x14] sm:$0xf]
    %v3032 = vld [vmem:[%s3025 + $0x18] sm:$0xf]
    %v3033 = vld [vmem:[%s3025 + $0x1c] sm:$0xf]
    %v3034 = vpack.c.bf16 %v3024, %v3023
    %v3035 = vlaneseq
    %v3036 = vshrl.u32 %v3035, 7
    %v3037 = vsub.s32 5, %v3036
    %v3038 = vrot.slane %v1721, %v3037
    %v3047 = vunpack.c.l.b16 %v3026
    %v3048 = vunpack.c.l.b16 %v3027
    %v3049 = vunpack.c.l.b16 %v3028
    %v3050 = vunpack.c.l.b16 %v3029
    %v3051 = vunpack.c.l.b16 %v3030
    %v3052 = vunpack.c.l.b16 %v3031
    %v3053 = vunpack.c.l.b16 %v3032
    %v3054 = vunpack.c.l.b16 %v3033
    %v3055 = vpack.c.b16 %v3048, %v3047
    %v3056 = vpack.c.b16 %v3050, %v3049
    %v3057 = vpack.c.b16 %v3052, %v3051
    %v3058 = vpack.c.b16 %v3054, %v3053
    %v3064 = vsel %vm1630, %v3034, 0
    %3066 = vmatprep.subr.bf16.mxu0 0
    %3067 = vmatpush1.bf16.msra.mxu0 0
    %3068 = vmatprep.subr.bf16.mxu0 0
    %3069 = vmatpush1.bf16.msra.mxu0 0
    %3070 = vmatprep.subr.bf16.mxu0 0
    %3071 = vmatpush1.bf16.msra.mxu0 0
    %3072 = vmatprep.subr.bf16.mxu0 0
    %3073 = vmatpush1.bf16.msra.mxu0 0
    %3074 = vmatprep.subr.bf16.mxu0 0
    %3075 = vmatpush1.bf16.msra.mxu0 %v3058
    %3076 = vmatprep.subr.bf16.mxu0 0
    %3077 = vmatpush1.bf16.msra.mxu0 %v3057
    %3078 = vmatprep.subr.bf16.mxu0 0
    %3079 = vmatpush1.bf16.msra.mxu0 %v3056
    %3080 = vmatprep.subr.bf16.mxu0 0
    %3081 = vmatpush1.bf16.msra.mxu0 %v3055
    %3082 = vmatprep.subr.bf16.mxu0 0
    %3083 = vmatpush2.bf16.msra.mxu0 0
    %3084 = vmatprep.subr.bf16.mxu0 0
    %3085 = vmatpush2.bf16.msra.mxu0 0
    %3086 = vmatprep.subr.bf16.mxu0 0
    %3087 = vmatpush2.bf16.msra.mxu0 0
    %3088 = vmatprep.subr.bf16.mxu0 0
    %3089 = vmatpush2.bf16.msra.mxu0 0
    %3090 = vmatprep.subr.bf16.mxu0 0
    %3091 = vmatpush2.bf16.msra.mxu0 0
    %3092 = vmatprep.subr.bf16.mxu0 0
    %3093 = vmatpush2.bf16.msra.mxu0 0
    %3094 = vmatprep.subr.bf16.mxu0 0
    %3095 = vmatpush2.bf16.msra.mxu0 0
    %3096 = vmatprep.subr.bf16.mxu0 0
    %3097 = vmatpush2.bf16.msra.mxu0 0
    %3098 = vmatprep.mubr.bf16.mxu0 0
    %3099 = vmatmul.mubr.bf16.gmra.mxu0 %v3064
    %v3100 = vpop.f32.mrf.mxu0
    %v3101 = vadd.f32 %v3038, %v3100
    %v3102 = vpop.f32.mrf.mxu0
    %v3103 = vpop.f32.mrf.mxu0
    %v3104 = vadd.f32 %v3038, %v3103
    %v3105 = vpop.f32.mrf.mxu0
    %3106 = vdwg.mxu0
    %v3107 = vadd.f32 %v3101, %v2938
    %v3108 = vadd.f32 %v3104, %v2939
    %v3109 = vsel %vm225, %v3107, 0.0
    %3110 = vadd.xlane.f32.xlu0 %v3109
    %v3111 = vpop.xlane.xlu0 %3110
    %v3112 = vsel %vm225, %v3108, 0.0
    %3113 = vadd.xlane.f32.xlu0 %v3112
    %v3114 = vpop.xlane.xlu0 %3113
    %v3115 = vmul.f32 %v3111, %v232
    %v3116 = vmul.f32 %v3114, %v232
    %v3117 = vsub.f32 %v3107, %v3115
    %v3118 = vsub.f32 %v3108, %v3116
    %v3119 = vmul.f32 %v3117, %v3117
    %v3120 = vmul.f32 %v3118, %v3118
    %v3121 = vsel %vm225, %v3119, 0.0
    %3122 = vadd.xlane.f32.xlu0 %v3121
    %v3123 = vpop.xlane.xlu0 %3122
    %v3124 = vsel %vm225, %v3120, 0.0
    %3125 = vadd.xlane.f32.xlu0 %v3124
    %v3126 = vpop.xlane.xlu0 %3125
    %v3127 = vmul.f32 %v3123, %v232
    %v3128 = vmul.f32 %v3126, %v232
    %v3129 = vadd.f32 %v3127, 1e-12
    %v3130 = vadd.f32 %v3128, 1e-12
    %v3131 = vrsqrt.pop %v3129
    %v3132 = vrsqrt.pop %v3130
    %v3133 = vmul.f32 %v3117, %v3131
    %v3134 = vmul.f32 %v3118, %v3132
    %v3135 = vlaneseq
    %v3136 = vshrl.u32 %v3135, 7
    %v3137 = vsub.s32 6, %v3136
    %v3138 = vrot.slane %v1721, %v3137
    %v3139 = vmul.f32 %v3133, %v3138
    %v3140 = vmul.f32 %v3134, %v3138
    %v3141 = vlaneseq
    %v3142 = vshrl.u32 %v3141, 7
    %v3143 = vsub.s32 7, %v3142
    %v3144 = vrot.slane %v1721, %v3143
    %v3145 = vadd.f32 %v3139, %v3144
    %v3146 = vadd.f32 %v3140, %v3144
    %v3147 = vsel %vm225, %v3145, 0.0
    %v3148 = vrot.slane %v3147, 4
    %v3149 = vadd.f32 %v3147, %v3148
    %v3150 = vrot.slane %v3149, 2
    %v3151 = vadd.f32 %v3149, %v3150
    %v3152 = vrot.slane %v3151, 1
    %v3153 = vadd.f32 %v3151, %v3152
    %v3154 = vsel %vm225, %v3146, 0.0
    %v3155 = vrot.slane %v3154, 4
    %v3156 = vadd.f32 %v3154, %v3155
    %v3157 = vrot.slane %v3156, 2
    %v3158 = vadd.f32 %v3156, %v3157
    %v3159 = vrot.slane %v3158, 1
    %v3160 = vadd.f32 %v3158, %v3159
    %v3161 = vrcp.pop 8.0
    %v3162 = vmul.f32 %v3153, %v3161
    %v3163 = vmul.f32 %v3160, %v3161
    %v3164 = vld [vmem:[#allocation11] sm:$0xf]
    %v3165 = vld [vmem:[#allocation11 + $0x4] sm:$0xf]
    %v3166 = vld [vmem:[#allocation11 + $0x8] sm:$0xf]
    %v3167 = vld [vmem:[#allocation11 + $0xc] sm:$0xf]
    %v3168 = vpack.c.bf16 %v3162, %v3162
    %v3169 = vpack.c.bf16 %v3163, %v3163
    %v3170 = vlaneseq
    %v3171 = vshrl.u32 %v3170, 7
    %v3172 = vsub.s32 2, %v3171
    %v3173 = vrot.slane %v224, %v3172
    %v3176 = vunpack.c.l.b16 %v3168
    %v3177 = vunpack.c.l.b16 %v3169
    %vm3178 = vcmask 1041409
    %v3179 = vsel %vm3178, %v3177, %v3176
    %v3180 = vpack.c.b16 %v3179, %v3179
    %v3185 = vunpack.c.l.b16 %v3164
    %v3186 = vunpack.c.l.b16 %v3165
    %v3187 = vunpack.c.l.b16 %v3166
    %v3188 = vunpack.c.l.b16 %v3167
    %v3189 = vpack.c.b16 %v3186, %v3185
    %v3190 = vpack.c.b16 %v3188, %v3187
    %v3194 = vsel %vm225, %v3180, 0
    %3196 = vmatprep.subr.bf16.mxu0 0
    %3197 = vmatpush1.bf16.msra.mxu0 0
    %3198 = vmatprep.subr.bf16.mxu0 0
    %3199 = vmatpush1.bf16.msra.mxu0 0
    %3200 = vmatprep.subr.bf16.mxu0 0
    %3201 = vmatpush1.bf16.msra.mxu0 0
    %3202 = vmatprep.subr.bf16.mxu0 0
    %3203 = vmatpush1.bf16.msra.mxu0 0
    %3204 = vmatprep.subr.bf16.mxu0 0
    %3205 = vmatpush1.bf16.msra.mxu0 0
    %3206 = vmatprep.subr.bf16.mxu0 0
    %3207 = vmatpush1.bf16.msra.mxu0 0
    %3208 = vmatprep.subr.bf16.mxu0 0
    %3209 = vmatpush1.bf16.msra.mxu0 %v3190
    %3210 = vmatprep.subr.bf16.mxu0 0
    %3211 = vmatpush1.bf16.msra.mxu0 %v3189
    %3212 = vmatprep.subr.bf16.mxu0 0
    %3213 = vmatpush2.bf16.msra.mxu0 0
    %3214 = vmatprep.subr.bf16.mxu0 0
    %3215 = vmatpush2.bf16.msra.mxu0 0
    %3216 = vmatprep.subr.bf16.mxu0 0
    %3217 = vmatpush2.bf16.msra.mxu0 0
    %3218 = vmatprep.subr.bf16.mxu0 0
    %3219 = vmatpush2.bf16.msra.mxu0 0
    %3220 = vmatprep.subr.bf16.mxu0 0
    %3221 = vmatpush2.bf16.msra.mxu0 0
    %3222 = vmatprep.subr.bf16.mxu0 0
    %3223 = vmatpush2.bf16.msra.mxu0 0
    %3224 = vmatprep.subr.bf16.mxu0 0
    %3225 = vmatpush2.bf16.msra.mxu0 0
    %3226 = vmatprep.subr.bf16.mxu0 0
    %3227 = vmatpush2.bf16.msra.mxu0 0
    %3228 = vmatprep.mubr.bf16.mxu0 0
    %3229 = vmatmul.mubr.bf16.gmra.mxu0 %v3194
    %v3230 = vpop.f32.mrf.mxu0
    %v3231 = vadd.f32 %v3173, %v3230
    %v3232 = vpop.f32.mrf.mxu0
    %v3233 = vpop.f32.mrf.mxu0
    %v3234 = vpop.f32.mrf.mxu0
    %3235 = vdwg.mxu0
    %v3236 = vtanh.pop %v3231
    %vm3237 = vcmask 254976
    %3238 = vst.msk [vmem:[#allocation13] sm:$0x3] %vm3237, %v3236
    // Predicated region
    $region62: #{sentence_encoder_forward.1} parent=1 // pred_check
      _
    $region63: #{sentence_encoder_forward.1} parent=1 // pred_check_branch
      %3240 = sbr.rel (0) target = $region65
    $region64: #{sentence_encoder_forward.1} parent=1 // pred_region
      %s3242 = ssub.s32 32, 32
      %3243 = vsyncadd [#allocation4], %s3242
      %s3245 = sshll.u32 [#allocation13], 4
      %s3246 = int_to_ptr.vmem [resolvable:$true] %s3245
      %3248 = dma.vmem_to_hbm [thread:$0]  %s3246, 32, %s9, [#allocation4]
    $region65: #{sentence_encoder_forward.1} parent=1 // pred_fallthru
      _
    // Predicated region
    $region66: #{sentence_encoder_forward.1} parent=1 // pred_check
      _
    $region67: #{sentence_encoder_forward.1} parent=1 // pred_check_branch
      %3250 = sbr.rel (0) target = $region69
    $region68: #{sentence_encoder_forward.1} parent=1 // pred_region
      %3251 = dma.done [#allocation4], 32
    $region69: #{sentence_encoder_forward.1} parent=1 // pred_fallthru
      _
    %3252 = vsyncpa [#allocation3], 1
    %3253 = vsyncpa [#allocation6], 1
    %3254 = vsyncpa [#allocation9], 1
    %3255 = vsyncpa [#allocation12], 1
    %3256 = vsyncpa [#allocation4], 1

</llo_original>
